<compile_context>
chip_gen: v7x
topology: tpu7x:2x2x1
jax: 0.10.0
libtpu: 0.0.40
codegen_flags: <defaults>
</compile_context>

<pallas_src>
import math

import jax
import jax.numpy as jnp
from jax import lax
from jax.experimental import pallas as pl
from jax.experimental.pallas import tpu as pltpu

# ---------------- configuration (small, consistent with the module) ----------------
IMAGE_SIZE = 16            # square 2D image
PATCH = 4                  # patch_size
C = 4                      # n_channels
B = 2                      # batch
N_PATCH = (IMAGE_SIZE // PATCH) ** 2      # 16 patches
D = C * PATCH * PATCH                     # 64 = n_features (linear embed keeps patch dim)
N_HEADS = 4
HEAD_DIM = D // N_HEADS                   # 16
MLP_HIDDEN = 128
ENC_BLOCKS = 2
DEC_BLOCKS = 2
TOTAL_BLOCKS = ENC_BLOCKS + DEC_BLOCKS
LN_EPS = 1e-5
ATTN_SCALE = 1.0 / math.sqrt(HEAD_DIM)

TOKENS = B * N_PATCH                      # 32  -> batch folded into the token axis
STACK = N_HEADS * TOKENS                  # 128 -> head-stacked rows for attention
NEG_INF = -1e30

# power-of-two shifts used instead of vector integer division inside the kernel
_LOG_HD = HEAD_DIM.bit_length() - 1       # 4
_LOG_T = TOKENS.bit_length() - 1          # 5
_LOG_NP = N_PATCH.bit_length() - 1        # 4


# ============================ fused forward kernel ============================
def vit_ae_kernel(tok_ref, pw_ref, pb_ref, ppos_ref, pemb_ref,
                  lng_ref, lnb_ref, wq_ref, wk_ref, wv_ref, bqkv_ref,
                  wo_ref, bo_ref, w1_ref, b1_ref, w2_ref, b2_ref, out_ref):
    """Projection + encoder blocks + pos-emb add + decoder blocks, fused, single invocation.

    Residual stream is a 2-D [TOKENS, D] matrix (batch folded into rows); attention for all
    heads / batch elements is computed with block masks so every op stays a clean 2-D tile op.
    """
    f32, bf16 = jnp.float32, jnp.bfloat16

    def layer_norm(x2, g, b):                         # x2: [T, D], g/b: [1, D]   (f32 VPU)
        mu = jnp.mean(x2, axis=-1, keepdims=True)
        xc = x2 - mu
        var = jnp.mean(xc * xc, axis=-1, keepdims=True)
        return xc * lax.rsqrt(var + LN_EPS) * g + b

    def mxu(a, w):                                    # bf16 MXU operands, f32 accumulation
        return jnp.dot(a.astype(bf16), w, preferred_element_type=f32)

    # ---------------- hoisted per-call constants (shared by all 4 blocks) ----------------
    # head mask: stacked row-block h keeps only head-h feature columns.
    col = lax.broadcasted_iota(jnp.int32, (STACK, D), 1)
    row = lax.broadcasted_iota(jnp.int32, (STACK, D), 0)
    head_mask = ((col >> _LOG_HD) == (row >> _LOG_T)).astype(f32)            # [STACK, D]
    # additive score mask: a query token may only attend to keys of its own batch element.
    qrow = lax.broadcasted_iota(jnp.int32, (STACK, TOKENS), 0)
    kcol = lax.broadcasted_iota(jnp.int32, (STACK, TOKENS), 1)
    same_batch = ((qrow & (TOKENS - 1)) >> _LOG_NP) == (kcol >> _LOG_NP)
    score_mask = jnp.where(same_batch, 0.0, NEG_INF).astype(f32)              # [STACK, TOKENS]
    # positional embeddings tiled over the folded batch.
    ppos_t = jnp.concatenate([ppos_ref[...]] * B, axis=0)                     # [TOKENS, D]
    pemb_t = jnp.concatenate([pemb_ref[...]] * B, axis=0)                     # [TOKENS, D]

    # ---------------- LinearEmbedding: linear patch projection + its pos-emb ----------------
    h = mxu(tok_ref[...], pw_ref[...]) + pb_ref[...] + ppos_t                 # [TOKENS, D] f32

    # --------- encoder blocks, + positional_embedding, decoder blocks (static unroll) ---------
    for blk in range(TOTAL_BLOCKS):
        if blk == ENC_BLOCKS:
            h = h + pemb_t             # X = encoder(X) + positional_embedding

        ln_g = lng_ref[blk]                                                   # [2, D]
        ln_b = lnb_ref[blk]
        bqkv = bqkv_ref[blk]                                                  # [3, D]

        # ---- multi-head self-attention (pre-norm), all heads at once via block masks ----
        xn = layer_norm(h, ln_g[0:1, :], ln_b[0:1, :])
        q = mxu(xn, wq_ref[blk]) + bqkv[0:1, :]                               # [TOKENS, D]
        k = mxu(xn, wk_ref[blk]) + bqkv[1:2, :]
        v = mxu(xn, wv_ref[blk]) + bqkv[2:3, :]

        # one score matmul for every head: row-block h of q_stack only carries head-h columns,
        # so contracting against full k yields exactly that head's [TOKENS, TOKENS] scores.
        q_stack = jnp.concatenate([q] * N_HEADS, axis=0) * head_mask          # [STACK, D]
        s = (jnp.einsum('td,kd->tk', q_stack.astype(bf16), k.astype(bf16),
                        preferred_element_type=f32) * ATTN_SCALE + score_mask)
        s = s - jnp.max(s, axis=-1, keepdims=True)
        e = jnp.exp(s)
        p = e * pl.reciprocal(jnp.sum(e, axis=-1, keepdims=True), approx=True)
        ctx_stack = jnp.einsum('tk,kd->td', p.astype(bf16), v.astype(bf16),
                               preferred_element_type=f32)                    # [STACK, D]
        # keep head-h columns of row-block h, sum the head blocks -> per-head concat along D.
        ctx = jnp.sum((ctx_stack * head_mask).reshape(N_HEADS, TOKENS, D), axis=0)
        h = h + mxu(ctx, wo_ref[blk]) + bo_ref[blk]

        # ---- MLP (pre-norm) ----
        xn2 = layer_norm(h, ln_g[1:2, :], ln_b[1:2, :])
        z = jax.nn.gelu(mxu(xn2, w1_ref[blk]) + b1_ref[blk])   # tanh-approx GELU (see TODO)
        h = h + mxu(z, w2_ref[blk]) + b2_ref[blk]

    out_ref[...] = h.astype(out_ref.dtype)


# ============================ cost estimate ============================
def _cost_estimate():
    flops = 2 * TOKENS * D * D                                   # patch projection
    per_blk = (3 * 2 * TOKENS * D * D                            # q, k, v projections
               + 2 * STACK * TOKENS * D                          # scores (all heads)
               + 2 * STACK * TOKENS * D                          # probs @ v
               + 2 * TOKENS * D * D                              # output projection
               + 2 * 2 * TOKENS * D * MLP_HIDDEN)                # MLP
    flops += TOTAL_BLOCKS * per_blk
    transcendentals = TOTAL_BLOCKS * (STACK * TOKENS             # exp
                                      + STACK                    # reciprocal
                                      + TOKENS * MLP_HIDDEN      # gelu
                                      + 2 * TOKENS)              # rsqrt
    bf16_elems = D * D + TOTAL_BLOCKS * (4 * D * D + 2 * D * MLP_HIDDEN)
    f32_elems = (2 * TOKENS * D + 2 * N_PATCH * D + D
                 + TOTAL_BLOCKS * (4 * D + 3 * D + D + MLP_HIDDEN + D))
    return pl.CostEstimate(flops=flops, transcendentals=transcendentals,
                           bytes_accessed=2 * bf16_elems + 4 * f32_elems)


# ============================ wrapper ============================
def patchify(x):
    """NCHW [B,C,H,W] -> [B, n_patches, C*p*p]  (wrapper glue; pure reshape/transpose)."""
    bv, cv, hh, ww = x.shape
    p = PATCH
    x = x.reshape(bv, cv, hh // p, p, ww // p, p)
    x = x.transpose(0, 2, 4, 1, 3, 5)                            # [B, h, w, C, p, p]
    return x.reshape(bv, (hh // p) * (ww // p), cv * p * p)


def vit_autoencoder_forward(x, params):
    patches = patchify(x)                                        # [B, N, D]
    tokens = patches.reshape(TOKENS, D)                          # fold batch into rows
    vmem = pl.BlockSpec(memory_space=pltpu.MemorySpace.VMEM)
    out = pl.pallas_call(
        vit_ae_kernel,
        out_shape=jax.ShapeDtypeStruct((TOKENS, D), jnp.float32),
        in_specs=[vmem] * 17,
        out_specs=vmem,
        cost_estimate=_cost_estimate(),
    )(tokens,
      params['proj_w'], params['proj_b'], params['proj_pos'], params['pos_emb'],
      params['ln_g'], params['ln_b'],
      params['wq'], params['wk'], params['wv'], params['bqkv'],
      params['wo'], params['bo'],
      params['w1'], params['b1'], params['w2'], params['b2'])
    return out.reshape(B, N_PATCH, D)


# ============================ parameter init (deterministic, synthetic) ============================
def _init_block_stack(key, n_blocks):
    ks = jax.random.split(key, 6)
    nrm = lambda k, shape: jax.random.normal(k, shape, dtype=jnp.float32) * 0.02
    return {
        'ln_g': jnp.ones((n_blocks, 2, D), jnp.float32),
        'ln_b': jnp.zeros((n_blocks, 2, D), jnp.float32),
        'wq': nrm(ks[0], (n_blocks, D, D)),
        'wk': nrm(ks[1], (n_blocks, D, D)),
        'wv': nrm(ks[2], (n_blocks, D, D)),
        'bqkv': jnp.zeros((n_blocks, 3, D), jnp.float32),
        'wo': nrm(ks[3], (n_blocks, D, D)),
        'bo': jnp.zeros((n_blocks, 1, D), jnp.float32),
        'w1': nrm(ks[4], (n_blocks, D, MLP_HIDDEN)),
        'b1': jnp.zeros((n_blocks, 1, MLP_HIDDEN), jnp.float32),
        'w2': nrm(ks[5], (n_blocks, MLP_HIDDEN, D)),
        'b2': jnp.zeros((n_blocks, 1, D), jnp.float32),
    }


def init_params(key):
    """Kernel-ready params: encoder+decoder blocks pre-stacked along a leading block axis and
    matmul weights pre-cast to bf16 -- done ONCE here, not in the forward (review item)."""
    kp, kpos, kpe, kenc, kdec = jax.random.split(key, 5)
    enc = _init_block_stack(kenc, ENC_BLOCKS)
    dec = _init_block_stack(kdec, DEC_BLOCKS)
    stk = jax.tree_util.tree_map(lambda a, b: jnp.concatenate([a, b], axis=0), enc, dec)
    bf = lambda t: t.astype(jnp.bfloat16)
    return {
        'proj_w':   bf(jax.random.normal(kp, (D, D), jnp.float32) * 0.02),
        'proj_b':   jnp.zeros((1, D), jnp.float32),
        'proj_pos': jax.random.normal(kpos, (N_PATCH, D), jnp.float32) * 0.02,
        # module-level positional_embedding (trunc_normal std=0.02 ~ normal*0.02)
        'pos_emb':  jax.random.normal(kpe, (N_PATCH, D), jnp.float32) * 0.02,
        'ln_g': stk['ln_g'], 'ln_b': stk['ln_b'],
        'wq': bf(stk['wq']), 'wk': bf(stk['wk']), 'wv': bf(stk['wv']), 'bqkv': stk['bqkv'],
        'wo': bf(stk['wo']), 'bo': stk['bo'],
        'w1': bf(stk['w1']), 'b1': stk['b1'],
        'w2': bf(stk['w2']), 'b2': stk['b2'],
        # decoder_pred exists in __init__ but is not used in forward -> not applied here.
    }


if __name__ == "__main__":
    key = jax.random.PRNGKey(0)
    kx, kparams = jax.random.split(key)
    x = jax.random.normal(kx, (B, C, IMAGE_SIZE, IMAGE_SIZE), dtype=jnp.float32)
    params = init_params(kparams)

    out = jax.jit(vit_autoencoder_forward)(x, params)
    out = jax.block_until_ready(out)

    assert out.shape == (B, N_PATCH, D), out.shape
    assert bool(jnp.all(jnp.isfinite(out)))
    print("KERNEL_OK")
</pallas_src>

<mosaic_0001>
module attributes {stable_mosaic.version = 11 : i64} {
  func.func @vit_ae_kernel(%arg0: memref<32x64xf32, #tpu.memory_space<vmem>>, %arg1: memref<64x64xbf16, #tpu.memory_space<vmem>>, %arg2: memref<1x64xf32, #tpu.memory_space<vmem>>, %arg3: memref<16x64xf32, #tpu.memory_space<vmem>>, %arg4: memref<16x64xf32, #tpu.memory_space<vmem>>, %arg5: memref<4x2x64xf32, #tpu.memory_space<vmem>>, %arg6: memref<4x2x64xf32, #tpu.memory_space<vmem>>, %arg7: memref<4x64x64xbf16, #tpu.memory_space<vmem>>, %arg8: memref<4x64x64xbf16, #tpu.memory_space<vmem>>, %arg9: memref<4x64x64xbf16, #tpu.memory_space<vmem>>, %arg10: memref<4x3x64xf32, #tpu.memory_space<vmem>>, %arg11: memref<4x64x64xbf16, #tpu.memory_space<vmem>>, %arg12: memref<4x1x64xf32, #tpu.memory_space<vmem>>, %arg13: memref<4x64x128xbf16, #tpu.memory_space<vmem>>, %arg14: memref<4x1x128xf32, #tpu.memory_space<vmem>>, %arg15: memref<4x128x64xbf16, #tpu.memory_space<vmem>>, %arg16: memref<4x1x64xf32, #tpu.memory_space<vmem>>, %arg17: memref<32x64xf32, #tpu.memory_space<vmem>>) attributes {dimension_semantics = [], scalar_prefetch = 0 : i64, scratch_operands = 0 : i64, tpu.core_type = #tpu.core_type<tc>} {
    %0 = tpu.iota {dimensions = array<i32: 1>} : vector<128x64xi32>
    %1 = tpu.iota {dimensions = array<i32: 0>} : vector<128x64xi32>
    %c4_i32 = arith.constant 4 : i32
    %2 = vector.broadcast %c4_i32 : i32 to vector<128x64xi32>
    %3 = arith.shrsi %0, %2 : vector<128x64xi32>
    %c5_i32 = arith.constant 5 : i32
    %4 = vector.broadcast %c5_i32 : i32 to vector<128x64xi32>
    %5 = arith.shrsi %1, %4 : vector<128x64xi32>
    %6 = arith.cmpi eq, %3, %5 : vector<128x64xi32>
    %7 = arith.extui %6 : vector<128x64xi1> to vector<128x64xi32>
    %8 = arith.sitofp %7 : vector<128x64xi32> to vector<128x64xf32>
    %9 = tpu.iota {dimensions = array<i32: 0>} : vector<128x32xi32>
    %10 = tpu.iota {dimensions = array<i32: 1>} : vector<128x32xi32>
    %c31_i32 = arith.constant 31 : i32
    %11 = vector.broadcast %c31_i32 : i32 to vector<128x32xi32>
    %12 = arith.andi %9, %11 : vector<128x32xi32>
    %c4_i32_0 = arith.constant 4 : i32
    %13 = vector.broadcast %c4_i32_0 : i32 to vector<128x32xi32>
    %14 = arith.shrsi %12, %13 : vector<128x32xi32>
    %c4_i32_1 = arith.constant 4 : i32
    %15 = vector.broadcast %c4_i32_1 : i32 to vector<128x32xi32>
    %16 = arith.shrsi %10, %15 : vector<128x32xi32>
    %17 = arith.cmpi eq, %14, %16 : vector<128x32xi32>
    %cst = arith.constant 0.000000e+00 : f32
    %cst_2 = arith.constant -1.000000e+30 : f32
    %18 = vector.broadcast %cst : f32 to vector<128x32xf32>
    %19 = vector.broadcast %cst_2 : f32 to vector<128x32xf32>
    %20 = arith.select %17, %18, %19 : vector<128x32xi1>, vector<128x32xf32>
    %c0 = arith.constant 0 : index
    %c0_3 = arith.constant 0 : index
    %21 = vector.load %arg3[%c0, %c0_3] : memref<16x64xf32, #tpu.memory_space<vmem>>, vector<16x64xf32>
    %22 = tpu.concatenate %21, %21 in 0 : vector<16x64xf32>, vector<16x64xf32> -> vector<32x64xf32>
    %c0_4 = arith.constant 0 : index
    %c0_5 = arith.constant 0 : index
    %23 = vector.load %arg4[%c0_4, %c0_5] : memref<16x64xf32, #tpu.memory_space<vmem>>, vector<16x64xf32>
    %24 = tpu.concatenate %23, %23 in 0 : vector<16x64xf32>, vector<16x64xf32> -> vector<32x64xf32>
    %c0_6 = arith.constant 0 : index
    %c0_7 = arith.constant 0 : index
    %25 = vector.load %arg0[%c0_6, %c0_7] : memref<32x64xf32, #tpu.memory_space<vmem>>, vector<32x64xf32>
    %c0_8 = arith.constant 0 : index
    %c0_9 = arith.constant 0 : index
    %26 = vector.load %arg1[%c0_8, %c0_9] : memref<64x64xbf16, #tpu.memory_space<vmem>>, vector<64x64xbf16>
    %27 = arith.truncf %25 : vector<32x64xf32> to vector<32x64xbf16>
    %cst_10 = arith.constant dense<0.000000e+00> : vector<32x64xf32>
    %28 = tpu.matmul %27, %26, %cst_10 {dimension_numbers = #tpu.dot_dimension_numbers<[1], [0], [0], [1], [0, 0, 1, 1], [], []>} : vector<32x64xbf16>, vector<64x64xbf16>, vector<32x64xf32> -> vector<32x64xf32>
    %c0_11 = arith.constant 0 : index
    %c0_12 = arith.constant 0 : index
    %29 = vector.load %arg2[%c0_11, %c0_12] : memref<1x64xf32, #tpu.memory_space<vmem>>, vector<1x64xf32>
    %30 = vector.broadcast %29 : vector<1x64xf32> to vector<32x64xf32>
    %31 = arith.addf %28, %30 : vector<32x64xf32>
    %32 = arith.addf %31, %22 : vector<32x64xf32>
    %c0_13 = arith.constant 0 : index
    %c0_14 = arith.constant 0 : index
    %c0_15 = arith.constant 0 : index
    %33 = vector.load %arg5[%c0_13, %c0_14, %c0_15] : memref<4x2x64xf32, #tpu.memory_space<vmem>>, vector<1x2x64xf32>
    %34 = vector.shape_cast %33 : vector<1x2x64xf32> to vector<2x64xf32>
    %c0_16 = arith.constant 0 : index
    %c0_17 = arith.constant 0 : index
    %c0_18 = arith.constant 0 : index
    %35 = vector.load %arg6[%c0_16, %c0_17, %c0_18] : memref<4x2x64xf32, #tpu.memory_space<vmem>>, vector<1x2x64xf32>
    %36 = vector.shape_cast %35 : vector<1x2x64xf32> to vector<2x64xf32>
    %c0_19 = arith.constant 0 : index
    %c0_20 = arith.constant 0 : index
    %c0_21 = arith.constant 0 : index
    %37 = vector.load %arg10[%c0_19, %c0_20, %c0_21] : memref<4x3x64xf32, #tpu.memory_space<vmem>>, vector<1x3x64xf32>
    %38 = vector.shape_cast %37 : vector<1x3x64xf32> to vector<3x64xf32>
    %39 = vector.extract_strided_slice %34 {offsets = [0, 0], sizes = [1, 64], strides = [1, 1]} : vector<2x64xf32> to vector<1x64xf32>
    %40 = vector.extract_strided_slice %36 {offsets = [0, 0], sizes = [1, 64], strides = [1, 1]} : vector<2x64xf32> to vector<1x64xf32>
    %cst_22 = arith.constant dense<0.000000e+00> : vector<32xf32>
    %41 = vector.multi_reduction <add>, %32, %cst_22 [1] : vector<32x64xf32> to vector<32xf32>
    %42 = vector.shape_cast %41 : vector<32xf32> to vector<32x1xf32>
    %cst_23 = arith.constant 6.400000e+01 : f32
    %43 = vector.broadcast %cst_23 : f32 to vector<32x1xf32>
    %44 = arith.divf %42, %43 : vector<32x1xf32>
    %45 = vector.broadcast %44 : vector<32x1xf32> to vector<32x64xf32>
    %46 = arith.subf %32, %45 : vector<32x64xf32>
    %47 = arith.mulf %46, %46 : vector<32x64xf32>
    %cst_24 = arith.constant dense<0.000000e+00> : vector<32xf32>
    %48 = vector.multi_reduction <add>, %47, %cst_24 [1] : vector<32x64xf32> to vector<32xf32>
    %49 = vector.shape_cast %48 : vector<32xf32> to vector<32x1xf32>
    %cst_25 = arith.constant 6.400000e+01 : f32
    %50 = vector.broadcast %cst_25 : f32 to vector<32x1xf32>
    %51 = arith.divf %49, %50 : vector<32x1xf32>
    %cst_26 = arith.constant 9.99999974E-6 : f32
    %52 = vector.broadcast %cst_26 : f32 to vector<32x1xf32>
    %53 = arith.addf %51, %52 : vector<32x1xf32>
    %54 = math.rsqrt %53 : vector<32x1xf32>
    %55 = vector.broadcast %54 : vector<32x1xf32> to vector<32x64xf32>
    %56 = arith.mulf %46, %55 : vector<32x64xf32>
    %57 = vector.broadcast %39 : vector<1x64xf32> to vector<32x64xf32>
    %58 = arith.mulf %56, %57 : vector<32x64xf32>
    %59 = vector.broadcast %40 : vector<1x64xf32> to vector<32x64xf32>
    %60 = arith.addf %58, %59 : vector<32x64xf32>
    %c0_27 = arith.constant 0 : index
    %c0_28 = arith.constant 0 : index
    %c0_29 = arith.constant 0 : index
    %61 = vector.load %arg7[%c0_27, %c0_28, %c0_29] : memref<4x64x64xbf16, #tpu.memory_space<vmem>>, vector<1x64x64xbf16>
    %62 = vector.shape_cast %61 : vector<1x64x64xbf16> to vector<64x64xbf16>
    %63 = arith.truncf %60 : vector<32x64xf32> to vector<32x64xbf16>
    %cst_30 = arith.constant dense<0.000000e+00> : vector<32x64xf32>
    %64 = tpu.matmul %63, %62, %cst_30 {dimension_numbers = #tpu.dot_dimension_numbers<[1], [0], [0], [1], [0, 0, 1, 1], [], []>} : vector<32x64xbf16>, vector<64x64xbf16>, vector<32x64xf32> -> vector<32x64xf32>
    %65 = vector.extract_strided_slice %38 {offsets = [0, 0], sizes = [1, 64], strides = [1, 1]} : vector<3x64xf32> to vector<1x64xf32>
    %66 = vector.broadcast %65 : vector<1x64xf32> to vector<32x64xf32>
    %67 = arith.addf %64, %66 : vector<32x64xf32>
    %c0_31 = arith.constant 0 : index
    %c0_32 = arith.constant 0 : index
    %c0_33 = arith.constant 0 : index
    %68 = vector.load %arg8[%c0_31, %c0_32, %c0_33] : memref<4x64x64xbf16, #tpu.memory_space<vmem>>, vector<1x64x64xbf16>
    %69 = vector.shape_cast %68 : vector<1x64x64xbf16> to vector<64x64xbf16>
    %70 = arith.truncf %60 : vector<32x64xf32> to vector<32x64xbf16>
    %cst_34 = arith.constant dense<0.000000e+00> : vector<32x64xf32>
    %71 = tpu.matmul %70, %69, %cst_34 {dimension_numbers = #tpu.dot_dimension_numbers<[1], [0], [0], [1], [0, 0, 1, 1], [], []>} : vector<32x64xbf16>, vector<64x64xbf16>, vector<32x64xf32> -> vector<32x64xf32>
    %72 = vector.extract_strided_slice %38 {offsets = [1, 0], sizes = [1, 64], strides = [1, 1]} : vector<3x64xf32> to vector<1x64xf32>
    %73 = vector.broadcast %72 : vector<1x64xf32> to vector<32x64xf32>
    %74 = arith.addf %71, %73 : vector<32x64xf32>
    %c0_35 = arith.constant 0 : index
    %c0_36 = arith.constant 0 : index
    %c0_37 = arith.constant 0 : index
    %75 = vector.load %arg9[%c0_35, %c0_36, %c0_37] : memref<4x64x64xbf16, #tpu.memory_space<vmem>>, vector<1x64x64xbf16>
    %76 = vector.shape_cast %75 : vector<1x64x64xbf16> to vector<64x64xbf16>
    %77 = arith.truncf %60 : vector<32x64xf32> to vector<32x64xbf16>
    %cst_38 = arith.constant dense<0.000000e+00> : vector<32x64xf32>
    %78 = tpu.matmul %77, %76, %cst_38 {dimension_numbers = #tpu.dot_dimension_numbers<[1], [0], [0], [1], [0, 0, 1, 1], [], []>} : vector<32x64xbf16>, vector<64x64xbf16>, vector<32x64xf32> -> vector<32x64xf32>
    %79 = vector.extract_strided_slice %38 {offsets = [2, 0], sizes = [1, 64], strides = [1, 1]} : vector<3x64xf32> to vector<1x64xf32>
    %80 = vector.broadcast %79 : vector<1x64xf32> to vector<32x64xf32>
    %81 = arith.addf %78, %80 : vector<32x64xf32>
    %82 = tpu.concatenate %67, %67, %67, %67 in 0 : vector<32x64xf32>, vector<32x64xf32>, vector<32x64xf32>, vector<32x64xf32> -> vector<128x64xf32>
    %83 = arith.mulf %82, %8 : vector<128x64xf32>
    %84 = arith.truncf %83 : vector<128x64xf32> to vector<128x64xbf16>
    %85 = arith.truncf %74 : vector<32x64xf32> to vector<32x64xbf16>
    "tpu.trace_start"() <{level = 10 : i32, message = "td,kd->tk"}> : () -> ()
    %cst_39 = arith.constant dense<0.000000e+00> : vector<128x32xf32>
    %86 = tpu.matmul %84, %85, %cst_39 {dimension_numbers = #tpu.dot_dimension_numbers<[1], [1], [0], [0], [0, 0, 1, 0], [], []>} : vector<128x64xbf16>, vector<32x64xbf16>, vector<128x32xf32> -> vector<128x32xf32>
    "tpu.trace_stop"() : () -> ()
    %cst_40 = arith.constant 2.500000e-01 : f32
    %87 = vector.broadcast %cst_40 : f32 to vector<128x32xf32>
    %88 = arith.mulf %86, %87 : vector<128x32xf32>
    %89 = arith.addf %88, %20 : vector<128x32xf32>
    %cst_41 = arith.constant dense<0xFF800000> : vector<128xf32>
    %90 = vector.multi_reduction <maximumf>, %89, %cst_41 [1] : vector<128x32xf32> to vector<128xf32>
    %91 = vector.shape_cast %90 : vector<128xf32> to vector<128x1xf32>
    %92 = vector.broadcast %91 : vector<128x1xf32> to vector<128x32xf32>
    %93 = arith.subf %89, %92 : vector<128x32xf32>
    %94 = math.exp %93 : vector<128x32xf32>
    %cst_42 = arith.constant dense<0.000000e+00> : vector<128xf32>
    %95 = vector.multi_reduction <add>, %94, %cst_42 [1] : vector<128x32xf32> to vector<128xf32>
    %96 = vector.shape_cast %95 : vector<128xf32> to vector<128x1xf32>
    %97 = tpu.reciprocal %96 {approx = true} : vector<128x1xf32> -> vector<128x1xf32>
    %98 = vector.broadcast %97 : vector<128x1xf32> to vector<128x32xf32>
    %99 = arith.mulf %94, %98 : vector<128x32xf32>
    %100 = arith.truncf %99 : vector<128x32xf32> to vector<128x32xbf16>
    %101 = arith.truncf %81 : vector<32x64xf32> to vector<32x64xbf16>
    "tpu.trace_start"() <{level = 10 : i32, message = "tk,kd->td"}> : () -> ()
    %cst_43 = arith.constant dense<0.000000e+00> : vector<128x64xf32>
    %102 = tpu.matmul %100, %101, %cst_43 {dimension_numbers = #tpu.dot_dimension_numbers<[1], [0], [0], [1], [0, 0, 1, 1], [], []>} : vector<128x32xbf16>, vector<32x64xbf16>, vector<128x64xf32> -> vector<128x64xf32>
    "tpu.trace_stop"() : () -> ()
    %103 = arith.mulf %102, %8 : vector<128x64xf32>
    %104 = vector.shape_cast %103 : vector<128x64xf32> to vector<4x32x64xf32>
    %cst_44 = arith.constant dense<0.000000e+00> : vector<32x64xf32>
    %105 = vector.multi_reduction <add>, %104, %cst_44 [0] : vector<4x32x64xf32> to vector<32x64xf32>
    %c0_45 = arith.constant 0 : index
    %c0_46 = arith.constant 0 : index
    %c0_47 = arith.constant 0 : index
    %106 = vector.load %arg11[%c0_45, %c0_46, %c0_47] : memref<4x64x64xbf16, #tpu.memory_space<vmem>>, vector<1x64x64xbf16>
    %107 = vector.shape_cast %106 : vector<1x64x64xbf16> to vector<64x64xbf16>
    %108 = arith.truncf %105 : vector<32x64xf32> to vector<32x64xbf16>
    %cst_48 = arith.constant dense<0.000000e+00> : vector<32x64xf32>
    %109 = tpu.matmul %108, %107, %cst_48 {dimension_numbers = #tpu.dot_dimension_numbers<[1], [0], [0], [1], [0, 0, 1, 1], [], []>} : vector<32x64xbf16>, vector<64x64xbf16>, vector<32x64xf32> -> vector<32x64xf32>
    %110 = arith.addf %32, %109 : vector<32x64xf32>
    %c0_49 = arith.constant 0 : index
    %c0_50 = arith.constant 0 : index
    %c0_51 = arith.constant 0 : index
    %111 = vector.load %arg12[%c0_49, %c0_50, %c0_51] : memref<4x1x64xf32, #tpu.memory_space<vmem>>, vector<1x1x64xf32>
    %112 = vector.shape_cast %111 : vector<1x1x64xf32> to vector<1x64xf32>
    %113 = vector.broadcast %112 : vector<1x64xf32> to vector<32x64xf32>
    %114 = arith.addf %110, %113 : vector<32x64xf32>
    %115 = vector.extract_strided_slice %34 {offsets = [1, 0], sizes = [1, 64], strides = [1, 1]} : vector<2x64xf32> to vector<1x64xf32>
    %116 = vector.extract_strided_slice %36 {offsets = [1, 0], sizes = [1, 64], strides = [1, 1]} : vector<2x64xf32> to vector<1x64xf32>
    %cst_52 = arith.constant dense<0.000000e+00> : vector<32xf32>
    %117 = vector.multi_reduction <add>, %114, %cst_52 [1] : vector<32x64xf32> to vector<32xf32>
    %118 = vector.shape_cast %117 : vector<32xf32> to vector<32x1xf32>
    %cst_53 = arith.constant 6.400000e+01 : f32
    %119 = vector.broadcast %cst_53 : f32 to vector<32x1xf32>
    %120 = arith.divf %118, %119 : vector<32x1xf32>
    %121 = vector.broadcast %120 : vector<32x1xf32> to vector<32x64xf32>
    %122 = arith.subf %114, %121 : vector<32x64xf32>
    %123 = arith.mulf %122, %122 : vector<32x64xf32>
    %cst_54 = arith.constant dense<0.000000e+00> : vector<32xf32>
    %124 = vector.multi_reduction <add>, %123, %cst_54 [1] : vector<32x64xf32> to vector<32xf32>
    %125 = vector.shape_cast %124 : vector<32xf32> to vector<32x1xf32>
    %cst_55 = arith.constant 6.400000e+01 : f32
    %126 = vector.broadcast %cst_55 : f32 to vector<32x1xf32>
    %127 = arith.divf %125, %126 : vector<32x1xf32>
    %cst_56 = arith.constant 9.99999974E-6 : f32
    %128 = vector.broadcast %cst_56 : f32 to vector<32x1xf32>
    %129 = arith.addf %127, %128 : vector<32x1xf32>
    %130 = math.rsqrt %129 : vector<32x1xf32>
    %131 = vector.broadcast %130 : vector<32x1xf32> to vector<32x64xf32>
    %132 = arith.mulf %122, %131 : vector<32x64xf32>
    %133 = vector.broadcast %115 : vector<1x64xf32> to vector<32x64xf32>
    %134 = arith.mulf %132, %133 : vector<32x64xf32>
    %135 = vector.broadcast %116 : vector<1x64xf32> to vector<32x64xf32>
    %136 = arith.addf %134, %135 : vector<32x64xf32>
    %c0_57 = arith.constant 0 : index
    %c0_58 = arith.constant 0 : index
    %c0_59 = arith.constant 0 : index
    %137 = vector.load %arg13[%c0_57, %c0_58, %c0_59] : memref<4x64x128xbf16, #tpu.memory_space<vmem>>, vector<1x64x128xbf16>
    %138 = vector.shape_cast %137 : vector<1x64x128xbf16> to vector<64x128xbf16>
    %139 = arith.truncf %136 : vector<32x64xf32> to vector<32x64xbf16>
    %cst_60 = arith.constant dense<0.000000e+00> : vector<32x128xf32>
    %140 = tpu.matmul %139, %138, %cst_60 {dimension_numbers = #tpu.dot_dimension_numbers<[1], [0], [0], [1], [0, 0, 1, 1], [], []>} : vector<32x64xbf16>, vector<64x128xbf16>, vector<32x128xf32> -> vector<32x128xf32>
    %c0_61 = arith.constant 0 : index
    %c0_62 = arith.constant 0 : index
    %c0_63 = arith.constant 0 : index
    %141 = vector.load %arg14[%c0_61, %c0_62, %c0_63] : memref<4x1x128xf32, #tpu.memory_space<vmem>>, vector<1x1x128xf32>
    %142 = vector.shape_cast %141 : vector<1x1x128xf32> to vector<1x128xf32>
    %143 = vector.broadcast %142 : vector<1x128xf32> to vector<32x128xf32>
    %144 = arith.addf %140, %143 : vector<32x128xf32>
    %145 = arith.mulf %144, %144 : vector<32x128xf32>
    %146 = arith.mulf %144, %145 : vector<32x128xf32>
    %cst_64 = arith.constant 4.471500e-02 : f32
    %147 = vector.broadcast %cst_64 : f32 to vector<32x128xf32>
    %148 = arith.mulf %147, %146 : vector<32x128xf32>
    %149 = arith.addf %144, %148 : vector<32x128xf32>
    %cst_65 = arith.constant 0.797884583 : f32
    %150 = vector.broadcast %cst_65 : f32 to vector<32x128xf32>
    %151 = arith.mulf %150, %149 : vector<32x128xf32>
    %152 = math.tanh %151 : vector<32x128xf32>
    %cst_66 = arith.constant 1.000000e+00 : f32
    %153 = vector.broadcast %cst_66 : f32 to vector<32x128xf32>
    %154 = arith.addf %153, %152 : vector<32x128xf32>
    %cst_67 = arith.constant 5.000000e-01 : f32
    %155 = vector.broadcast %cst_67 : f32 to vector<32x128xf32>
    %156 = arith.mulf %155, %154 : vector<32x128xf32>
    %157 = arith.mulf %144, %156 : vector<32x128xf32>
    %c0_68 = arith.constant 0 : index
    %c0_69 = arith.constant 0 : index
    %c0_70 = arith.constant 0 : index
    %158 = vector.load %arg15[%c0_68, %c0_69, %c0_70] : memref<4x128x64xbf16, #tpu.memory_space<vmem>>, vector<1x128x64xbf16>
    %159 = vector.shape_cast %158 : vector<1x128x64xbf16> to vector<128x64xbf16>
    %160 = arith.truncf %157 : vector<32x128xf32> to vector<32x128xbf16>
    %cst_71 = arith.constant dense<0.000000e+00> : vector<32x64xf32>
    %161 = tpu.matmul %160, %159, %cst_71 {dimension_numbers = #tpu.dot_dimension_numbers<[1], [0], [0], [1], [0, 0, 1, 1], [], []>} : vector<32x128xbf16>, vector<128x64xbf16>, vector<32x64xf32> -> vector<32x64xf32>
    %162 = arith.addf %114, %161 : vector<32x64xf32>
    %c0_72 = arith.constant 0 : index
    %c0_73 = arith.constant 0 : index
    %c0_74 = arith.constant 0 : index
    %163 = vector.load %arg16[%c0_72, %c0_73, %c0_74] : memref<4x1x64xf32, #tpu.memory_space<vmem>>, vector<1x1x64xf32>
    %164 = vector.shape_cast %163 : vector<1x1x64xf32> to vector<1x64xf32>
    %165 = vector.broadcast %164 : vector<1x64xf32> to vector<32x64xf32>
    %166 = arith.addf %162, %165 : vector<32x64xf32>
    %c1 = arith.constant 1 : index
    %c0_75 = arith.constant 0 : index
    %c0_76 = arith.constant 0 : index
    %167 = vector.load %arg5[%c1, %c0_75, %c0_76] : memref<4x2x64xf32, #tpu.memory_space<vmem>>, vector<1x2x64xf32>
    %168 = vector.shape_cast %167 : vector<1x2x64xf32> to vector<2x64xf32>
    %c1_77 = arith.constant 1 : index
    %c0_78 = arith.constant 0 : index
    %c0_79 = arith.constant 0 : index
    %169 = vector.load %arg6[%c1_77, %c0_78, %c0_79] : memref<4x2x64xf32, #tpu.memory_space<vmem>>, vector<1x2x64xf32>
    %170 = vector.shape_cast %169 : vector<1x2x64xf32> to vector<2x64xf32>
    %c1_80 = arith.constant 1 : index
    %c0_81 = arith.constant 0 : index
    %c0_82 = arith.constant 0 : index
    %171 = vector.load %arg10[%c1_80, %c0_81, %c0_82] : memref<4x3x64xf32, #tpu.memory_space<vmem>>, vector<1x3x64xf32>
    %172 = vector.shape_cast %171 : vector<1x3x64xf32> to vector<3x64xf32>
    %173 = vector.extract_strided_slice %168 {offsets = [0, 0], sizes = [1, 64], strides = [1, 1]} : vector<2x64xf32> to vector<1x64xf32>
    %174 = vector.extract_strided_slice %170 {offsets = [0, 0], sizes = [1, 64], strides = [1, 1]} : vector<2x64xf32> to vector<1x64xf32>
    %cst_83 = arith.constant dense<0.000000e+00> : vector<32xf32>
    %175 = vector.multi_reduction <add>, %166, %cst_83 [1] : vector<32x64xf32> to vector<32xf32>
    %176 = vector.shape_cast %175 : vector<32xf32> to vector<32x1xf32>
    %cst_84 = arith.constant 6.400000e+01 : f32
    %177 = vector.broadcast %cst_84 : f32 to vector<32x1xf32>
    %178 = arith.divf %176, %177 : vector<32x1xf32>
    %179 = vector.broadcast %178 : vector<32x1xf32> to vector<32x64xf32>
    %180 = arith.subf %166, %179 : vector<32x64xf32>
    %181 = arith.mulf %180, %180 : vector<32x64xf32>
    %cst_85 = arith.constant dense<0.000000e+00> : vector<32xf32>
    %182 = vector.multi_reduction <add>, %181, %cst_85 [1] : vector<32x64xf32> to vector<32xf32>
    %183 = vector.shape_cast %182 : vector<32xf32> to vector<32x1xf32>
    %cst_86 = arith.constant 6.400000e+01 : f32
    %184 = vector.broadcast %cst_86 : f32 to vector<32x1xf32>
    %185 = arith.divf %183, %184 : vector<32x1xf32>
    %cst_87 = arith.constant 9.99999974E-6 : f32
    %186 = vector.broadcast %cst_87 : f32 to vector<32x1xf32>
    %187 = arith.addf %185, %186 : vector<32x1xf32>
    %188 = math.rsqrt %187 : vector<32x1xf32>
    %189 = vector.broadcast %188 : vector<32x1xf32> to vector<32x64xf32>
    %190 = arith.mulf %180, %189 : vector<32x64xf32>
    %191 = vector.broadcast %173 : vector<1x64xf32> to vector<32x64xf32>
    %192 = arith.mulf %190, %191 : vector<32x64xf32>
    %193 = vector.broadcast %174 : vector<1x64xf32> to vector<32x64xf32>
    %194 = arith.addf %192, %193 : vector<32x64xf32>
    %c1_88 = arith.constant 1 : index
    %c0_89 = arith.constant 0 : index
    %c0_90 = arith.constant 0 : index
    %195 = vector.load %arg7[%c1_88, %c0_89, %c0_90] : memref<4x64x64xbf16, #tpu.memory_space<vmem>>, vector<1x64x64xbf16>
    %196 = vector.shape_cast %195 : vector<1x64x64xbf16> to vector<64x64xbf16>
    %197 = arith.truncf %194 : vector<32x64xf32> to vector<32x64xbf16>
    %cst_91 = arith.constant dense<0.000000e+00> : vector<32x64xf32>
    %198 = tpu.matmul %197, %196, %cst_91 {dimension_numbers = #tpu.dot_dimension_numbers<[1], [0], [0], [1], [0, 0, 1, 1], [], []>} : vector<32x64xbf16>, vector<64x64xbf16>, vector<32x64xf32> -> vector<32x64xf32>
    %199 = vector.extract_strided_slice %172 {offsets = [0, 0], sizes = [1, 64], strides = [1, 1]} : vector<3x64xf32> to vector<1x64xf32>
    %200 = vector.broadcast %199 : vector<1x64xf32> to vector<32x64xf32>
    %201 = arith.addf %198, %200 : vector<32x64xf32>
    %c1_92 = arith.constant 1 : index
    %c0_93 = arith.constant 0 : index
    %c0_94 = arith.constant 0 : index
    %202 = vector.load %arg8[%c1_92, %c0_93, %c0_94] : memref<4x64x64xbf16, #tpu.memory_space<vmem>>, vector<1x64x64xbf16>
    %203 = vector.shape_cast %202 : vector<1x64x64xbf16> to vector<64x64xbf16>
    %204 = arith.truncf %194 : vector<32x64xf32> to vector<32x64xbf16>
    %cst_95 = arith.constant dense<0.000000e+00> : vector<32x64xf32>
    %205 = tpu.matmul %204, %203, %cst_95 {dimension_numbers = #tpu.dot_dimension_numbers<[1], [0], [0], [1], [0, 0, 1, 1], [], []>} : vector<32x64xbf16>, vector<64x64xbf16>, vector<32x64xf32> -> vector<32x64xf32>
    %206 = vector.extract_strided_slice %172 {offsets = [1, 0], sizes = [1, 64], strides = [1, 1]} : vector<3x64xf32> to vector<1x64xf32>
    %207 = vector.broadcast %206 : vector<1x64xf32> to vector<32x64xf32>
    %208 = arith.addf %205, %207 : vector<32x64xf32>
    %c1_96 = arith.constant 1 : index
    %c0_97 = arith.constant 0 : index
    %c0_98 = arith.constant 0 : index
    %209 = vector.load %arg9[%c1_96, %c0_97, %c0_98] : memref<4x64x64xbf16, #tpu.memory_space<vmem>>, vector<1x64x64xbf16>
    %210 = vector.shape_cast %209 : vector<1x64x64xbf16> to vector<64x64xbf16>
    %211 = arith.truncf %194 : vector<32x64xf32> to vector<32x64xbf16>
    %cst_99 = arith.constant dense<0.000000e+00> : vector<32x64xf32>
    %212 = tpu.matmul %211, %210, %cst_99 {dimension_numbers = #tpu.dot_dimension_numbers<[1], [0], [0], [1], [0, 0, 1, 1], [], []>} : vector<32x64xbf16>, vector<64x64xbf16>, vector<32x64xf32> -> vector<32x64xf32>
    %213 = vector.extract_strided_slice %172 {offsets = [2, 0], sizes = [1, 64], strides = [1, 1]} : vector<3x64xf32> to vector<1x64xf32>
    %214 = vector.broadcast %213 : vector<1x64xf32> to vector<32x64xf32>
    %215 = arith.addf %212, %214 : vector<32x64xf32>
    %216 = tpu.concatenate %201, %201, %201, %201 in 0 : vector<32x64xf32>, vector<32x64xf32>, vector<32x64xf32>, vector<32x64xf32> -> vector<128x64xf32>
    %217 = arith.mulf %216, %8 : vector<128x64xf32>
    %218 = arith.truncf %217 : vector<128x64xf32> to vector<128x64xbf16>
    %219 = arith.truncf %208 : vector<32x64xf32> to vector<32x64xbf16>
    "tpu.trace_start"() <{level = 10 : i32, message = "td,kd->tk"}> : () -> ()
    %cst_100 = arith.constant dense<0.000000e+00> : vector<128x32xf32>
    %220 = tpu.matmul %218, %219, %cst_100 {dimension_numbers = #tpu.dot_dimension_numbers<[1], [1], [0], [0], [0, 0, 1, 0], [], []>} : vector<128x64xbf16>, vector<32x64xbf16>, vector<128x32xf32> -> vector<128x32xf32>
    "tpu.trace_stop"() : () -> ()
    %cst_101 = arith.constant 2.500000e-01 : f32
    %221 = vector.broadcast %cst_101 : f32 to vector<128x32xf32>
    %222 = arith.mulf %220, %221 : vector<128x32xf32>
    %223 = arith.addf %222, %20 : vector<128x32xf32>
    %cst_102 = arith.constant dense<0xFF800000> : vector<128xf32>
    %224 = vector.multi_reduction <maximumf>, %223, %cst_102 [1] : vector<128x32xf32> to vector<128xf32>
    %225 = vector.shape_cast %224 : vector<128xf32> to vector<128x1xf32>
    %226 = vector.broadcast %225 : vector<128x1xf32> to vector<128x32xf32>
    %227 = arith.subf %223, %226 : vector<128x32xf32>
    %228 = math.exp %227 : vector<128x32xf32>
    %cst_103 = arith.constant dense<0.000000e+00> : vector<128xf32>
    %229 = vector.multi_reduction <add>, %228, %cst_103 [1] : vector<128x32xf32> to vector<128xf32>
    %230 = vector.shape_cast %229 : vector<128xf32> to vector<128x1xf32>
    %231 = tpu.reciprocal %230 {approx = true} : vector<128x1xf32> -> vector<128x1xf32>
    %232 = vector.broadcast %231 : vector<128x1xf32> to vector<128x32xf32>
    %233 = arith.mulf %228, %232 : vector<128x32xf32>
    %234 = arith.truncf %233 : vector<128x32xf32> to vector<128x32xbf16>
    %235 = arith.truncf %215 : vector<32x64xf32> to vector<32x64xbf16>
    "tpu.trace_start"() <{level = 10 : i32, message = "tk,kd->td"}> : () -> ()
    %cst_104 = arith.constant dense<0.000000e+00> : vector<128x64xf32>
    %236 = tpu.matmul %234, %235, %cst_104 {dimension_numbers = #tpu.dot_dimension_numbers<[1], [0], [0], [1], [0, 0, 1, 1], [], []>} : vector<128x32xbf16>, vector<32x64xbf16>, vector<128x64xf32> -> vector<128x64xf32>
    "tpu.trace_stop"() : () -> ()
    %237 = arith.mulf %236, %8 : vector<128x64xf32>
    %238 = vector.shape_cast %237 : vector<128x64xf32> to vector<4x32x64xf32>
    %cst_105 = arith.constant dense<0.000000e+00> : vector<32x64xf32>
    %239 = vector.multi_reduction <add>, %238, %cst_105 [0] : vector<4x32x64xf32> to vector<32x64xf32>
    %c1_106 = arith.constant 1 : index
    %c0_107 = arith.constant 0 : index
    %c0_108 = arith.constant 0 : index
    %240 = vector.load %arg11[%c1_106, %c0_107, %c0_108] : memref<4x64x64xbf16, #tpu.memory_space<vmem>>, vector<1x64x64xbf16>
    %241 = vector.shape_cast %240 : vector<1x64x64xbf16> to vector<64x64xbf16>
    %242 = arith.truncf %239 : vector<32x64xf32> to vector<32x64xbf16>
    %cst_109 = arith.constant dense<0.000000e+00> : vector<32x64xf32>
    %243 = tpu.matmul %242, %241, %cst_109 {dimension_numbers = #tpu.dot_dimension_numbers<[1], [0], [0], [1], [0, 0, 1, 1], [], []>} : vector<32x64xbf16>, vector<64x64xbf16>, vector<32x64xf32> -> vector<32x64xf32>
    %244 = arith.addf %166, %243 : vector<32x64xf32>
    %c1_110 = arith.constant 1 : index
    %c0_111 = arith.constant 0 : index
    %c0_112 = arith.constant 0 : index
    %245 = vector.load %arg12[%c1_110, %c0_111, %c0_112] : memref<4x1x64xf32, #tpu.memory_space<vmem>>, vector<1x1x64xf32>
    %246 = vector.shape_cast %245 : vector<1x1x64xf32> to vector<1x64xf32>
    %247 = vector.broadcast %246 : vector<1x64xf32> to vector<32x64xf32>
    %248 = arith.addf %244, %247 : vector<32x64xf32>
    %249 = vector.extract_strided_slice %168 {offsets = [1, 0], sizes = [1, 64], strides = [1, 1]} : vector<2x64xf32> to vector<1x64xf32>
    %250 = vector.extract_strided_slice %170 {offsets = [1, 0], sizes = [1, 64], strides = [1, 1]} : vector<2x64xf32> to vector<1x64xf32>
    %cst_113 = arith.constant dense<0.000000e+00> : vector<32xf32>
    %251 = vector.multi_reduction <add>, %248, %cst_113 [1] : vector<32x64xf32> to vector<32xf32>
    %252 = vector.shape_cast %251 : vector<32xf32> to vector<32x1xf32>
    %cst_114 = arith.constant 6.400000e+01 : f32
    %253 = vector.broadcast %cst_114 : f32 to vector<32x1xf32>
    %254 = arith.divf %252, %253 : vector<32x1xf32>
    %255 = vector.broadcast %254 : vector<32x1xf32> to vector<32x64xf32>
    %256 = arith.subf %248, %255 : vector<32x64xf32>
    %257 = arith.mulf %256, %256 : vector<32x64xf32>
    %cst_115 = arith.constant dense<0.000000e+00> : vector<32xf32>
    %258 = vector.multi_reduction <add>, %257, %cst_115 [1] : vector<32x64xf32> to vector<32xf32>
    %259 = vector.shape_cast %258 : vector<32xf32> to vector<32x1xf32>
    %cst_116 = arith.constant 6.400000e+01 : f32
    %260 = vector.broadcast %cst_116 : f32 to vector<32x1xf32>
    %261 = arith.divf %259, %260 : vector<32x1xf32>
    %cst_117 = arith.constant 9.99999974E-6 : f32
    %262 = vector.broadcast %cst_117 : f32 to vector<32x1xf32>
    %263 = arith.addf %261, %262 : vector<32x1xf32>
    %264 = math.rsqrt %263 : vector<32x1xf32>
    %265 = vector.broadcast %264 : vector<32x1xf32> to vector<32x64xf32>
    %266 = arith.mulf %256, %265 : vector<32x64xf32>
    %267 = vector.broadcast %249 : vector<1x64xf32> to vector<32x64xf32>
    %268 = arith.mulf %266, %267 : vector<32x64xf32>
    %269 = vector.broadcast %250 : vector<1x64xf32> to vector<32x64xf32>
    %270 = arith.addf %268, %269 : vector<32x64xf32>
    %c1_118 = arith.constant 1 : index
    %c0_119 = arith.constant 0 : index
    %c0_120 = arith.constant 0 : index
    %271 = vector.load %arg13[%c1_118, %c0_119, %c0_120] : memref<4x64x128xbf16, #tpu.memory_space<vmem>>, vector<1x64x128xbf16>
    %272 = vector.shape_cast %271 : vector<1x64x128xbf16> to vector<64x128xbf16>
    %273 = arith.truncf %270 : vector<32x64xf32> to vector<32x64xbf16>
    %cst_121 = arith.constant dense<0.000000e+00> : vector<32x128xf32>
    %274 = tpu.matmul %273, %272, %cst_121 {dimension_numbers = #tpu.dot_dimension_numbers<[1], [0], [0], [1], [0, 0, 1, 1], [], []>} : vector<32x64xbf16>, vector<64x128xbf16>, vector<32x128xf32> -> vector<32x128xf32>
    %c1_122 = arith.constant 1 : index
    %c0_123 = arith.constant 0 : index
    %c0_124 = arith.constant 0 : index
    %275 = vector.load %arg14[%c1_122, %c0_123, %c0_124] : memref<4x1x128xf32, #tpu.memory_space<vmem>>, vector<1x1x128xf32>
    %276 = vector.shape_cast %275 : vector<1x1x128xf32> to vector<1x128xf32>
    %277 = vector.broadcast %276 : vector<1x128xf32> to vector<32x128xf32>
    %278 = arith.addf %274, %277 : vector<32x128xf32>
    %279 = arith.mulf %278, %278 : vector<32x128xf32>
    %280 = arith.mulf %278, %279 : vector<32x128xf32>
    %cst_125 = arith.constant 4.471500e-02 : f32
    %281 = vector.broadcast %cst_125 : f32 to vector<32x128xf32>
    %282 = arith.mulf %281, %280 : vector<32x128xf32>
    %283 = arith.addf %278, %282 : vector<32x128xf32>
    %cst_126 = arith.constant 0.797884583 : f32
    %284 = vector.broadcast %cst_126 : f32 to vector<32x128xf32>
    %285 = arith.mulf %284, %283 : vector<32x128xf32>
    %286 = math.tanh %285 : vector<32x128xf32>
    %cst_127 = arith.constant 1.000000e+00 : f32
    %287 = vector.broadcast %cst_127 : f32 to vector<32x128xf32>
    %288 = arith.addf %287, %286 : vector<32x128xf32>
    %cst_128 = arith.constant 5.000000e-01 : f32
    %289 = vector.broadcast %cst_128 : f32 to vector<32x128xf32>
    %290 = arith.mulf %289, %288 : vector<32x128xf32>
    %291 = arith.mulf %278, %290 : vector<32x128xf32>
    %c1_129 = arith.constant 1 : index
    %c0_130 = arith.constant 0 : index
    %c0_131 = arith.constant 0 : index
    %292 = vector.load %arg15[%c1_129, %c0_130, %c0_131] : memref<4x128x64xbf16, #tpu.memory_space<vmem>>, vector<1x128x64xbf16>
    %293 = vector.shape_cast %292 : vector<1x128x64xbf16> to vector<128x64xbf16>
    %294 = arith.truncf %291 : vector<32x128xf32> to vector<32x128xbf16>
    %cst_132 = arith.constant dense<0.000000e+00> : vector<32x64xf32>
    %295 = tpu.matmul %294, %293, %cst_132 {dimension_numbers = #tpu.dot_dimension_numbers<[1], [0], [0], [1], [0, 0, 1, 1], [], []>} : vector<32x128xbf16>, vector<128x64xbf16>, vector<32x64xf32> -> vector<32x64xf32>
    %296 = arith.addf %248, %295 : vector<32x64xf32>
    %c1_133 = arith.constant 1 : index
    %c0_134 = arith.constant 0 : index
    %c0_135 = arith.constant 0 : index
    %297 = vector.load %arg16[%c1_133, %c0_134, %c0_135] : memref<4x1x64xf32, #tpu.memory_space<vmem>>, vector<1x1x64xf32>
    %298 = vector.shape_cast %297 : vector<1x1x64xf32> to vector<1x64xf32>
    %299 = vector.broadcast %298 : vector<1x64xf32> to vector<32x64xf32>
    %300 = arith.addf %296, %299 : vector<32x64xf32>
    %301 = arith.addf %300, %24 : vector<32x64xf32>
    %c2 = arith.constant 2 : index
    %c0_136 = arith.constant 0 : index
    %c0_137 = arith.constant 0 : index
    %302 = vector.load %arg5[%c2, %c0_136, %c0_137] : memref<4x2x64xf32, #tpu.memory_space<vmem>>, vector<1x2x64xf32>
    %303 = vector.shape_cast %302 : vector<1x2x64xf32> to vector<2x64xf32>
    %c2_138 = arith.constant 2 : index
    %c0_139 = arith.constant 0 : index
    %c0_140 = arith.constant 0 : index
    %304 = vector.load %arg6[%c2_138, %c0_139, %c0_140] : memref<4x2x64xf32, #tpu.memory_space<vmem>>, vector<1x2x64xf32>
    %305 = vector.shape_cast %304 : vector<1x2x64xf32> to vector<2x64xf32>
    %c2_141 = arith.constant 2 : index
    %c0_142 = arith.constant 0 : index
    %c0_143 = arith.constant 0 : index
    %306 = vector.load %arg10[%c2_141, %c0_142, %c0_143] : memref<4x3x64xf32, #tpu.memory_space<vmem>>, vector<1x3x64xf32>
    %307 = vector.shape_cast %306 : vector<1x3x64xf32> to vector<3x64xf32>
    %308 = vector.extract_strided_slice %303 {offsets = [0, 0], sizes = [1, 64], strides = [1, 1]} : vector<2x64xf32> to vector<1x64xf32>
    %309 = vector.extract_strided_slice %305 {offsets = [0, 0], sizes = [1, 64], strides = [1, 1]} : vector<2x64xf32> to vector<1x64xf32>
    %cst_144 = arith.constant dense<0.000000e+00> : vector<32xf32>
    %310 = vector.multi_reduction <add>, %301, %cst_144 [1] : vector<32x64xf32> to vector<32xf32>
    %311 = vector.shape_cast %310 : vector<32xf32> to vector<32x1xf32>
    %cst_145 = arith.constant 6.400000e+01 : f32
    %312 = vector.broadcast %cst_145 : f32 to vector<32x1xf32>
    %313 = arith.divf %311, %312 : vector<32x1xf32>
    %314 = vector.broadcast %313 : vector<32x1xf32> to vector<32x64xf32>
    %315 = arith.subf %301, %314 : vector<32x64xf32>
    %316 = arith.mulf %315, %315 : vector<32x64xf32>
    %cst_146 = arith.constant dense<0.000000e+00> : vector<32xf32>
    %317 = vector.multi_reduction <add>, %316, %cst_146 [1] : vector<32x64xf32> to vector<32xf32>
    %318 = vector.shape_cast %317 : vector<32xf32> to vector<32x1xf32>
    %cst_147 = arith.constant 6.400000e+01 : f32
    %319 = vector.broadcast %cst_147 : f32 to vector<32x1xf32>
    %320 = arith.divf %318, %319 : vector<32x1xf32>
    %cst_148 = arith.constant 9.99999974E-6 : f32
    %321 = vector.broadcast %cst_148 : f32 to vector<32x1xf32>
    %322 = arith.addf %320, %321 : vector<32x1xf32>
    %323 = math.rsqrt %322 : vector<32x1xf32>
    %324 = vector.broadcast %323 : vector<32x1xf32> to vector<32x64xf32>
    %325 = arith.mulf %315, %324 : vector<32x64xf32>
    %326 = vector.broadcast %308 : vector<1x64xf32> to vector<32x64xf32>
    %327 = arith.mulf %325, %326 : vector<32x64xf32>
    %328 = vector.broadcast %309 : vector<1x64xf32> to vector<32x64xf32>
    %329 = arith.addf %327, %328 : vector<32x64xf32>
    %c2_149 = arith.constant 2 : index
    %c0_150 = arith.constant 0 : index
    %c0_151 = arith.constant 0 : index
    %330 = vector.load %arg7[%c2_149, %c0_150, %c0_151] : memref<4x64x64xbf16, #tpu.memory_space<vmem>>, vector<1x64x64xbf16>
    %331 = vector.shape_cast %330 : vector<1x64x64xbf16> to vector<64x64xbf16>
    %332 = arith.truncf %329 : vector<32x64xf32> to vector<32x64xbf16>
    %cst_152 = arith.constant dense<0.000000e+00> : vector<32x64xf32>
    %333 = tpu.matmul %332, %331, %cst_152 {dimension_numbers = #tpu.dot_dimension_numbers<[1], [0], [0], [1], [0, 0, 1, 1], [], []>} : vector<32x64xbf16>, vector<64x64xbf16>, vector<32x64xf32> -> vector<32x64xf32>
    %334 = vector.extract_strided_slice %307 {offsets = [0, 0], sizes = [1, 64], strides = [1, 1]} : vector<3x64xf32> to vector<1x64xf32>
    %335 = vector.broadcast %334 : vector<1x64xf32> to vector<32x64xf32>
    %336 = arith.addf %333, %335 : vector<32x64xf32>
    %c2_153 = arith.constant 2 : index
    %c0_154 = arith.constant 0 : index
    %c0_155 = arith.constant 0 : index
    %337 = vector.load %arg8[%c2_153, %c0_154, %c0_155] : memref<4x64x64xbf16, #tpu.memory_space<vmem>>, vector<1x64x64xbf16>
    %338 = vector.shape_cast %337 : vector<1x64x64xbf16> to vector<64x64xbf16>
    %339 = arith.truncf %329 : vector<32x64xf32> to vector<32x64xbf16>
    %cst_156 = arith.constant dense<0.000000e+00> : vector<32x64xf32>
    %340 = tpu.matmul %339, %338, %cst_156 {dimension_numbers = #tpu.dot_dimension_numbers<[1], [0], [0], [1], [0, 0, 1, 1], [], []>} : vector<32x64xbf16>, vector<64x64xbf16>, vector<32x64xf32> -> vector<32x64xf32>
    %341 = vector.extract_strided_slice %307 {offsets = [1, 0], sizes = [1, 64], strides = [1, 1]} : vector<3x64xf32> to vector<1x64xf32>
    %342 = vector.broadcast %341 : vector<1x64xf32> to vector<32x64xf32>
    %343 = arith.addf %340, %342 : vector<32x64xf32>
    %c2_157 = arith.constant 2 : index
    %c0_158 = arith.constant 0 : index
    %c0_159 = arith.constant 0 : index
    %344 = vector.load %arg9[%c2_157, %c0_158, %c0_159] : memref<4x64x64xbf16, #tpu.memory_space<vmem>>, vector<1x64x64xbf16>
    %345 = vector.shape_cast %344 : vector<1x64x64xbf16> to vector<64x64xbf16>
    %346 = arith.truncf %329 : vector<32x64xf32> to vector<32x64xbf16>
    %cst_160 = arith.constant dense<0.000000e+00> : vector<32x64xf32>
    %347 = tpu.matmul %346, %345, %cst_160 {dimension_numbers = #tpu.dot_dimension_numbers<[1], [0], [0], [1], [0, 0, 1, 1], [], []>} : vector<32x64xbf16>, vector<64x64xbf16>, vector<32x64xf32> -> vector<32x64xf32>
    %348 = vector.extract_strided_slice %307 {offsets = [2, 0], sizes = [1, 64], strides = [1, 1]} : vector<3x64xf32> to vector<1x64xf32>
    %349 = vector.broadcast %348 : vector<1x64xf32> to vector<32x64xf32>
    %350 = arith.addf %347, %349 : vector<32x64xf32>
    %351 = tpu.concatenate %336, %336, %336, %336 in 0 : vector<32x64xf32>, vector<32x64xf32>, vector<32x64xf32>, vector<32x64xf32> -> vector<128x64xf32>
    %352 = arith.mulf %351, %8 : vector<128x64xf32>
    %353 = arith.truncf %352 : vector<128x64xf32> to vector<128x64xbf16>
    %354 = arith.truncf %343 : vector<32x64xf32> to vector<32x64xbf16>
    "tpu.trace_start"() <{level = 10 : i32, message = "td,kd->tk"}> : () -> ()
    %cst_161 = arith.constant dense<0.000000e+00> : vector<128x32xf32>
    %355 = tpu.matmul %353, %354, %cst_161 {dimension_numbers = #tpu.dot_dimension_numbers<[1], [1], [0], [0], [0, 0, 1, 0], [], []>} : vector<128x64xbf16>, vector<32x64xbf16>, vector<128x32xf32> -> vector<128x32xf32>
    "tpu.trace_stop"() : () -> ()
    %cst_162 = arith.constant 2.500000e-01 : f32
    %356 = vector.broadcast %cst_162 : f32 to vector<128x32xf32>
    %357 = arith.mulf %355, %356 : vector<128x32xf32>
    %358 = arith.addf %357, %20 : vector<128x32xf32>
    %cst_163 = arith.constant dense<0xFF800000> : vector<128xf32>
    %359 = vector.multi_reduction <maximumf>, %358, %cst_163 [1] : vector<128x32xf32> to vector<128xf32>
    %360 = vector.shape_cast %359 : vector<128xf32> to vector<128x1xf32>
    %361 = vector.broadcast %360 : vector<128x1xf32> to vector<128x32xf32>
    %362 = arith.subf %358, %361 : vector<128x32xf32>
    %363 = math.exp %362 : vector<128x32xf32>
    %cst_164 = arith.constant dense<0.000000e+00> : vector<128xf32>
    %364 = vector.multi_reduction <add>, %363, %cst_164 [1] : vector<128x32xf32> to vector<128xf32>
    %365 = vector.shape_cast %364 : vector<128xf32> to vector<128x1xf32>
    %366 = tpu.reciprocal %365 {approx = true} : vector<128x1xf32> -> vector<128x1xf32>
    %367 = vector.broadcast %366 : vector<128x1xf32> to vector<128x32xf32>
    %368 = arith.mulf %363, %367 : vector<128x32xf32>
    %369 = arith.truncf %368 : vector<128x32xf32> to vector<128x32xbf16>
    %370 = arith.truncf %350 : vector<32x64xf32> to vector<32x64xbf16>
    "tpu.trace_start"() <{level = 10 : i32, message = "tk,kd->td"}> : () -> ()
    %cst_165 = arith.constant dense<0.000000e+00> : vector<128x64xf32>
    %371 = tpu.matmul %369, %370, %cst_165 {dimension_numbers = #tpu.dot_dimension_numbers<[1], [0], [0], [1], [0, 0, 1, 1], [], []>} : vector<128x32xbf16>, vector<32x64xbf16>, vector<128x64xf32> -> vector<128x64xf32>
    "tpu.trace_stop"() : () -> ()
    %372 = arith.mulf %371, %8 : vector<128x64xf32>
    %373 = vector.shape_cast %372 : vector<128x64xf32> to vector<4x32x64xf32>
    %cst_166 = arith.constant dense<0.000000e+00> : vector<32x64xf32>
    %374 = vector.multi_reduction <add>, %373, %cst_166 [0] : vector<4x32x64xf32> to vector<32x64xf32>
    %c2_167 = arith.constant 2 : index
    %c0_168 = arith.constant 0 : index
    %c0_169 = arith.constant 0 : index
    %375 = vector.load %arg11[%c2_167, %c0_168, %c0_169] : memref<4x64x64xbf16, #tpu.memory_space<vmem>>, vector<1x64x64xbf16>
    %376 = vector.shape_cast %375 : vector<1x64x64xbf16> to vector<64x64xbf16>
    %377 = arith.truncf %374 : vector<32x64xf32> to vector<32x64xbf16>
    %cst_170 = arith.constant dense<0.000000e+00> : vector<32x64xf32>
    %378 = tpu.matmul %377, %376, %cst_170 {dimension_numbers = #tpu.dot_dimension_numbers<[1], [0], [0], [1], [0, 0, 1, 1], [], []>} : vector<32x64xbf16>, vector<64x64xbf16>, vector<32x64xf32> -> vector<32x64xf32>
    %379 = arith.addf %301, %378 : vector<32x64xf32>
    %c2_171 = arith.constant 2 : index
    %c0_172 = arith.constant 0 : index
    %c0_173 = arith.constant 0 : index
    %380 = vector.load %arg12[%c2_171, %c0_172, %c0_173] : memref<4x1x64xf32, #tpu.memory_space<vmem>>, vector<1x1x64xf32>
    %381 = vector.shape_cast %380 : vector<1x1x64xf32> to vector<1x64xf32>
    %382 = vector.broadcast %381 : vector<1x64xf32> to vector<32x64xf32>
    %383 = arith.addf %379, %382 : vector<32x64xf32>
    %384 = vector.extract_strided_slice %303 {offsets = [1, 0], sizes = [1, 64], strides = [1, 1]} : vector<2x64xf32> to vector<1x64xf32>
    %385 = vector.extract_strided_slice %305 {offsets = [1, 0], sizes = [1, 64], strides = [1, 1]} : vector<2x64xf32> to vector<1x64xf32>
    %cst_174 = arith.constant dense<0.000000e+00> : vector<32xf32>
    %386 = vector.multi_reduction <add>, %383, %cst_174 [1] : vector<32x64xf32> to vector<32xf32>
    %387 = vector.shape_cast %386 : vector<32xf32> to vector<32x1xf32>
    %cst_175 = arith.constant 6.400000e+01 : f32
    %388 = vector.broadcast %cst_175 : f32 to vector<32x1xf32>
    %389 = arith.divf %387, %388 : vector<32x1xf32>
    %390 = vector.broadcast %389 : vector<32x1xf32> to vector<32x64xf32>
    %391 = arith.subf %383, %390 : vector<32x64xf32>
    %392 = arith.mulf %391, %391 : vector<32x64xf32>
    %cst_176 = arith.constant dense<0.000000e+00> : vector<32xf32>
    %393 = vector.multi_reduction <add>, %392, %cst_176 [1] : vector<32x64xf32> to vector<32xf32>
    %394 = vector.shape_cast %393 : vector<32xf32> to vector<32x1xf32>
    %cst_177 = arith.constant 6.400000e+01 : f32
    %395 = vector.broadcast %cst_177 : f32 to vector<32x1xf32>
    %396 = arith.divf %394, %395 : vector<32x1xf32>
    %cst_178 = arith.constant 9.99999974E-6 : f32
    %397 = vector.broadcast %cst_178 : f32 to vector<32x1xf32>
    %398 = arith.addf %396, %397 : vector<32x1xf32>
    %399 = math.rsqrt %398 : vector<32x1xf32>
    %400 = vector.broadcast %399 : vector<32x1xf32> to vector<32x64xf32>
    %401 = arith.mulf %391, %400 : vector<32x64xf32>
    %402 = vector.broadcast %384 : vector<1x64xf32> to vector<32x64xf32>
    %403 = arith.mulf %401, %402 : vector<32x64xf32>
    %404 = vector.broadcast %385 : vector<1x64xf32> to vector<32x64xf32>
    %405 = arith.addf %403, %404 : vector<32x64xf32>
    %c2_179 = arith.constant 2 : index
    %c0_180 = arith.constant 0 : index
    %c0_181 = arith.constant 0 : index
    %406 = vector.load %arg13[%c2_179, %c0_180, %c0_181] : memref<4x64x128xbf16, #tpu.memory_space<vmem>>, vector<1x64x128xbf16>
    %407 = vector.shape_cast %406 : vector<1x64x128xbf16> to vector<64x128xbf16>
    %408 = arith.truncf %405 : vector<32x64xf32> to vector<32x64xbf16>
    %cst_182 = arith.constant dense<0.000000e+00> : vector<32x128xf32>
    %409 = tpu.matmul %408, %407, %cst_182 {dimension_numbers = #tpu.dot_dimension_numbers<[1], [0], [0], [1], [0, 0, 1, 1], [], []>} : vector<32x64xbf16>, vector<64x128xbf16>, vector<32x128xf32> -> vector<32x128xf32>
    %c2_183 = arith.constant 2 : index
    %c0_184 = arith.constant 0 : index
    %c0_185 = arith.constant 0 : index
    %410 = vector.load %arg14[%c2_183, %c0_184, %c0_185] : memref<4x1x128xf32, #tpu.memory_space<vmem>>, vector<1x1x128xf32>
    %411 = vector.shape_cast %410 : vector<1x1x128xf32> to vector<1x128xf32>
    %412 = vector.broadcast %411 : vector<1x128xf32> to vector<32x128xf32>
    %413 = arith.addf %409, %412 : vector<32x128xf32>
    %414 = arith.mulf %413, %413 : vector<32x128xf32>
    %415 = arith.mulf %413, %414 : vector<32x128xf32>
    %cst_186 = arith.constant 4.471500e-02 : f32
    %416 = vector.broadcast %cst_186 : f32 to vector<32x128xf32>
    %417 = arith.mulf %416, %415 : vector<32x128xf32>
    %418 = arith.addf %413, %417 : vector<32x128xf32>
    %cst_187 = arith.constant 0.797884583 : f32
    %419 = vector.broadcast %cst_187 : f32 to vector<32x128xf32>
    %420 = arith.mulf %419, %418 : vector<32x128xf32>
    %421 = math.tanh %420 : vector<32x128xf32>
    %cst_188 = arith.constant 1.000000e+00 : f32
    %422 = vector.broadcast %cst_188 : f32 to vector<32x128xf32>
    %423 = arith.addf %422, %421 : vector<32x128xf32>
    %cst_189 = arith.constant 5.000000e-01 : f32
    %424 = vector.broadcast %cst_189 : f32 to vector<32x128xf32>
    %425 = arith.mulf %424, %423 : vector<32x128xf32>
    %426 = arith.mulf %413, %425 : vector<32x128xf32>
    %c2_190 = arith.constant 2 : index
    %c0_191 = arith.constant 0 : index
    %c0_192 = arith.constant 0 : index
    %427 = vector.load %arg15[%c2_190, %c0_191, %c0_192] : memref<4x128x64xbf16, #tpu.memory_space<vmem>>, vector<1x128x64xbf16>
    %428 = vector.shape_cast %427 : vector<1x128x64xbf16> to vector<128x64xbf16>
    %429 = arith.truncf %426 : vector<32x128xf32> to vector<32x128xbf16>
    %cst_193 = arith.constant dense<0.000000e+00> : vector<32x64xf32>
    %430 = tpu.matmul %429, %428, %cst_193 {dimension_numbers = #tpu.dot_dimension_numbers<[1], [0], [0], [1], [0, 0, 1, 1], [], []>} : vector<32x128xbf16>, vector<128x64xbf16>, vector<32x64xf32> -> vector<32x64xf32>
    %431 = arith.addf %383, %430 : vector<32x64xf32>
    %c2_194 = arith.constant 2 : index
    %c0_195 = arith.constant 0 : index
    %c0_196 = arith.constant 0 : index
    %432 = vector.load %arg16[%c2_194, %c0_195, %c0_196] : memref<4x1x64xf32, #tpu.memory_space<vmem>>, vector<1x1x64xf32>
    %433 = vector.shape_cast %432 : vector<1x1x64xf32> to vector<1x64xf32>
    %434 = vector.broadcast %433 : vector<1x64xf32> to vector<32x64xf32>
    %435 = arith.addf %431, %434 : vector<32x64xf32>
    %c3 = arith.constant 3 : index
    %c0_197 = arith.constant 0 : index
    %c0_198 = arith.constant 0 : index
    %436 = vector.load %arg5[%c3, %c0_197, %c0_198] : memref<4x2x64xf32, #tpu.memory_space<vmem>>, vector<1x2x64xf32>
    %437 = vector.shape_cast %436 : vector<1x2x64xf32> to vector<2x64xf32>
    %c3_199 = arith.constant 3 : index
    %c0_200 = arith.constant 0 : index
    %c0_201 = arith.constant 0 : index
    %438 = vector.load %arg6[%c3_199, %c0_200, %c0_201] : memref<4x2x64xf32, #tpu.memory_space<vmem>>, vector<1x2x64xf32>
    %439 = vector.shape_cast %438 : vector<1x2x64xf32> to vector<2x64xf32>
    %c3_202 = arith.constant 3 : index
    %c0_203 = arith.constant 0 : index
    %c0_204 = arith.constant 0 : index
    %440 = vector.load %arg10[%c3_202, %c0_203, %c0_204] : memref<4x3x64xf32, #tpu.memory_space<vmem>>, vector<1x3x64xf32>
    %441 = vector.shape_cast %440 : vector<1x3x64xf32> to vector<3x64xf32>
    %442 = vector.extract_strided_slice %437 {offsets = [0, 0], sizes = [1, 64], strides = [1, 1]} : vector<2x64xf32> to vector<1x64xf32>
    %443 = vector.extract_strided_slice %439 {offsets = [0, 0], sizes = [1, 64], strides = [1, 1]} : vector<2x64xf32> to vector<1x64xf32>
    %cst_205 = arith.constant dense<0.000000e+00> : vector<32xf32>
    %444 = vector.multi_reduction <add>, %435, %cst_205 [1] : vector<32x64xf32> to vector<32xf32>
    %445 = vector.shape_cast %444 : vector<32xf32> to vector<32x1xf32>
    %cst_206 = arith.constant 6.400000e+01 : f32
    %446 = vector.broadcast %cst_206 : f32 to vector<32x1xf32>
    %447 = arith.divf %445, %446 : vector<32x1xf32>
    %448 = vector.broadcast %447 : vector<32x1xf32> to vector<32x64xf32>
    %449 = arith.subf %435, %448 : vector<32x64xf32>
    %450 = arith.mulf %449, %449 : vector<32x64xf32>
    %cst_207 = arith.constant dense<0.000000e+00> : vector<32xf32>
    %451 = vector.multi_reduction <add>, %450, %cst_207 [1] : vector<32x64xf32> to vector<32xf32>
    %452 = vector.shape_cast %451 : vector<32xf32> to vector<32x1xf32>
    %cst_208 = arith.constant 6.400000e+01 : f32
    %453 = vector.broadcast %cst_208 : f32 to vector<32x1xf32>
    %454 = arith.divf %452, %453 : vector<32x1xf32>
    %cst_209 = arith.constant 9.99999974E-6 : f32
    %455 = vector.broadcast %cst_209 : f32 to vector<32x1xf32>
    %456 = arith.addf %454, %455 : vector<32x1xf32>
    %457 = math.rsqrt %456 : vector<32x1xf32>
    %458 = vector.broadcast %457 : vector<32x1xf32> to vector<32x64xf32>
    %459 = arith.mulf %449, %458 : vector<32x64xf32>
    %460 = vector.broadcast %442 : vector<1x64xf32> to vector<32x64xf32>
    %461 = arith.mulf %459, %460 : vector<32x64xf32>
    %462 = vector.broadcast %443 : vector<1x64xf32> to vector<32x64xf32>
    %463 = arith.addf %461, %462 : vector<32x64xf32>
    %c3_210 = arith.constant 3 : index
    %c0_211 = arith.constant 0 : index
    %c0_212 = arith.constant 0 : index
    %464 = vector.load %arg7[%c3_210, %c0_211, %c0_212] : memref<4x64x64xbf16, #tpu.memory_space<vmem>>, vector<1x64x64xbf16>
    %465 = vector.shape_cast %464 : vector<1x64x64xbf16> to vector<64x64xbf16>
    %466 = arith.truncf %463 : vector<32x64xf32> to vector<32x64xbf16>
    %cst_213 = arith.constant dense<0.000000e+00> : vector<32x64xf32>
    %467 = tpu.matmul %466, %465, %cst_213 {dimension_numbers = #tpu.dot_dimension_numbers<[1], [0], [0], [1], [0, 0, 1, 1], [], []>} : vector<32x64xbf16>, vector<64x64xbf16>, vector<32x64xf32> -> vector<32x64xf32>
    %468 = vector.extract_strided_slice %441 {offsets = [0, 0], sizes = [1, 64], strides = [1, 1]} : vector<3x64xf32> to vector<1x64xf32>
    %469 = vector.broadcast %468 : vector<1x64xf32> to vector<32x64xf32>
    %470 = arith.addf %467, %469 : vector<32x64xf32>
    %c3_214 = arith.constant 3 : index
    %c0_215 = arith.constant 0 : index
    %c0_216 = arith.constant 0 : index
    %471 = vector.load %arg8[%c3_214, %c0_215, %c0_216] : memref<4x64x64xbf16, #tpu.memory_space<vmem>>, vector<1x64x64xbf16>
    %472 = vector.shape_cast %471 : vector<1x64x64xbf16> to vector<64x64xbf16>
    %473 = arith.truncf %463 : vector<32x64xf32> to vector<32x64xbf16>
    %cst_217 = arith.constant dense<0.000000e+00> : vector<32x64xf32>
    %474 = tpu.matmul %473, %472, %cst_217 {dimension_numbers = #tpu.dot_dimension_numbers<[1], [0], [0], [1], [0, 0, 1, 1], [], []>} : vector<32x64xbf16>, vector<64x64xbf16>, vector<32x64xf32> -> vector<32x64xf32>
    %475 = vector.extract_strided_slice %441 {offsets = [1, 0], sizes = [1, 64], strides = [1, 1]} : vector<3x64xf32> to vector<1x64xf32>
    %476 = vector.broadcast %475 : vector<1x64xf32> to vector<32x64xf32>
    %477 = arith.addf %474, %476 : vector<32x64xf32>
    %c3_218 = arith.constant 3 : index
    %c0_219 = arith.constant 0 : index
    %c0_220 = arith.constant 0 : index
    %478 = vector.load %arg9[%c3_218, %c0_219, %c0_220] : memref<4x64x64xbf16, #tpu.memory_space<vmem>>, vector<1x64x64xbf16>
    %479 = vector.shape_cast %478 : vector<1x64x64xbf16> to vector<64x64xbf16>
    %480 = arith.truncf %463 : vector<32x64xf32> to vector<32x64xbf16>
    %cst_221 = arith.constant dense<0.000000e+00> : vector<32x64xf32>
    %481 = tpu.matmul %480, %479, %cst_221 {dimension_numbers = #tpu.dot_dimension_numbers<[1], [0], [0], [1], [0, 0, 1, 1], [], []>} : vector<32x64xbf16>, vector<64x64xbf16>, vector<32x64xf32> -> vector<32x64xf32>
    %482 = vector.extract_strided_slice %441 {offsets = [2, 0], sizes = [1, 64], strides = [1, 1]} : vector<3x64xf32> to vector<1x64xf32>
    %483 = vector.broadcast %482 : vector<1x64xf32> to vector<32x64xf32>
    %484 = arith.addf %481, %483 : vector<32x64xf32>
    %485 = tpu.concatenate %470, %470, %470, %470 in 0 : vector<32x64xf32>, vector<32x64xf32>, vector<32x64xf32>, vector<32x64xf32> -> vector<128x64xf32>
    %486 = arith.mulf %485, %8 : vector<128x64xf32>
    %487 = arith.truncf %486 : vector<128x64xf32> to vector<128x64xbf16>
    %488 = arith.truncf %477 : vector<32x64xf32> to vector<32x64xbf16>
    "tpu.trace_start"() <{level = 10 : i32, message = "td,kd->tk"}> : () -> ()
    %cst_222 = arith.constant dense<0.000000e+00> : vector<128x32xf32>
    %489 = tpu.matmul %487, %488, %cst_222 {dimension_numbers = #tpu.dot_dimension_numbers<[1], [1], [0], [0], [0, 0, 1, 0], [], []>} : vector<128x64xbf16>, vector<32x64xbf16>, vector<128x32xf32> -> vector<128x32xf32>
    "tpu.trace_stop"() : () -> ()
    %cst_223 = arith.constant 2.500000e-01 : f32
    %490 = vector.broadcast %cst_223 : f32 to vector<128x32xf32>
    %491 = arith.mulf %489, %490 : vector<128x32xf32>
    %492 = arith.addf %491, %20 : vector<128x32xf32>
    %cst_224 = arith.constant dense<0xFF800000> : vector<128xf32>
    %493 = vector.multi_reduction <maximumf>, %492, %cst_224 [1] : vector<128x32xf32> to vector<128xf32>
    %494 = vector.shape_cast %493 : vector<128xf32> to vector<128x1xf32>
    %495 = vector.broadcast %494 : vector<128x1xf32> to vector<128x32xf32>
    %496 = arith.subf %492, %495 : vector<128x32xf32>
    %497 = math.exp %496 : vector<128x32xf32>
    %cst_225 = arith.constant dense<0.000000e+00> : vector<128xf32>
    %498 = vector.multi_reduction <add>, %497, %cst_225 [1] : vector<128x32xf32> to vector<128xf32>
    %499 = vector.shape_cast %498 : vector<128xf32> to vector<128x1xf32>
    %500 = tpu.reciprocal %499 {approx = true} : vector<128x1xf32> -> vector<128x1xf32>
    %501 = vector.broadcast %500 : vector<128x1xf32> to vector<128x32xf32>
    %502 = arith.mulf %497, %501 : vector<128x32xf32>
    %503 = arith.truncf %502 : vector<128x32xf32> to vector<128x32xbf16>
    %504 = arith.truncf %484 : vector<32x64xf32> to vector<32x64xbf16>
    "tpu.trace_start"() <{level = 10 : i32, message = "tk,kd->td"}> : () -> ()
    %cst_226 = arith.constant dense<0.000000e+00> : vector<128x64xf32>
    %505 = tpu.matmul %503, %504, %cst_226 {dimension_numbers = #tpu.dot_dimension_numbers<[1], [0], [0], [1], [0, 0, 1, 1], [], []>} : vector<128x32xbf16>, vector<32x64xbf16>, vector<128x64xf32> -> vector<128x64xf32>
    "tpu.trace_stop"() : () -> ()
    %506 = arith.mulf %505, %8 : vector<128x64xf32>
    %507 = vector.shape_cast %506 : vector<128x64xf32> to vector<4x32x64xf32>
    %cst_227 = arith.constant dense<0.000000e+00> : vector<32x64xf32>
    %508 = vector.multi_reduction <add>, %507, %cst_227 [0] : vector<4x32x64xf32> to vector<32x64xf32>
    %c3_228 = arith.constant 3 : index
    %c0_229 = arith.constant 0 : index
    %c0_230 = arith.constant 0 : index
    %509 = vector.load %arg11[%c3_228, %c0_229, %c0_230] : memref<4x64x64xbf16, #tpu.memory_space<vmem>>, vector<1x64x64xbf16>
    %510 = vector.shape_cast %509 : vector<1x64x64xbf16> to vector<64x64xbf16>
    %511 = arith.truncf %508 : vector<32x64xf32> to vector<32x64xbf16>
    %cst_231 = arith.constant dense<0.000000e+00> : vector<32x64xf32>
    %512 = tpu.matmul %511, %510, %cst_231 {dimension_numbers = #tpu.dot_dimension_numbers<[1], [0], [0], [1], [0, 0, 1, 1], [], []>} : vector<32x64xbf16>, vector<64x64xbf16>, vector<32x64xf32> -> vector<32x64xf32>
    %513 = arith.addf %435, %512 : vector<32x64xf32>
    %c3_232 = arith.constant 3 : index
    %c0_233 = arith.constant 0 : index
    %c0_234 = arith.constant 0 : index
    %514 = vector.load %arg12[%c3_232, %c0_233, %c0_234] : memref<4x1x64xf32, #tpu.memory_space<vmem>>, vector<1x1x64xf32>
    %515 = vector.shape_cast %514 : vector<1x1x64xf32> to vector<1x64xf32>
    %516 = vector.broadcast %515 : vector<1x64xf32> to vector<32x64xf32>
    %517 = arith.addf %513, %516 : vector<32x64xf32>
    %518 = vector.extract_strided_slice %437 {offsets = [1, 0], sizes = [1, 64], strides = [1, 1]} : vector<2x64xf32> to vector<1x64xf32>
    %519 = vector.extract_strided_slice %439 {offsets = [1, 0], sizes = [1, 64], strides = [1, 1]} : vector<2x64xf32> to vector<1x64xf32>
    %cst_235 = arith.constant dense<0.000000e+00> : vector<32xf32>
    %520 = vector.multi_reduction <add>, %517, %cst_235 [1] : vector<32x64xf32> to vector<32xf32>
    %521 = vector.shape_cast %520 : vector<32xf32> to vector<32x1xf32>
    %cst_236 = arith.constant 6.400000e+01 : f32
    %522 = vector.broadcast %cst_236 : f32 to vector<32x1xf32>
    %523 = arith.divf %521, %522 : vector<32x1xf32>
    %524 = vector.broadcast %523 : vector<32x1xf32> to vector<32x64xf32>
    %525 = arith.subf %517, %524 : vector<32x64xf32>
    %526 = arith.mulf %525, %525 : vector<32x64xf32>
    %cst_237 = arith.constant dense<0.000000e+00> : vector<32xf32>
    %527 = vector.multi_reduction <add>, %526, %cst_237 [1] : vector<32x64xf32> to vector<32xf32>
    %528 = vector.shape_cast %527 : vector<32xf32> to vector<32x1xf32>
    %cst_238 = arith.constant 6.400000e+01 : f32
    %529 = vector.broadcast %cst_238 : f32 to vector<32x1xf32>
    %530 = arith.divf %528, %529 : vector<32x1xf32>
    %cst_239 = arith.constant 9.99999974E-6 : f32
    %531 = vector.broadcast %cst_239 : f32 to vector<32x1xf32>
    %532 = arith.addf %530, %531 : vector<32x1xf32>
    %533 = math.rsqrt %532 : vector<32x1xf32>
    %534 = vector.broadcast %533 : vector<32x1xf32> to vector<32x64xf32>
    %535 = arith.mulf %525, %534 : vector<32x64xf32>
    %536 = vector.broadcast %518 : vector<1x64xf32> to vector<32x64xf32>
    %537 = arith.mulf %535, %536 : vector<32x64xf32>
    %538 = vector.broadcast %519 : vector<1x64xf32> to vector<32x64xf32>
    %539 = arith.addf %537, %538 : vector<32x64xf32>
    %c3_240 = arith.constant 3 : index
    %c0_241 = arith.constant 0 : index
    %c0_242 = arith.constant 0 : index
    %540 = vector.load %arg13[%c3_240, %c0_241, %c0_242] : memref<4x64x128xbf16, #tpu.memory_space<vmem>>, vector<1x64x128xbf16>
    %541 = vector.shape_cast %540 : vector<1x64x128xbf16> to vector<64x128xbf16>
    %542 = arith.truncf %539 : vector<32x64xf32> to vector<32x64xbf16>
    %cst_243 = arith.constant dense<0.000000e+00> : vector<32x128xf32>
    %543 = tpu.matmul %542, %541, %cst_243 {dimension_numbers = #tpu.dot_dimension_numbers<[1], [0], [0], [1], [0, 0, 1, 1], [], []>} : vector<32x64xbf16>, vector<64x128xbf16>, vector<32x128xf32> -> vector<32x128xf32>
    %c3_244 = arith.constant 3 : index
    %c0_245 = arith.constant 0 : index
    %c0_246 = arith.constant 0 : index
    %544 = vector.load %arg14[%c3_244, %c0_245, %c0_246] : memref<4x1x128xf32, #tpu.memory_space<vmem>>, vector<1x1x128xf32>
    %545 = vector.shape_cast %544 : vector<1x1x128xf32> to vector<1x128xf32>
    %546 = vector.broadcast %545 : vector<1x128xf32> to vector<32x128xf32>
    %547 = arith.addf %543, %546 : vector<32x128xf32>
    %548 = arith.mulf %547, %547 : vector<32x128xf32>
    %549 = arith.mulf %547, %548 : vector<32x128xf32>
    %cst_247 = arith.constant 4.471500e-02 : f32
    %550 = vector.broadcast %cst_247 : f32 to vector<32x128xf32>
    %551 = arith.mulf %550, %549 : vector<32x128xf32>
    %552 = arith.addf %547, %551 : vector<32x128xf32>
    %cst_248 = arith.constant 0.797884583 : f32
    %553 = vector.broadcast %cst_248 : f32 to vector<32x128xf32>
    %554 = arith.mulf %553, %552 : vector<32x128xf32>
    %555 = math.tanh %554 : vector<32x128xf32>
    %cst_249 = arith.constant 1.000000e+00 : f32
    %556 = vector.broadcast %cst_249 : f32 to vector<32x128xf32>
    %557 = arith.addf %556, %555 : vector<32x128xf32>
    %cst_250 = arith.constant 5.000000e-01 : f32
    %558 = vector.broadcast %cst_250 : f32 to vector<32x128xf32>
    %559 = arith.mulf %558, %557 : vector<32x128xf32>
    %560 = arith.mulf %547, %559 : vector<32x128xf32>
    %c3_251 = arith.constant 3 : index
    %c0_252 = arith.constant 0 : index
    %c0_253 = arith.constant 0 : index
    %561 = vector.load %arg15[%c3_251, %c0_252, %c0_253] : memref<4x128x64xbf16, #tpu.memory_space<vmem>>, vector<1x128x64xbf16>
    %562 = vector.shape_cast %561 : vector<1x128x64xbf16> to vector<128x64xbf16>
    %563 = arith.truncf %560 : vector<32x128xf32> to vector<32x128xbf16>
    %cst_254 = arith.constant dense<0.000000e+00> : vector<32x64xf32>
    %564 = tpu.matmul %563, %562, %cst_254 {dimension_numbers = #tpu.dot_dimension_numbers<[1], [0], [0], [1], [0, 0, 1, 1], [], []>} : vector<32x128xbf16>, vector<128x64xbf16>, vector<32x64xf32> -> vector<32x64xf32>
    %565 = arith.addf %517, %564 : vector<32x64xf32>
    %c3_255 = arith.constant 3 : index
    %c0_256 = arith.constant 0 : index
    %c0_257 = arith.constant 0 : index
    %566 = vector.load %arg16[%c3_255, %c0_256, %c0_257] : memref<4x1x64xf32, #tpu.memory_space<vmem>>, vector<1x1x64xf32>
    %567 = vector.shape_cast %566 : vector<1x1x64xf32> to vector<1x64xf32>
    %568 = vector.broadcast %567 : vector<1x64xf32> to vector<32x64xf32>
    %569 = arith.addf %565, %568 : vector<32x64xf32>
    %c0_258 = arith.constant 0 : index
    %c0_259 = arith.constant 0 : index
    %570 = vector.load %arg17[%c0_258, %c0_259] : memref<32x64xf32, #tpu.memory_space<vmem>>, vector<32x64xf32>
    tpu.vector_store %arg17[%c0_258, %c0_259], %569 {strides = array<i32>} : memref<32x64xf32, #tpu.memory_space<vmem>>, vector<32x64xf32>,
    return
  }
}

</mosaic_0001>

<llo_original>
// kernel: vit_autoencoder_forward.1
$region0: #{vit_autoencoder_forward.1}
  #allocation0 [shape = 'u32[]', space=smem, size = 0x4, offset = 0x4, fixed_abs, tag = 'smem constant byte address 0x4 - core index']
  #allocation1 [shape = 'u32[144,128]{1,0:T(1,128)}', space=vmem, size = 0x12000, scoped, tag = 'internal scratch']
  %s0 = inlined_call_operand.vmem [shape: f32[32,64], index: 0, kind: input, shape index: {}]
  %s1 = inlined_call_operand.vmem [shape: bf16[64,64], index: 1, kind: input, shape index: {}]
  %s2 = inlined_call_operand.vmem [shape: f32[1,64], index: 2, kind: input, shape index: {}]
  %s3 = inlined_call_operand.vmem [shape: f32[16,64], index: 3, kind: input, shape index: {}]
  %s4 = inlined_call_operand.vmem [shape: f32[16,64], index: 4, kind: input, shape index: {}]
  %s5 = inlined_call_operand.vmem [shape: f32[4,2,64], index: 5, kind: input, shape index: {}]
  %s6 = inlined_call_operand.vmem [shape: f32[4,2,64], index: 6, kind: input, shape index: {}]
  %s7 = inlined_call_operand.vmem [shape: bf16[4,64,64], index: 7, kind: input, shape index: {}]
  %s8 = inlined_call_operand.vmem [shape: bf16[4,64,64], index: 8, kind: input, shape index: {}]
  %s9 = inlined_call_operand.vmem [shape: bf16[4,64,64], index: 9, kind: input, shape index: {}]
  %s10 = inlined_call_operand.vmem [shape: f32[4,3,64], index: 10, kind: input, shape index: {}]
  %s11 = inlined_call_operand.vmem [shape: bf16[4,64,64], index: 11, kind: input, shape index: {}]
  %s12 = inlined_call_operand.vmem [shape: f32[4,1,64], index: 12, kind: input, shape index: {}]
  %s13 = inlined_call_operand.vmem [shape: bf16[4,64,128], index: 13, kind: input, shape index: {}]
  %s14 = inlined_call_operand.vmem [shape: f32[4,1,128], index: 14, kind: input, shape index: {}]
  %s15 = inlined_call_operand.vmem [shape: bf16[4,128,64], index: 15, kind: input, shape index: {}]
  %s16 = inlined_call_operand.vmem [shape: f32[4,1,64], index: 16, kind: input, shape index: {}]
  %s17 = inlined_call_operand.hbm [shape: f32[32,64], index: 17, kind: output, shape index: {}]
  %s18 = sld [smem:[#allocation0]]
  $region78: #{vit_autoencoder_forward.1} parent=0
    _
  %s20 = ssub.s32 1, %s18
  %s21 = scalar_select 0, %s20, %s18
  $region1: #{vit_autoencoder_forward.1} parent=0
    #allocation2 [shape = 'u8[16384]{0}', space=vmem, size = 0x4000, scoped, tag = 'output window, operand 0, single buffered']
    #allocation3 [shape = 's32[1]{0}', space=sflag, size = 0x4, scoped, tag = 'scoped memory for vit_autoencoder_forward.1']
    %22 = vsyncpa [#allocation3], 0
    // Predicated region
    $region2: #{vit_autoencoder_forward.1} parent=1 // pred_check
      _
    $region3: #{vit_autoencoder_forward.1} parent=1 // pred_check_branch
      %24 = sbr.rel (0) target = $region5
    $region4: #{vit_autoencoder_forward.1} parent=1 // pred_region
      _
    $region5: #{vit_autoencoder_forward.1} parent=1 // pred_fallthru
      _
    // Predicated region
    $region6: #{vit_autoencoder_forward.1} parent=1 // pred_check
      _
    $region7: #{vit_autoencoder_forward.1} parent=1 // pred_check_branch
      %26 = sbr.rel (0) target = $region9
    $region8: #{vit_autoencoder_forward.1} parent=1 // pred_region
      _
    $region9: #{vit_autoencoder_forward.1} parent=1 // pred_fallthru
      _
    // Predicated region
    $region10: #{vit_autoencoder_forward.1} parent=1 // pred_check
      _
    $region11: #{vit_autoencoder_forward.1} parent=1 // pred_check_branch
      %28 = sbr.rel (0) target = $region13
    $region12: #{vit_autoencoder_forward.1} parent=1 // pred_region
      _
    $region13: #{vit_autoencoder_forward.1} parent=1 // pred_fallthru
      _
    // Predicated region
    $region14: #{vit_autoencoder_forward.1} parent=1 // pred_check
      _
    $region15: #{vit_autoencoder_forward.1} parent=1 // pred_check_branch
      %30 = sbr.rel (0) target = $region17
    $region16: #{vit_autoencoder_forward.1} parent=1 // pred_region
      _
    $region17: #{vit_autoencoder_forward.1} parent=1 // pred_fallthru
      _
    // Predicated region
    $region18: #{vit_autoencoder_forward.1} parent=1 // pred_check
      _
    $region19: #{vit_autoencoder_forward.1} parent=1 // pred_check_branch
      %32 = sbr.rel (0) target = $region21
    $region20: #{vit_autoencoder_forward.1} parent=1 // pred_region
      _
    $region21: #{vit_autoencoder_forward.1} parent=1 // pred_fallthru
      _
    // Predicated region
    $region22: #{vit_autoencoder_forward.1} parent=1 // pred_check
      _
    $region23: #{vit_autoencoder_forward.1} parent=1 // pred_check_branch
      %34 = sbr.rel (0) target = $region25
    $region24: #{vit_autoencoder_forward.1} parent=1 // pred_region
      _
    $region25: #{vit_autoencoder_forward.1} parent=1 // pred_fallthru
      _
    // Predicated region
    $region26: #{vit_autoencoder_forward.1} parent=1 // pred_check
      _
    $region27: #{vit_autoencoder_forward.1} parent=1 // pred_check_branch
      %36 = sbr.rel (0) target = $region29
    $region28: #{vit_autoencoder_forward.1} parent=1 // pred_region
      _
    $region29: #{vit_autoencoder_forward.1} parent=1 // pred_fallthru
      _
    // Predicated region
    $region30: #{vit_autoencoder_forward.1} parent=1 // pred_check
      _
    $region31: #{vit_autoencoder_forward.1} parent=1 // pred_check_branch
      %38 = sbr.rel (0) target = $region33
    $region32: #{vit_autoencoder_forward.1} parent=1 // pred_region
      _
    $region33: #{vit_autoencoder_forward.1} parent=1 // pred_fallthru
      _
    // Predicated region
    $region34: #{vit_autoencoder_forward.1} parent=1 // pred_check
      _
    $region35: #{vit_autoencoder_forward.1} parent=1 // pred_check_branch
      %40 = sbr.rel (0) target = $region37
    $region36: #{vit_autoencoder_forward.1} parent=1 // pred_region
      _
    $region37: #{vit_autoencoder_forward.1} parent=1 // pred_fallthru
      _
    // Predicated region
    $region38: #{vit_autoencoder_forward.1} parent=1 // pred_check
      _
    $region39: #{vit_autoencoder_forward.1} parent=1 // pred_check_branch
      %42 = sbr.rel (0) target = $region41
    $region40: #{vit_autoencoder_forward.1} parent=1 // pred_region
      _
    $region41: #{vit_autoencoder_forward.1} parent=1 // pred_fallthru
      _
    // Predicated region
    $region42: #{vit_autoencoder_forward.1} parent=1 // pred_check
      _
    $region43: #{vit_autoencoder_forward.1} parent=1 // pred_check_branch
      %44 = sbr.rel (0) target = $region45
    $region44: #{vit_autoencoder_forward.1} parent=1 // pred_region
      _
    $region45: #{vit_autoencoder_forward.1} parent=1 // pred_fallthru
      _
    // Predicated region
    $region46: #{vit_autoencoder_forward.1} parent=1 // pred_check
      _
    $region47: #{vit_autoencoder_forward.1} parent=1 // pred_check_branch
      %46 = sbr.rel (0) target = $region49
    $region48: #{vit_autoencoder_forward.1} parent=1 // pred_region
      _
    $region49: #{vit_autoencoder_forward.1} parent=1 // pred_fallthru
      _
    // Predicated region
    $region50: #{vit_autoencoder_forward.1} parent=1 // pred_check
      _
    $region51: #{vit_autoencoder_forward.1} parent=1 // pred_check_branch
      %48 = sbr.rel (0) target = $region53
    $region52: #{vit_autoencoder_forward.1} parent=1 // pred_region
      _
    $region53: #{vit_autoencoder_forward.1} parent=1 // pred_fallthru
      _
    // Predicated region
    $region54: #{vit_autoencoder_forward.1} parent=1 // pred_check
      _
    $region55: #{vit_autoencoder_forward.1} parent=1 // pred_check_branch
      %50 = sbr.rel (0) target = $region57
    $region56: #{vit_autoencoder_forward.1} parent=1 // pred_region
      _
    $region57: #{vit_autoencoder_forward.1} parent=1 // pred_fallthru
      _
    // Predicated region
    $region58: #{vit_autoencoder_forward.1} parent=1 // pred_check
      _
    $region59: #{vit_autoencoder_forward.1} parent=1 // pred_check_branch
      %52 = sbr.rel (0) target = $region61
    $region60: #{vit_autoencoder_forward.1} parent=1 // pred_region
      _
    $region61: #{vit_autoencoder_forward.1} parent=1 // pred_fallthru
      _
    // Predicated region
    $region62: #{vit_autoencoder_forward.1} parent=1 // pred_check
      _
    $region63: #{vit_autoencoder_forward.1} parent=1 // pred_check_branch
      %54 = sbr.rel (0) target = $region65
    $region64: #{vit_autoencoder_forward.1} parent=1 // pred_region
      _
    $region65: #{vit_autoencoder_forward.1} parent=1 // pred_fallthru
      _
    // Predicated region
    $region66: #{vit_autoencoder_forward.1} parent=1 // pred_check
      _
    $region67: #{vit_autoencoder_forward.1} parent=1 // pred_check_branch
      %56 = sbr.rel (0) target = $region69
    $region68: #{vit_autoencoder_forward.1} parent=1 // pred_region
      _
    $region69: #{vit_autoencoder_forward.1} parent=1 // pred_fallthru
      _
    %v58 = vlaneseq
    %v59 = vand.u32 %v58, 127
    %v60 = vlaneseq
    %v61 = vshrl.u32 %v60, 7
    %v62 = vadd.s32 %v61, 8
    %v63 = vadd.s32 %v61, 16
    %v64 = vadd.s32 %v61, 24
    %v65 = vadd.s32 %v61, 32
    %v66 = vadd.s32 %v61, 40
    %v67 = vadd.s32 %v61, 48
    %v68 = vadd.s32 %v61, 56
    %v69 = vadd.s32 %v61, 64
    %v70 = vadd.s32 %v61, 72
    %v71 = vadd.s32 %v61, 80
    %v72 = vadd.s32 %v61, 88
    %v73 = vadd.s32 %v61, 96
    %v74 = vadd.s32 %v61, 104
    %v75 = vadd.s32 %v61, 112
    %v76 = vadd.s32 %v61, 120
    %v77 = vshra.s32 %v59, 4
    %v78 = vshra.s32 %v61, 5
    %v79 = vshra.s32 %v62, 5
    %v80 = vshra.s32 %v63, 5
    %v81 = vshra.s32 %v64, 5
    %v82 = vshra.s32 %v65, 5
    %v83 = vshra.s32 %v66, 5
    %v84 = vshra.s32 %v67, 5
    %v85 = vshra.s32 %v68, 5
    %v86 = vshra.s32 %v69, 5
    %v87 = vshra.s32 %v70, 5
    %v88 = vshra.s32 %v71, 5
    %v89 = vshra.s32 %v72, 5
    %v90 = vshra.s32 %v73, 5
    %v91 = vshra.s32 %v74, 5
    %v92 = vshra.s32 %v75, 5
    %v93 = vshra.s32 %v76, 5
    %vm94 = vcmp.eq.s32.totalorder %v77, %v78
    %vm95 = vcmp.eq.s32.totalorder %v77, %v79
    %vm96 = vcmp.eq.s32.totalorder %v77, %v80
    %vm97 = vcmp.eq.s32.totalorder %v77, %v81
    %vm98 = vcmp.eq.s32.totalorder %v77, %v82
    %vm99 = vcmp.eq.s32.totalorder %v77, %v83
    %vm100 = vcmp.eq.s32.totalorder %v77, %v84
    %vm101 = vcmp.eq.s32.totalorder %v77, %v85
    %vm102 = vcmp.eq.s32.totalorder %v77, %v86
    %vm103 = vcmp.eq.s32.totalorder %v77, %v87
    %vm104 = vcmp.eq.s32.totalorder %v77, %v88
    %vm105 = vcmp.eq.s32.totalorder %v77, %v89
    %vm106 = vcmp.eq.s32.totalorder %v77, %v90
    %vm107 = vcmp.eq.s32.totalorder %v77, %v91
    %vm108 = vcmp.eq.s32.totalorder %v77, %v92
    %vm109 = vcmp.eq.s32.totalorder %v77, %v93
    %v110 = vsel %vm94, 1, 0
    %v111 = vsel %vm95, 1, 0
    %v112 = vsel %vm96, 1, 0
    %v113 = vsel %vm97, 1, 0
    %v114 = vsel %vm98, 1, 0
    %v115 = vsel %vm99, 1, 0
    %v116 = vsel %vm100, 1, 0
    %v117 = vsel %vm101, 1, 0
    %v118 = vsel %vm102, 1, 0
    %v119 = vsel %vm103, 1, 0
    %v120 = vsel %vm104, 1, 0
    %v121 = vsel %vm105, 1, 0
    %v122 = vsel %vm106, 1, 0
    %v123 = vsel %vm107, 1, 0
    %v124 = vsel %vm108, 1, 0
    %v125 = vsel %vm109, 1, 0
    %v126 = vcvt.s32.f32 %v110
    %v127 = vcvt.s32.f32 %v111
    %v128 = vcvt.s32.f32 %v112
    %v129 = vcvt.s32.f32 %v113
    %v130 = vcvt.s32.f32 %v114
    %v131 = vcvt.s32.f32 %v115
    %v132 = vcvt.s32.f32 %v116
    %v133 = vcvt.s32.f32 %v117
    %v134 = vcvt.s32.f32 %v118
    %v135 = vcvt.s32.f32 %v119
    %v136 = vcvt.s32.f32 %v120
    %v137 = vcvt.s32.f32 %v121
    %v138 = vcvt.s32.f32 %v122
    %v139 = vcvt.s32.f32 %v123
    %v140 = vcvt.s32.f32 %v124
    %v141 = vcvt.s32.f32 %v125
    %v142 = vand.u32 %v61, 31
    %v143 = vand.u32 %v62, 31
    %v144 = vand.u32 %v63, 31
    %v145 = vand.u32 %v64, 31
    %v146 = vand.u32 %v65, 31
    %v147 = vand.u32 %v66, 31
    %v148 = vand.u32 %v67, 31
    %v149 = vand.u32 %v68, 31
    %v150 = vand.u32 %v69, 31
    %v151 = vand.u32 %v70, 31
    %v152 = vand.u32 %v71, 31
    %v153 = vand.u32 %v72, 31
    %v154 = vand.u32 %v73, 31
    %v155 = vand.u32 %v74, 31
    %v156 = vand.u32 %v75, 31
    %v157 = vand.u32 %v76, 31
    %v158 = vshra.s32 %v142, 4
    %v159 = vshra.s32 %v143, 4
    %v160 = vshra.s32 %v144, 4
    %v161 = vshra.s32 %v145, 4
    %v162 = vshra.s32 %v146, 4
    %v163 = vshra.s32 %v147, 4
    %v164 = vshra.s32 %v148, 4
    %v165 = vshra.s32 %v149, 4
    %v166 = vshra.s32 %v150, 4
    %v167 = vshra.s32 %v151, 4
    %v168 = vshra.s32 %v152, 4
    %v169 = vshra.s32 %v153, 4
    %v170 = vshra.s32 %v154, 4
    %v171 = vshra.s32 %v155, 4
    %v172 = vshra.s32 %v156, 4
    %v173 = vshra.s32 %v157, 4
    %vm174 = vcmp.eq.s32.totalorder %v158, %v77
    %vm175 = vcmp.eq.s32.totalorder %v159, %v77
    %vm176 = vcmp.eq.s32.totalorder %v160, %v77
    %vm177 = vcmp.eq.s32.totalorder %v161, %v77
    %vm178 = vcmp.eq.s32.totalorder %v162, %v77
    %vm179 = vcmp.eq.s32.totalorder %v163, %v77
    %vm180 = vcmp.eq.s32.totalorder %v164, %v77
    %vm181 = vcmp.eq.s32.totalorder %v165, %v77
    %vm182 = vcmp.eq.s32.totalorder %v166, %v77
    %vm183 = vcmp.eq.s32.totalorder %v167, %v77
    %vm184 = vcmp.eq.s32.totalorder %v168, %v77
    %vm185 = vcmp.eq.s32.totalorder %v169, %v77
    %vm186 = vcmp.eq.s32.totalorder %v170, %v77
    %vm187 = vcmp.eq.s32.totalorder %v171, %v77
    %vm188 = vcmp.eq.s32.totalorder %v172, %v77
    %vm189 = vcmp.eq.s32.totalorder %v173, %v77
    %v190 = vsel %vm174, 0.0, -1e+30
    %v191 = vsel %vm175, 0.0, -1e+30
    %v192 = vsel %vm176, 0.0, -1e+30
    %v193 = vsel %vm177, 0.0, -1e+30
    %v194 = vsel %vm178, 0.0, -1e+30
    %v195 = vsel %vm179, 0.0, -1e+30
    %v196 = vsel %vm180, 0.0, -1e+30
    %v197 = vsel %vm181, 0.0, -1e+30
    %v198 = vsel %vm182, 0.0, -1e+30
    %v199 = vsel %vm183, 0.0, -1e+30
    %v200 = vsel %vm184, 0.0, -1e+30
    %v201 = vsel %vm185, 0.0, -1e+30
    %v202 = vsel %vm186, 0.0, -1e+30
    %v203 = vsel %vm187, 0.0, -1e+30
    %v204 = vsel %vm188, 0.0, -1e+30
    %v205 = vsel %vm189, 0.0, -1e+30
    %v206 = vld [vmem:[%s3] sm:$0xff]
    %v207 = vld [vmem:[%s3 + $0x8] sm:$0xff]
    %v208 = vld [vmem:[%s4] sm:$0xff]
    %v209 = vld [vmem:[%s4 + $0x8] sm:$0xff]
    %v210 = vld [vmem:[%s0] sm:$0xff]
    %v211 = vld [vmem:[%s0 + $0x8] sm:$0xff]
    %v212 = vld [vmem:[%s0 + $0x10] sm:$0xff]
    %v213 = vld [vmem:[%s0 + $0x18] sm:$0xff]
    %v214 = vld [vmem:[%s1] sm:$0xf]
    %v215 = vld [vmem:[%s1 + $0x4] sm:$0xf]
    %v216 = vld [vmem:[%s1 + $0x8] sm:$0xf]
    %v217 = vld [vmem:[%s1 + $0xc] sm:$0xf]
    %v218 = vld [vmem:[%s1 + $0x10] sm:$0xf]
    %v219 = vld [vmem:[%s1 + $0x14] sm:$0xf]
    %v220 = vld [vmem:[%s1 + $0x18] sm:$0xf]
    %v221 = vld [vmem:[%s1 + $0x1c] sm:$0xf]
    %v222 = vpack.c.bf16 %v211, %v210
    %v223 = vpack.c.bf16 %v213, %v212
    %v224 = vld [vmem:[%s2] sm:$0x1]
    %v226 = vlaneseq
    %v227 = vshrl.u32 %v226, 7
    %v228 = vsub.s32 0, %v227
    %v229 = vrot.slane %v224, %v228
    %v239 = vunpack.c.l.b16 %v214
    %v240 = vunpack.c.l.b16 %v215
    %v241 = vunpack.c.l.b16 %v216
    %v242 = vunpack.c.l.b16 %v217
    %v243 = vunpack.c.l.b16 %v218
    %v244 = vunpack.c.l.b16 %v219
    %v245 = vunpack.c.l.b16 %v220
    %v246 = vunpack.c.l.b16 %v221
    %v247 = vpack.c.b16 %v240, %v239
    %v248 = vpack.c.b16 %v242, %v241
    %v249 = vpack.c.b16 %v244, %v243
    %v250 = vpack.c.b16 %v246, %v245
    %vm255 = vcmask 523264
    %v257 = vsel %vm255, %v222, 0
    %v260 = vsel %vm255, %v223, 0
    %262 = vmatprep.subr.bf16.mxu0 0
    %263 = vmatpush1.bf16.msra.mxu0 %v247
    %264 = vmatprep.subr.bf16.mxu0 0
    %265 = vmatpush1.bf16.msra.mxu0 %v248
    %266 = vmatprep.subr.bf16.mxu0 0
    %267 = vmatpush1.bf16.msra.mxu0 %v249
    %268 = vmatprep.subr.bf16.mxu0 0
    %269 = vmatpush1.bf16.msra.mxu0 %v250
    %270 = vmatprep.subr.bf16.mxu0 0
    %271 = vmatpush1.bf16.msra.mxu0 0
    %272 = vmatprep.subr.bf16.mxu0 0
    %273 = vmatpush1.bf16.msra.mxu0 0
    %274 = vmatprep.subr.bf16.mxu0 0
    %275 = vmatpush1.bf16.msra.mxu0 0
    %276 = vmatprep.subr.bf16.mxu0 0
    %277 = vmatpush1.bf16.msra.mxu0 0
    %278 = vmatprep.subr.bf16.mxu0 0
    %279 = vmatpush1.bf16.msra.mxu0 0
    %280 = vmatprep.subr.bf16.mxu0 0
    %281 = vmatpush1.bf16.msra.mxu0 0
    %282 = vmatprep.subr.bf16.mxu0 0
    %283 = vmatpush1.bf16.msra.mxu0 0
    %284 = vmatprep.subr.bf16.mxu0 0
    %285 = vmatpush1.bf16.msra.mxu0 0
    %286 = vmatprep.subr.bf16.mxu0 0
    %287 = vmatpush1.bf16.msra.mxu0 0
    %288 = vmatprep.subr.bf16.mxu0 0
    %289 = vmatpush1.bf16.msra.mxu0 0
    %290 = vmatprep.subr.bf16.mxu0 0
    %291 = vmatpush1.bf16.msra.mxu0 0
    %292 = vmatprep.subr.bf16.mxu0 0
    %293 = vmatpush1.bf16.msra.mxu0 0
    %294 = vmatprep.mubr.bf16.mxu0 0
    %295 = vmatmul.mubr.bf16.gmra.mrb[0].mxu0 %v257
    %v296 = vpop.f32.mrb[0].mxu0
    %v297 = vadd.f32 %v229, %v296
    %v298 = vpop.f32.mrb[0].mxu0
    %v299 = vpop.f32.mrb[0].mxu0
    %v300 = vadd.f32 %v229, %v299
    %v301 = vpop.f32.mrb[0].mxu0
    %302 = vmatprep.mubr.bf16.mxu0 0
    %303 = vmatmul.mubr.bf16.gmra.mrb[0].mxu0 %v260
    %v304 = vpop.f32.mrb[0].mxu0
    %v305 = vadd.f32 %v229, %v304
    %v306 = vpop.f32.mrb[0].mxu0
    %v307 = vpop.f32.mrb[0].mxu0
    %v308 = vadd.f32 %v229, %v307
    %v309 = vpop.f32.mrb[0].mxu0
    %310 = vdwg.mxu0
    %v311 = vadd.f32 %v297, %v206
    %v312 = vadd.f32 %v300, %v207
    %v313 = vadd.f32 %v305, %v206
    %v314 = vadd.f32 %v308, %v207
    %v315 = vld [vmem:[%s5] sm:$0x3]
    %v316 = vld [vmem:[%s6] sm:$0x3]
    %v317 = vld [vmem:[%s10] sm:$0x7]
    %v318 = vsel %vm255, %v311, 0.0
    %319 = vadd.xlane.f32.xlu0 %v318
    %v320 = vpop.xlane.xlu0 %319
    %v321 = vsel %vm255, %v312, 0.0
    %322 = vadd.xlane.f32.xlu0 %v321
    %v323 = vpop.xlane.xlu0 %322
    %v324 = vsel %vm255, %v313, 0.0
    %325 = vadd.xlane.f32.xlu0 %v324
    %v326 = vpop.xlane.xlu0 %325
    %v327 = vsel %vm255, %v314, 0.0
    %328 = vadd.xlane.f32.xlu0 %v327
    %v329 = vpop.xlane.xlu0 %328
    %v330 = vrcp.pop 64.0
    %v331 = vmul.f32 %v320, %v330
    %v332 = vmul.f32 %v323, %v330
    %v333 = vmul.f32 %v326, %v330
    %v334 = vmul.f32 %v329, %v330
    %v335 = vsub.f32 %v311, %v331
    %v336 = vsub.f32 %v312, %v332
    %v337 = vsub.f32 %v313, %v333
    %v338 = vsub.f32 %v314, %v334
    %v339 = vmul.f32 %v335, %v335
    %v340 = vmul.f32 %v336, %v336
    %v341 = vmul.f32 %v337, %v337
    %v342 = vmul.f32 %v338, %v338
    %v343 = vsel %vm255, %v339, 0.0
    %344 = vadd.xlane.f32.xlu0 %v343
    %v345 = vpop.xlane.xlu0 %344
    %v346 = vsel %vm255, %v340, 0.0
    %347 = vadd.xlane.f32.xlu0 %v346
    %v348 = vpop.xlane.xlu0 %347
    %v349 = vsel %vm255, %v341, 0.0
    %350 = vadd.xlane.f32.xlu0 %v349
    %v351 = vpop.xlane.xlu0 %350
    %v352 = vsel %vm255, %v342, 0.0
    %353 = vadd.xlane.f32.xlu0 %v352
    %v354 = vpop.xlane.xlu0 %353
    %v355 = vmul.f32 %v345, %v330
    %v356 = vmul.f32 %v348, %v330
    %v357 = vmul.f32 %v351, %v330
    %v358 = vmul.f32 %v354, %v330
    %v359 = vadd.f32 %v355, 1e-05
    %v360 = vadd.f32 %v356, 1e-05
    %v361 = vadd.f32 %v357, 1e-05
    %v362 = vadd.f32 %v358, 1e-05
    %v363 = vrsqrt.pop %v359
    %v364 = vrsqrt.pop %v360
    %v365 = vrsqrt.pop %v361
    %v366 = vrsqrt.pop %v362
    %v367 = vmul.f32 %v335, %v363
    %v368 = vmul.f32 %v336, %v364
    %v369 = vmul.f32 %v337, %v365
    %v370 = vmul.f32 %v338, %v366
    %v371 = vlaneseq
    %v372 = vshrl.u32 %v371, 7
    %v373 = vsub.s32 0, %v372
    %v374 = vrot.slane %v315, %v373
    %v375 = vmul.f32 %v367, %v374
    %v376 = vmul.f32 %v368, %v374
    %v377 = vmul.f32 %v369, %v374
    %v378 = vmul.f32 %v370, %v374
    %v379 = vlaneseq
    %v380 = vshrl.u32 %v379, 7
    %v381 = vsub.s32 0, %v380
    %v382 = vrot.slane %v316, %v381
    %v383 = vadd.f32 %v375, %v382
    %v384 = vadd.f32 %v376, %v382
    %v385 = vadd.f32 %v377, %v382
    %v386 = vadd.f32 %v378, %v382
    %v387 = vld [vmem:[%s7] sm:$0xf]
    %v388 = vld [vmem:[%s7 + $0x4] sm:$0xf]
    %v389 = vld [vmem:[%s7 + $0x8] sm:$0xf]
    %v390 = vld [vmem:[%s7 + $0xc] sm:$0xf]
    %v391 = vld [vmem:[%s7 + $0x10] sm:$0xf]
    %v392 = vld [vmem:[%s7 + $0x14] sm:$0xf]
    %v393 = vld [vmem:[%s7 + $0x18] sm:$0xf]
    %v394 = vld [vmem:[%s7 + $0x1c] sm:$0xf]
    %v395 = vpack.c.bf16 %v384, %v383
    %v396 = vpack.c.bf16 %v386, %v385
    %v397 = vlaneseq
    %v398 = vshrl.u32 %v397, 7
    %v399 = vsub.s32 0, %v398
    %v400 = vrot.slane %v317, %v399
    %v409 = vunpack.c.l.b16 %v387
    %v410 = vunpack.c.l.b16 %v388
    %v411 = vunpack.c.l.b16 %v389
    %v412 = vunpack.c.l.b16 %v390
    %v413 = vunpack.c.l.b16 %v391
    %v414 = vunpack.c.l.b16 %v392
    %v415 = vunpack.c.l.b16 %v393
    %v416 = vunpack.c.l.b16 %v394
    %v417 = vpack.c.b16 %v410, %v409
    %v418 = vpack.c.b16 %v412, %v411
    %v419 = vpack.c.b16 %v414, %v413
    %v420 = vpack.c.b16 %v416, %v415
    %v426 = vsel %vm255, %v395, 0
    %v429 = vsel %vm255, %v396, 0
    %431 = vmatprep.subr.bf16.mxu0 0
    %432 = vmatpush1.bf16.msra.mxu0 %v417
    %433 = vmatprep.subr.bf16.mxu0 0
    %434 = vmatpush1.bf16.msra.mxu0 %v418
    %435 = vmatprep.subr.bf16.mxu0 0
    %436 = vmatpush1.bf16.msra.mxu0 %v419
    %437 = vmatprep.subr.bf16.mxu0 0
    %438 = vmatpush1.bf16.msra.mxu0 %v420
    %439 = vmatprep.subr.bf16.mxu0 0
    %440 = vmatpush1.bf16.msra.mxu0 0
    %441 = vmatprep.subr.bf16.mxu0 0
    %442 = vmatpush1.bf16.msra.mxu0 0
    %443 = vmatprep.subr.bf16.mxu0 0
    %444 = vmatpush1.bf16.msra.mxu0 0
    %445 = vmatprep.subr.bf16.mxu0 0
    %446 = vmatpush1.bf16.msra.mxu0 0
    %447 = vmatprep.subr.bf16.mxu0 0
    %448 = vmatpush1.bf16.msra.mxu0 0
    %449 = vmatprep.subr.bf16.mxu0 0
    %450 = vmatpush1.bf16.msra.mxu0 0
    %451 = vmatprep.subr.bf16.mxu0 0
    %452 = vmatpush1.bf16.msra.mxu0 0
    %453 = vmatprep.subr.bf16.mxu0 0
    %454 = vmatpush1.bf16.msra.mxu0 0
    %455 = vmatprep.subr.bf16.mxu0 0
    %456 = vmatpush1.bf16.msra.mxu0 0
    %457 = vmatprep.subr.bf16.mxu0 0
    %458 = vmatpush1.bf16.msra.mxu0 0
    %459 = vmatprep.subr.bf16.mxu0 0
    %460 = vmatpush1.bf16.msra.mxu0 0
    %461 = vmatprep.subr.bf16.mxu0 0
    %462 = vmatpush1.bf16.msra.mxu0 0
    %463 = vmatprep.mubr.bf16.mxu0 0
    %464 = vmatmul.mubr.bf16.gmra.mrb[0].mxu0 %v426
    %v465 = vpop.f32.mrb[0].mxu0
    %v466 = vadd.f32 %v400, %v465
    %v467 = vpop.f32.mrb[0].mxu0
    %v468 = vpop.f32.mrb[0].mxu0
    %v469 = vadd.f32 %v400, %v468
    %v470 = vpop.f32.mrb[0].mxu0
    %471 = vmatprep.mubr.bf16.mxu0 0
    %472 = vmatmul.mubr.bf16.gmra.mrb[0].mxu0 %v429
    %v473 = vpop.f32.mrb[0].mxu0
    %v474 = vadd.f32 %v400, %v473
    %v475 = vpop.f32.mrb[0].mxu0
    %v476 = vpop.f32.mrb[0].mxu0
    %v477 = vadd.f32 %v400, %v476
    %v478 = vpop.f32.mrb[0].mxu0
    %479 = vdwg.mxu0
    %v480 = vld [vmem:[%s8] sm:$0xf]
    %v481 = vld [vmem:[%s8 + $0x4] sm:$0xf]
    %v482 = vld [vmem:[%s8 + $0x8] sm:$0xf]
    %v483 = vld [vmem:[%s8 + $0xc] sm:$0xf]
    %v484 = vld [vmem:[%s8 + $0x10] sm:$0xf]
    %v485 = vld [vmem:[%s8 + $0x14] sm:$0xf]
    %v486 = vld [vmem:[%s8 + $0x18] sm:$0xf]
    %v487 = vld [vmem:[%s8 + $0x1c] sm:$0xf]
    %v488 = vlaneseq
    %v489 = vshrl.u32 %v488, 7
    %v490 = vsub.s32 1, %v489
    %v491 = vrot.slane %v317, %v490
    %v500 = vunpack.c.l.b16 %v480
    %v501 = vunpack.c.l.b16 %v481
    %v502 = vunpack.c.l.b16 %v482
    %v503 = vunpack.c.l.b16 %v483
    %v504 = vunpack.c.l.b16 %v484
    %v505 = vunpack.c.l.b16 %v485
    %v506 = vunpack.c.l.b16 %v486
    %v507 = vunpack.c.l.b16 %v487
    %v508 = vpack.c.b16 %v501, %v500
    %v509 = vpack.c.b16 %v503, %v502
    %v510 = vpack.c.b16 %v505, %v504
    %v511 = vpack.c.b16 %v507, %v506
    %516 = vmatprep.subr.bf16.mxu0 0
    %517 = vmatpush1.bf16.msra.mxu0 %v508
    %518 = vmatprep.subr.bf16.mxu0 0
    %519 = vmatpush1.bf16.msra.mxu0 %v509
    %520 = vmatprep.subr.bf16.mxu0 0
    %521 = vmatpush1.bf16.msra.mxu0 %v510
    %522 = vmatprep.subr.bf16.mxu0 0
    %523 = vmatpush1.bf16.msra.mxu0 %v511
    %524 = vmatprep.subr.bf16.mxu0 0
    %525 = vmatpush1.bf16.msra.mxu0 0
    %526 = vmatprep.subr.bf16.mxu0 0
    %527 = vmatpush1.bf16.msra.mxu0 0
    %528 = vmatprep.subr.bf16.mxu0 0
    %529 = vmatpush1.bf16.msra.mxu0 0
    %530 = vmatprep.subr.bf16.mxu0 0
    %531 = vmatpush1.bf16.msra.mxu0 0
    %532 = vmatprep.subr.bf16.mxu0 0
    %533 = vmatpush1.bf16.msra.mxu0 0
    %534 = vmatprep.subr.bf16.mxu0 0
    %535 = vmatpush1.bf16.msra.mxu0 0
    %536 = vmatprep.subr.bf16.mxu0 0
    %537 = vmatpush1.bf16.msra.mxu0 0
    %538 = vmatprep.subr.bf16.mxu0 0
    %539 = vmatpush1.bf16.msra.mxu0 0
    %540 = vmatprep.subr.bf16.mxu0 0
    %541 = vmatpush1.bf16.msra.mxu0 0
    %542 = vmatprep.subr.bf16.mxu0 0
    %543 = vmatpush1.bf16.msra.mxu0 0
    %544 = vmatprep.subr.bf16.mxu0 0
    %545 = vmatpush1.bf16.msra.mxu0 0
    %546 = vmatprep.subr.bf16.mxu0 0
    %547 = vmatpush1.bf16.msra.mxu0 0
    %548 = vmatprep.mubr.bf16.mxu0 0
    %549 = vmatmul.mubr.bf16.gmra.mrb[0].mxu0 %v426
    %v550 = vpop.f32.mrb[0].mxu0
    %v551 = vadd.f32 %v491, %v550
    %v552 = vpop.f32.mrb[0].mxu0
    %v553 = vpop.f32.mrb[0].mxu0
    %v554 = vadd.f32 %v491, %v553
    %v555 = vpop.f32.mrb[0].mxu0
    %556 = vmatprep.mubr.bf16.mxu0 0
    %557 = vmatmul.mubr.bf16.gmra.mrb[0].mxu0 %v429
    %v558 = vpop.f32.mrb[0].mxu0
    %v559 = vadd.f32 %v491, %v558
    %v560 = vpop.f32.mrb[0].mxu0
    %v561 = vpop.f32.mrb[0].mxu0
    %v562 = vadd.f32 %v491, %v561
    %v563 = vpop.f32.mrb[0].mxu0
    %564 = vdwg.mxu0
    %v565 = vld [vmem:[%s9] sm:$0xf]
    %v566 = vld [vmem:[%s9 + $0x4] sm:$0xf]
    %v567 = vld [vmem:[%s9 + $0x8] sm:$0xf]
    %v568 = vld [vmem:[%s9 + $0xc] sm:$0xf]
    %v569 = vld [vmem:[%s9 + $0x10] sm:$0xf]
    %v570 = vld [vmem:[%s9 + $0x14] sm:$0xf]
    %v571 = vld [vmem:[%s9 + $0x18] sm:$0xf]
    %v572 = vld [vmem:[%s9 + $0x1c] sm:$0xf]
    %v573 = vlaneseq
    %v574 = vshrl.u32 %v573, 7
    %v575 = vsub.s32 2, %v574
    %v576 = vrot.slane %v317, %v575
    %v585 = vunpack.c.l.b16 %v565
    %v586 = vunpack.c.l.b16 %v566
    %v587 = vunpack.c.l.b16 %v567
    %v588 = vunpack.c.l.b16 %v568
    %v589 = vunpack.c.l.b16 %v569
    %v590 = vunpack.c.l.b16 %v570
    %v591 = vunpack.c.l.b16 %v571
    %v592 = vunpack.c.l.b16 %v572
    %v593 = vpack.c.b16 %v586, %v585
    %v594 = vpack.c.b16 %v588, %v587
    %v595 = vpack.c.b16 %v590, %v589
    %v596 = vpack.c.b16 %v592, %v591
    %601 = vmatprep.subr.bf16.mxu0 0
    %602 = vmatpush1.bf16.msra.mxu0 %v593
    %603 = vmatprep.subr.bf16.mxu0 0
    %604 = vmatpush1.bf16.msra.mxu0 %v594
    %605 = vmatprep.subr.bf16.mxu0 0
    %606 = vmatpush1.bf16.msra.mxu0 %v595
    %607 = vmatprep.subr.bf16.mxu0 0
    %608 = vmatpush1.bf16.msra.mxu0 %v596
    %609 = vmatprep.subr.bf16.mxu0 0
    %610 = vmatpush1.bf16.msra.mxu0 0
    %611 = vmatprep.subr.bf16.mxu0 0
    %612 = vmatpush1.bf16.msra.mxu0 0
    %613 = vmatprep.subr.bf16.mxu0 0
    %614 = vmatpush1.bf16.msra.mxu0 0
    %615 = vmatprep.subr.bf16.mxu0 0
    %616 = vmatpush1.bf16.msra.mxu0 0
    %617 = vmatprep.subr.bf16.mxu0 0
    %618 = vmatpush1.bf16.msra.mxu0 0
    %619 = vmatprep.subr.bf16.mxu0 0
    %620 = vmatpush1.bf16.msra.mxu0 0
    %621 = vmatprep.subr.bf16.mxu0 0
    %622 = vmatpush1.bf16.msra.mxu0 0
    %623 = vmatprep.subr.bf16.mxu0 0
    %624 = vmatpush1.bf16.msra.mxu0 0
    %625 = vmatprep.subr.bf16.mxu0 0
    %626 = vmatpush1.bf16.msra.mxu0 0
    %627 = vmatprep.subr.bf16.mxu0 0
    %628 = vmatpush1.bf16.msra.mxu0 0
    %629 = vmatprep.subr.bf16.mxu0 0
    %630 = vmatpush1.bf16.msra.mxu0 0
    %631 = vmatprep.subr.bf16.mxu0 0
    %632 = vmatpush1.bf16.msra.mxu0 0
    %633 = vmatprep.mubr.bf16.mxu0 0
    %634 = vmatmul.mubr.bf16.gmra.mrb[0].mxu0 %v426
    %v635 = vpop.f32.mrb[0].mxu0
    %v636 = vadd.f32 %v576, %v635
    %v637 = vpop.f32.mrb[0].mxu0
    %v638 = vpop.f32.mrb[0].mxu0
    %v639 = vadd.f32 %v576, %v638
    %v640 = vpop.f32.mrb[0].mxu0
    %641 = vmatprep.mubr.bf16.mxu0 0
    %642 = vmatmul.mubr.bf16.gmra.mrb[0].mxu0 %v429
    %v643 = vpop.f32.mrb[0].mxu0
    %v644 = vadd.f32 %v576, %v643
    %v645 = vpop.f32.mrb[0].mxu0
    %v646 = vpop.f32.mrb[0].mxu0
    %v647 = vadd.f32 %v576, %v646
    %v648 = vpop.f32.mrb[0].mxu0
    %649 = vdwg.mxu0
    %v650 = vmul.f32 %v466, %v126
    %v651 = vmul.f32 %v469, %v127
    %v652 = vmul.f32 %v474, %v128
    %v653 = vmul.f32 %v477, %v129
    %v654 = vmul.f32 %v466, %v130
    %v655 = vmul.f32 %v469, %v131
    %v656 = vmul.f32 %v474, %v132
    %v657 = vmul.f32 %v477, %v133
    %v658 = vmul.f32 %v466, %v134
    %v659 = vmul.f32 %v469, %v135
    %v660 = vmul.f32 %v474, %v136
    %v661 = vmul.f32 %v477, %v137
    %v662 = vmul.f32 %v466, %v138
    %v663 = vmul.f32 %v469, %v139
    %v664 = vmul.f32 %v474, %v140
    %v665 = vmul.f32 %v477, %v141
    %v666 = vpack.c.bf16 %v651, %v650
    %v667 = vpack.c.bf16 %v653, %v652
    %v668 = vpack.c.bf16 %v655, %v654
    %v669 = vpack.c.bf16 %v657, %v656
    %v670 = vpack.c.bf16 %v659, %v658
    %v671 = vpack.c.bf16 %v661, %v660
    %v672 = vpack.c.bf16 %v663, %v662
    %v673 = vpack.c.bf16 %v665, %v664
    %v674 = vpack.c.bf16 %v554, %v551
    %v675 = vpack.c.bf16 %v562, %v559
    %v677 = vsel %vm255, %v666, 0
    %v680 = vsel %vm255, %v667, 0
    %v683 = vsel %vm255, %v668, 0
    %v686 = vsel %vm255, %v669, 0
    %v689 = vsel %vm255, %v670, 0
    %v692 = vsel %vm255, %v671, 0
    %v695 = vsel %vm255, %v672, 0
    %v698 = vsel %vm255, %v673, 0
    %v701 = vsel %vm255, %v674, 0
    %v704 = vsel %vm255, %v675, 0
    %706 = vmatprep.subr.bf16.mxu0 0
    %707 = vmatpush1.bf16.xpose.msra.mxu0 %v701
    %708 = vmatprep.subr.bf16.mxu0 0
    %709 = vmatpush1.bf16.xpose.msra.mxu0 %v704
    %710 = vmatprep.subr.bf16.mxu0 0
    %711 = vmatpush1.bf16.xpose.msra.mxu0 0
    %712 = vmatprep.subr.bf16.mxu0 0
    %713 = vmatpush1.bf16.xpose.msra.mxu0 0
    %714 = vmatprep.subr.bf16.mxu0 0
    %715 = vmatpush1.bf16.xpose.msra.mxu0 0
    %716 = vmatprep.subr.bf16.mxu0 0
    %717 = vmatpush1.bf16.xpose.msra.mxu0 0
    %718 = vmatprep.subr.bf16.mxu0 0
    %719 = vmatpush1.bf16.xpose.msra.mxu0 0
    %720 = vmatprep.subr.bf16.mxu0 0
    %721 = vmatpush1.bf16.xpose.msra.mxu0 0
    %722 = vmatprep.subr.bf16.mxu0 0
    %723 = vmatpush1.bf16.xpose.msra.mxu0 0
    %724 = vmatprep.subr.bf16.mxu0 0
    %725 = vmatpush1.bf16.xpose.msra.mxu0 0
    %726 = vmatprep.subr.bf16.mxu0 0
    %727 = vmatpush1.bf16.xpose.msra.mxu0 0
    %728 = vmatprep.subr.bf16.mxu0 0
    %729 = vmatpush1.bf16.xpose.msra.mxu0 0
    %730 = vmatprep.subr.bf16.mxu0 0
    %731 = vmatpush1.bf16.xpose.msra.mxu0 0
    %732 = vmatprep.subr.bf16.mxu0 0
    %733 = vmatpush1.bf16.xpose.msra.mxu0 0
    %734 = vmatprep.subr.bf16.mxu0 0
    %735 = vmatpush1.bf16.xpose.msra.mxu0 0
    %736 = vmatprep.subr.bf16.mxu0 0
    %737 = vmatpush1.bf16.xpose.msra.mxu0 0
    %738 = vmatprep.mubr.bf16.mxu0 0
    %739 = vmatmul.mubr.bf16.gmra.mrb[0].mxu0 %v677
    %v740 = vpop.f32.mrb[0].mxu0
    %v741 = vadd.f32 0.0, %v740
    %v742 = vpop.f32.mrb[0].mxu0
    %v743 = vpop.f32.mrb[0].mxu0
    %v744 = vadd.f32 0.0, %v743
    %v745 = vpop.f32.mrb[0].mxu0
    %746 = vmatprep.mubr.bf16.mxu0 0
    %747 = vmatmul.mubr.bf16.gmra.mrb[0].mxu0 %v680
    %v748 = vpop.f32.mrb[0].mxu0
    %v749 = vadd.f32 0.0, %v748
    %v750 = vpop.f32.mrb[0].mxu0
    %v751 = vpop.f32.mrb[0].mxu0
    %v752 = vadd.f32 0.0, %v751
    %v753 = vpop.f32.mrb[0].mxu0
    %754 = vmatprep.mubr.bf16.mxu0 0
    %755 = vmatmul.mubr.bf16.gmra.mrb[0].mxu0 %v683
    %v756 = vpop.f32.mrb[0].mxu0
    %v757 = vadd.f32 0.0, %v756
    %v758 = vpop.f32.mrb[0].mxu0
    %v759 = vpop.f32.mrb[0].mxu0
    %v760 = vadd.f32 0.0, %v759
    %v761 = vpop.f32.mrb[0].mxu0
    %762 = vmatprep.mubr.bf16.mxu0 0
    %763 = vmatmul.mubr.bf16.gmra.mrb[0].mxu0 %v686
    %v764 = vpop.f32.mrb[0].mxu0
    %v765 = vadd.f32 0.0, %v764
    %v766 = vpop.f32.mrb[0].mxu0
    %v767 = vpop.f32.mrb[0].mxu0
    %v768 = vadd.f32 0.0, %v767
    %v769 = vpop.f32.mrb[0].mxu0
    %770 = vmatprep.mubr.bf16.mxu0 0
    %771 = vmatmul.mubr.bf16.gmra.mrb[0].mxu0 %v689
    %v772 = vpop.f32.mrb[0].mxu0
    %v773 = vadd.f32 0.0, %v772
    %v774 = vpop.f32.mrb[0].mxu0
    %v775 = vpop.f32.mrb[0].mxu0
    %v776 = vadd.f32 0.0, %v775
    %v777 = vpop.f32.mrb[0].mxu0
    %778 = vmatprep.mubr.bf16.mxu0 0
    %779 = vmatmul.mubr.bf16.gmra.mrb[0].mxu0 %v692
    %v780 = vpop.f32.mrb[0].mxu0
    %v781 = vadd.f32 0.0, %v780
    %v782 = vpop.f32.mrb[0].mxu0
    %v783 = vpop.f32.mrb[0].mxu0
    %v784 = vadd.f32 0.0, %v783
    %v785 = vpop.f32.mrb[0].mxu0
    %786 = vmatprep.mubr.bf16.mxu0 0
    %787 = vmatmul.mubr.bf16.gmra.mrb[0].mxu0 %v695
    %v788 = vpop.f32.mrb[0].mxu0
    %v789 = vadd.f32 0.0, %v788
    %v790 = vpop.f32.mrb[0].mxu0
    %v791 = vpop.f32.mrb[0].mxu0
    %v792 = vadd.f32 0.0, %v791
    %v793 = vpop.f32.mrb[0].mxu0
    %794 = vmatprep.mubr.bf16.mxu0 0
    %795 = vmatmul.mubr.bf16.gmra.mrb[0].mxu0 %v698
    %v796 = vpop.f32.mrb[0].mxu0
    %v797 = vadd.f32 0.0, %v796
    %v798 = vpop.f32.mrb[0].mxu0
    %v799 = vpop.f32.mrb[0].mxu0
    %v800 = vadd.f32 0.0, %v799
    %v801 = vpop.f32.mrb[0].mxu0
    %802 = vdwg.mxu0
    %v803 = vmul.f32 %v741, 0.25
    %v804 = vmul.f32 %v744, 0.25
    %v805 = vmul.f32 %v749, 0.25
    %v806 = vmul.f32 %v752, 0.25
    %v807 = vmul.f32 %v757, 0.25
    %v808 = vmul.f32 %v760, 0.25
    %v809 = vmul.f32 %v765, 0.25
    %v810 = vmul.f32 %v768, 0.25
    %v811 = vmul.f32 %v773, 0.25
    %v812 = vmul.f32 %v776, 0.25
    %v813 = vmul.f32 %v781, 0.25
    %v814 = vmul.f32 %v784, 0.25
    %v815 = vmul.f32 %v789, 0.25
    %v816 = vmul.f32 %v792, 0.25
    %v817 = vmul.f32 %v797, 0.25
    %v818 = vmul.f32 %v800, 0.25
    %v819 = vadd.f32 %v803, %v190
    %v820 = vadd.f32 %v804, %v191
    %v821 = vadd.f32 %v805, %v192
    %v822 = vadd.f32 %v806, %v193
    %v823 = vadd.f32 %v807, %v194
    %v824 = vadd.f32 %v808, %v195
    %v825 = vadd.f32 %v809, %v196
    %v826 = vadd.f32 %v810, %v197
    %v827 = vadd.f32 %v811, %v198
    %v828 = vadd.f32 %v812, %v199
    %v829 = vadd.f32 %v813, %v200
    %v830 = vadd.f32 %v814, %v201
    %v831 = vadd.f32 %v815, %v202
    %v832 = vadd.f32 %v816, %v203
    %v833 = vadd.f32 %v817, %v204
    %v834 = vadd.f32 %v818, %v205
    %vm835 = vcmask 261120
    %v836 = vsel %vm835, %v819, -inf
    %837 = vmax.xlane.f32.xlu0 %v836
    %v838 = vpop.xlane.xlu0 %837
    %v839 = vsel %vm835, %v820, -inf
    %840 = vmax.xlane.f32.xlu0 %v839
    %v841 = vpop.xlane.xlu0 %840
    %v842 = vsel %vm835, %v821, -inf
    %843 = vmax.xlane.f32.xlu0 %v842
    %v844 = vpop.xlane.xlu0 %843
    %v845 = vsel %vm835, %v822, -inf
    %846 = vmax.xlane.f32.xlu0 %v845
    %v847 = vpop.xlane.xlu0 %846
    %v848 = vsel %vm835, %v823, -inf
    %849 = vmax.xlane.f32.xlu0 %v848
    %v850 = vpop.xlane.xlu0 %849
    %v851 = vsel %vm835, %v824, -inf
    %852 = vmax.xlane.f32.xlu0 %v851
    %v853 = vpop.xlane.xlu0 %852
    %v854 = vsel %vm835, %v825, -inf
    %855 = vmax.xlane.f32.xlu0 %v854
    %v856 = vpop.xlane.xlu0 %855
    %v857 = vsel %vm835, %v826, -inf
    %858 = vmax.xlane.f32.xlu0 %v857
    %v859 = vpop.xlane.xlu0 %858
    %v860 = vsel %vm835, %v827, -inf
    %861 = vmax.xlane.f32.xlu0 %v860
    %v862 = vpop.xlane.xlu0 %861
    %v863 = vsel %vm835, %v828, -inf
    %864 = vmax.xlane.f32.xlu0 %v863
    %v865 = vpop.xlane.xlu0 %864
    %v866 = vsel %vm835, %v829, -inf
    %867 = vmax.xlane.f32.xlu0 %v866
    %v868 = vpop.xlane.xlu0 %867
    %v869 = vsel %vm835, %v830, -inf
    %870 = vmax.xlane.f32.xlu0 %v869
    %v871 = vpop.xlane.xlu0 %870
    %v872 = vsel %vm835, %v831, -inf
    %873 = vmax.xlane.f32.xlu0 %v872
    %v874 = vpop.xlane.xlu0 %873
    %v875 = vsel %vm835, %v832, -inf
    %876 = vmax.xlane.f32.xlu0 %v875
    %v877 = vpop.xlane.xlu0 %876
    %v878 = vsel %vm835, %v833, -inf
    %879 = vmax.xlane.f32.xlu0 %v878
    %v880 = vpop.xlane.xlu0 %879
    %v881 = vsel %vm835, %v834, -inf
    %882 = vmax.xlane.f32.xlu0 %v881
    %v883 = vpop.xlane.xlu0 %882
    %v884 = vsub.f32 %v819, %v838
    %v885 = vsub.f32 %v820, %v841
    %v886 = vsub.f32 %v821, %v844
    %v887 = vsub.f32 %v822, %v847
    %v888 = vsub.f32 %v823, %v850
    %v889 = vsub.f32 %v824, %v853
    %v890 = vsub.f32 %v825, %v856
    %v891 = vsub.f32 %v826, %v859
    %v892 = vsub.f32 %v827, %v862
    %v893 = vsub.f32 %v828, %v865
    %v894 = vsub.f32 %v829, %v868
    %v895 = vsub.f32 %v830, %v871
    %v896 = vsub.f32 %v831, %v874
    %v897 = vsub.f32 %v832, %v877
    %v898 = vsub.f32 %v833, %v880
    %v899 = vsub.f32 %v834, %v883
    %v900 = vmul.f32 %v884, 1.442695
    %v901 = vpow.pop %v900
    %v902 = vmul.f32 %v885, 1.442695
    %v903 = vpow.pop %v902
    %v904 = vmul.f32 %v886, 1.442695
    %v905 = vpow.pop %v904
    %v906 = vmul.f32 %v887, 1.442695
    %v907 = vpow.pop %v906
    %v908 = vmul.f32 %v888, 1.442695
    %v909 = vpow.pop %v908
    %v910 = vmul.f32 %v889, 1.442695
    %v911 = vpow.pop %v910
    %v912 = vmul.f32 %v890, 1.442695
    %v913 = vpow.pop %v912
    %v914 = vmul.f32 %v891, 1.442695
    %v915 = vpow.pop %v914
    %v916 = vmul.f32 %v892, 1.442695
    %v917 = vpow.pop %v916
    %v918 = vmul.f32 %v893, 1.442695
    %v919 = vpow.pop %v918
    %v920 = vmul.f32 %v894, 1.442695
    %v921 = vpow.pop %v920
    %v922 = vmul.f32 %v895, 1.442695
    %v923 = vpow.pop %v922
    %v924 = vmul.f32 %v896, 1.442695
    %v925 = vpow.pop %v924
    %v926 = vmul.f32 %v897, 1.442695
    %v927 = vpow.pop %v926
    %v928 = vmul.f32 %v898, 1.442695
    %v929 = vpow.pop %v928
    %v930 = vmul.f32 %v899, 1.442695
    %v931 = vpow.pop %v930
    %v932 = vsel %vm835, %v901, 0.0
    %933 = vadd.xlane.f32.xlu0 %v932
    %v934 = vpop.xlane.xlu0 %933
    %v935 = vsel %vm835, %v903, 0.0
    %936 = vadd.xlane.f32.xlu0 %v935
    %v937 = vpop.xlane.xlu0 %936
    %v938 = vsel %vm835, %v905, 0.0
    %939 = vadd.xlane.f32.xlu0 %v938
    %v940 = vpop.xlane.xlu0 %939
    %v941 = vsel %vm835, %v907, 0.0
    %942 = vadd.xlane.f32.xlu0 %v941
    %v943 = vpop.xlane.xlu0 %942
    %v944 = vsel %vm835, %v909, 0.0
    %945 = vadd.xlane.f32.xlu0 %v944
    %v946 = vpop.xlane.xlu0 %945
    %v947 = vsel %vm835, %v911, 0.0
    %948 = vadd.xlane.f32.xlu0 %v947
    %v949 = vpop.xlane.xlu0 %948
    %v950 = vsel %vm835, %v913, 0.0
    %951 = vadd.xlane.f32.xlu0 %v950
    %v952 = vpop.xlane.xlu0 %951
    %v953 = vsel %vm835, %v915, 0.0
    %954 = vadd.xlane.f32.xlu0 %v953
    %v955 = vpop.xlane.xlu0 %954
    %v956 = vsel %vm835, %v917, 0.0
    %957 = vadd.xlane.f32.xlu0 %v956
    %v958 = vpop.xlane.xlu0 %957
    %v959 = vsel %vm835, %v919, 0.0
    %960 = vadd.xlane.f32.xlu0 %v959
    %v961 = vpop.xlane.xlu0 %960
    %v962 = vsel %vm835, %v921, 0.0
    %963 = vadd.xlane.f32.xlu0 %v962
    %v964 = vpop.xlane.xlu0 %963
    %v965 = vsel %vm835, %v923, 0.0
    %966 = vadd.xlane.f32.xlu0 %v965
    %v967 = vpop.xlane.xlu0 %966
    %v968 = vsel %vm835, %v925, 0.0
    %969 = vadd.xlane.f32.xlu0 %v968
    %v970 = vpop.xlane.xlu0 %969
    %v971 = vsel %vm835, %v927, 0.0
    %972 = vadd.xlane.f32.xlu0 %v971
    %v973 = vpop.xlane.xlu0 %972
    %v974 = vsel %vm835, %v929, 0.0
    %975 = vadd.xlane.f32.xlu0 %v974
    %v976 = vpop.xlane.xlu0 %975
    %v977 = vsel %vm835, %v931, 0.0
    %978 = vadd.xlane.f32.xlu0 %v977
    %v979 = vpop.xlane.xlu0 %978
    %v980 = vrcp.pop %v934
    %v981 = vrcp.pop %v937
    %v982 = vrcp.pop %v940
    %v983 = vrcp.pop %v943
    %v984 = vrcp.pop %v946
    %v985 = vrcp.pop %v949
    %v986 = vrcp.pop %v952
    %v987 = vrcp.pop %v955
    %v988 = vrcp.pop %v958
    %v989 = vrcp.pop %v961
    %v990 = vrcp.pop %v964
    %v991 = vrcp.pop %v967
    %v992 = vrcp.pop %v970
    %v993 = vrcp.pop %v973
    %v994 = vrcp.pop %v976
    %v995 = vrcp.pop %v979
    %v996 = vmul.f32 %v901, %v980
    %v997 = vmul.f32 %v903, %v981
    %v998 = vmul.f32 %v905, %v982
    %v999 = vmul.f32 %v907, %v983
    %v1000 = vmul.f32 %v909, %v984
    %v1001 = vmul.f32 %v911, %v985
    %v1002 = vmul.f32 %v913, %v986
    %v1003 = vmul.f32 %v915, %v987
    %v1004 = vmul.f32 %v917, %v988
    %v1005 = vmul.f32 %v919, %v989
    %v1006 = vmul.f32 %v921, %v990
    %v1007 = vmul.f32 %v923, %v991
    %v1008 = vmul.f32 %v925, %v992
    %v1009 = vmul.f32 %v927, %v993
    %v1010 = vmul.f32 %v929, %v994
    %v1011 = vmul.f32 %v931, %v995
    %v1012 = vpack.c.bf16 %v997, %v996
    %v1013 = vpack.c.bf16 %v999, %v998
    %v1014 = vpack.c.bf16 %v1001, %v1000
    %v1015 = vpack.c.bf16 %v1003, %v1002
    %v1016 = vpack.c.bf16 %v1005, %v1004
    %v1017 = vpack.c.bf16 %v1007, %v1006
    %v1018 = vpack.c.bf16 %v1009, %v1008
    %v1019 = vpack.c.bf16 %v1011, %v1010
    %v1020 = vpack.c.bf16 %v639, %v636
    %v1021 = vpack.c.bf16 %v647, %v644
    %v1023 = vsel %vm835, %v1012, 0
    %v1026 = vsel %vm835, %v1013, 0
    %v1029 = vsel %vm835, %v1014, 0
    %v1032 = vsel %vm835, %v1015, 0
    %v1035 = vsel %vm835, %v1016, 0
    %v1038 = vsel %vm835, %v1017, 0
    %v1041 = vsel %vm835, %v1018, 0
    %v1044 = vsel %vm835, %v1019, 0
    %1046 = vmatprep.subr.bf16.mxu0 0
    %1047 = vmatpush1.bf16.msra.mxu0 %v1020
    %1048 = vmatprep.subr.bf16.mxu0 0
    %1049 = vmatpush1.bf16.msra.mxu0 %v1021
    %1050 = vmatprep.subr.bf16.mxu0 0
    %1051 = vmatpush1.bf16.msra.mxu0 0
    %1052 = vmatprep.subr.bf16.mxu0 0
    %1053 = vmatpush1.bf16.msra.mxu0 0
    %1054 = vmatprep.subr.bf16.mxu0 0
    %1055 = vmatpush1.bf16.msra.mxu0 0
    %1056 = vmatprep.subr.bf16.mxu0 0
    %1057 = vmatpush1.bf16.msra.mxu0 0
    %1058 = vmatprep.subr.bf16.mxu0 0
    %1059 = vmatpush1.bf16.msra.mxu0 0
    %1060 = vmatprep.subr.bf16.mxu0 0
    %1061 = vmatpush1.bf16.msra.mxu0 0
    %1062 = vmatprep.subr.bf16.mxu0 0
    %1063 = vmatpush1.bf16.msra.mxu0 0
    %1064 = vmatprep.subr.bf16.mxu0 0
    %1065 = vmatpush1.bf16.msra.mxu0 0
    %1066 = vmatprep.subr.bf16.mxu0 0
    %1067 = vmatpush1.bf16.msra.mxu0 0
    %1068 = vmatprep.subr.bf16.mxu0 0
    %1069 = vmatpush1.bf16.msra.mxu0 0
    %1070 = vmatprep.subr.bf16.mxu0 0
    %1071 = vmatpush1.bf16.msra.mxu0 0
    %1072 = vmatprep.subr.bf16.mxu0 0
    %1073 = vmatpush1.bf16.msra.mxu0 0
    %1074 = vmatprep.subr.bf16.mxu0 0
    %1075 = vmatpush1.bf16.msra.mxu0 0
    %1076 = vmatprep.subr.bf16.mxu0 0
    %1077 = vmatpush1.bf16.msra.mxu0 0
    %1078 = vmatprep.mubr.bf16.mxu0 0
    %1079 = vmatmul.mubr.bf16.gmra.mrb[0].mxu0 %v1023
    %v1080 = vpop.f32.mrb[0].mxu0
    %v1081 = vadd.f32 0.0, %v1080
    %v1082 = vpop.f32.mrb[0].mxu0
    %v1083 = vpop.f32.mrb[0].mxu0
    %v1084 = vadd.f32 0.0, %v1083
    %v1085 = vpop.f32.mrb[0].mxu0
    %1086 = vmatprep.mubr.bf16.mxu0 0
    %1087 = vmatmul.mubr.bf16.gmra.mrb[0].mxu0 %v1026
    %v1088 = vpop.f32.mrb[0].mxu0
    %v1089 = vadd.f32 0.0, %v1088
    %v1090 = vpop.f32.mrb[0].mxu0
    %v1091 = vpop.f32.mrb[0].mxu0
    %v1092 = vadd.f32 0.0, %v1091
    %v1093 = vpop.f32.mrb[0].mxu0
    %1094 = vmatprep.mubr.bf16.mxu0 0
    %1095 = vmatmul.mubr.bf16.gmra.mrb[0].mxu0 %v1029
    %v1096 = vpop.f32.mrb[0].mxu0
    %v1097 = vadd.f32 0.0, %v1096
    %v1098 = vpop.f32.mrb[0].mxu0
    %v1099 = vpop.f32.mrb[0].mxu0
    %v1100 = vadd.f32 0.0, %v1099
    %v1101 = vpop.f32.mrb[0].mxu0
    %1102 = vmatprep.mubr.bf16.mxu0 0
    %1103 = vmatmul.mubr.bf16.gmra.mrb[0].mxu0 %v1032
    %v1104 = vpop.f32.mrb[0].mxu0
    %v1105 = vadd.f32 0.0, %v1104
    %v1106 = vpop.f32.mrb[0].mxu0
    %v1107 = vpop.f32.mrb[0].mxu0
    %v1108 = vadd.f32 0.0, %v1107
    %v1109 = vpop.f32.mrb[0].mxu0
    %1110 = vmatprep.mubr.bf16.mxu0 0
    %1111 = vmatmul.mubr.bf16.gmra.mrb[0].mxu0 %v1035
    %v1112 = vpop.f32.mrb[0].mxu0
    %v1113 = vadd.f32 0.0, %v1112
    %v1114 = vpop.f32.mrb[0].mxu0
    %v1115 = vpop.f32.mrb[0].mxu0
    %v1116 = vadd.f32 0.0, %v1115
    %v1117 = vpop.f32.mrb[0].mxu0
    %1118 = vmatprep.mubr.bf16.mxu0 0
    %1119 = vmatmul.mubr.bf16.gmra.mrb[0].mxu0 %v1038
    %v1120 = vpop.f32.mrb[0].mxu0
    %v1121 = vadd.f32 0.0, %v1120
    %v1122 = vpop.f32.mrb[0].mxu0
    %v1123 = vpop.f32.mrb[0].mxu0
    %v1124 = vadd.f32 0.0, %v1123
    %v1125 = vpop.f32.mrb[0].mxu0
    %1126 = vmatprep.mubr.bf16.mxu0 0
    %1127 = vmatmul.mubr.bf16.gmra.mrb[0].mxu0 %v1041
    %v1128 = vpop.f32.mrb[0].mxu0
    %v1129 = vadd.f32 0.0, %v1128
    %v1130 = vpop.f32.mrb[0].mxu0
    %v1131 = vpop.f32.mrb[0].mxu0
    %v1132 = vadd.f32 0.0, %v1131
    %v1133 = vpop.f32.mrb[0].mxu0
    %1134 = vmatprep.mubr.bf16.mxu0 0
    %1135 = vmatmul.mubr.bf16.gmra.mrb[0].mxu0 %v1044
    %v1136 = vpop.f32.mrb[0].mxu0
    %v1137 = vadd.f32 0.0, %v1136
    %v1138 = vpop.f32.mrb[0].mxu0
    %v1139 = vpop.f32.mrb[0].mxu0
    %v1140 = vadd.f32 0.0, %v1139
    %v1141 = vpop.f32.mrb[0].mxu0
    %1142 = vdwg.mxu0
    %v1143 = vmul.f32 %v1081, %v126
    %v1144 = vmul.f32 %v1084, %v127
    %v1145 = vmul.f32 %v1089, %v128
    %v1146 = vmul.f32 %v1092, %v129
    %v1147 = vmul.f32 %v1097, %v130
    %v1148 = vmul.f32 %v1100, %v131
    %v1149 = vmul.f32 %v1105, %v132
    %v1150 = vmul.f32 %v1108, %v133
    %v1151 = vmul.f32 %v1113, %v134
    %v1152 = vmul.f32 %v1116, %v135
    %v1153 = vmul.f32 %v1121, %v136
    %v1154 = vmul.f32 %v1124, %v137
    %v1155 = vmul.f32 %v1129, %v138
    %v1156 = vmul.f32 %v1132, %v139
    %v1157 = vmul.f32 %v1137, %v140
    %v1158 = vmul.f32 %v1140, %v141
    %v1159 = vsel %vm255, %v1143, 0.0
    %v1160 = vsel %vm255, %v1147, 0.0
    %v1161 = vadd.f32 %v1159, %v1160
    %v1162 = vsel %vm255, %v1151, 0.0
    %v1163 = vadd.f32 %v1161, %v1162
    %v1164 = vsel %vm255, %v1155, 0.0
    %v1165 = vadd.f32 %v1163, %v1164
    %v1166 = vsel %vm255, %v1144, 0.0
    %v1167 = vsel %vm255, %v1148, 0.0
    %v1168 = vadd.f32 %v1166, %v1167
    %v1169 = vsel %vm255, %v1152, 0.0
    %v1170 = vadd.f32 %v1168, %v1169
    %v1171 = vsel %vm255, %v1156, 0.0
    %v1172 = vadd.f32 %v1170, %v1171
    %v1173 = vsel %vm255, %v1145, 0.0
    %v1174 = vsel %vm255, %v1149, 0.0
    %v1175 = vadd.f32 %v1173, %v1174
    %v1176 = vsel %vm255, %v1153, 0.0
    %v1177 = vadd.f32 %v1175, %v1176
    %v1178 = vsel %vm255, %v1157, 0.0
    %v1179 = vadd.f32 %v1177, %v1178
    %v1180 = vsel %vm255, %v1146, 0.0
    %v1181 = vsel %vm255, %v1150, 0.0
    %v1182 = vadd.f32 %v1180, %v1181
    %v1183 = vsel %vm255, %v1154, 0.0
    %v1184 = vadd.f32 %v1182, %v1183
    %v1185 = vsel %vm255, %v1158, 0.0
    %v1186 = vadd.f32 %v1184, %v1185
    %v1187 = vld [vmem:[%s11] sm:$0xf]
    %v1188 = vld [vmem:[%s11 + $0x4] sm:$0xf]
    %v1189 = vld [vmem:[%s11 + $0x8] sm:$0xf]
    %v1190 = vld [vmem:[%s11 + $0xc] sm:$0xf]
    %v1191 = vld [vmem:[%s11 + $0x10] sm:$0xf]
    %v1192 = vld [vmem:[%s11 + $0x14] sm:$0xf]
    %v1193 = vld [vmem:[%s11 + $0x18] sm:$0xf]
    %v1194 = vld [vmem:[%s11 + $0x1c] sm:$0xf]
    %v1195 = vpack.c.bf16 %v1172, %v1165
    %v1196 = vpack.c.bf16 %v1186, %v1179
    %v1205 = vunpack.c.l.b16 %v1187
    %v1206 = vunpack.c.l.b16 %v1188
    %v1207 = vunpack.c.l.b16 %v1189
    %v1208 = vunpack.c.l.b16 %v1190
    %v1209 = vunpack.c.l.b16 %v1191
    %v1210 = vunpack.c.l.b16 %v1192
    %v1211 = vunpack.c.l.b16 %v1193
    %v1212 = vunpack.c.l.b16 %v1194
    %v1213 = vpack.c.b16 %v1206, %v1205
    %v1214 = vpack.c.b16 %v1208, %v1207
    %v1215 = vpack.c.b16 %v1210, %v1209
    %v1216 = vpack.c.b16 %v1212, %v1211
    %v1222 = vsel %vm255, %v1195, 0
    %v1225 = vsel %vm255, %v1196, 0
    %1227 = vmatprep.subr.bf16.mxu0 0
    %1228 = vmatpush1.bf16.msra.mxu0 %v1213
    %1229 = vmatprep.subr.bf16.mxu0 0
    %1230 = vmatpush1.bf16.msra.mxu0 %v1214
    %1231 = vmatprep.subr.bf16.mxu0 0
    %1232 = vmatpush1.bf16.msra.mxu0 %v1215
    %1233 = vmatprep.subr.bf16.mxu0 0
    %1234 = vmatpush1.bf16.msra.mxu0 %v1216
    %1235 = vmatprep.subr.bf16.mxu0 0
    %1236 = vmatpush1.bf16.msra.mxu0 0
    %1237 = vmatprep.subr.bf16.mxu0 0
    %1238 = vmatpush1.bf16.msra.mxu0 0
    %1239 = vmatprep.subr.bf16.mxu0 0
    %1240 = vmatpush1.bf16.msra.mxu0 0
    %1241 = vmatprep.subr.bf16.mxu0 0
    %1242 = vmatpush1.bf16.msra.mxu0 0
    %1243 = vmatprep.subr.bf16.mxu0 0
    %1244 = vmatpush1.bf16.msra.mxu0 0
    %1245 = vmatprep.subr.bf16.mxu0 0
    %1246 = vmatpush1.bf16.msra.mxu0 0
    %1247 = vmatprep.subr.bf16.mxu0 0
    %1248 = vmatpush1.bf16.msra.mxu0 0
    %1249 = vmatprep.subr.bf16.mxu0 0
    %1250 = vmatpush1.bf16.msra.mxu0 0
    %1251 = vmatprep.subr.bf16.mxu0 0
    %1252 = vmatpush1.bf16.msra.mxu0 0
    %1253 = vmatprep.subr.bf16.mxu0 0
    %1254 = vmatpush1.bf16.msra.mxu0 0
    %1255 = vmatprep.subr.bf16.mxu0 0
    %1256 = vmatpush1.bf16.msra.mxu0 0
    %1257 = vmatprep.subr.bf16.mxu0 0
    %1258 = vmatpush1.bf16.msra.mxu0 0
    %1259 = vmatprep.mubr.bf16.mxu0 0
    %1260 = vmatmul.mubr.bf16.gmra.mrb[0].mxu0 %v1222
    %v1261 = vpop.f32.mrb[0].mxu0
    %v1262 = vadd.f32 0.0, %v1261
    %v1263 = vpop.f32.mrb[0].mxu0
    %v1264 = vpop.f32.mrb[0].mxu0
    %v1265 = vadd.f32 0.0, %v1264
    %v1266 = vpop.f32.mrb[0].mxu0
    %1267 = vmatprep.mubr.bf16.mxu0 0
    %1268 = vmatmul.mubr.bf16.gmra.mrb[0].mxu0 %v1225
    %v1269 = vpop.f32.mrb[0].mxu0
    %v1270 = vadd.f32 0.0, %v1269
    %v1271 = vpop.f32.mrb[0].mxu0
    %v1272 = vpop.f32.mrb[0].mxu0
    %v1273 = vadd.f32 0.0, %v1272
    %v1274 = vpop.f32.mrb[0].mxu0
    %1275 = vdwg.mxu0
    %v1276 = vadd.f32 %v311, %v1262
    %v1277 = vadd.f32 %v312, %v1265
    %v1278 = vadd.f32 %v313, %v1270
    %v1279 = vadd.f32 %v314, %v1273
    %v1280 = vld [vmem:[%s12] sm:$0x1]
    %v1282 = vlaneseq
    %v1283 = vshrl.u32 %v1282, 7
    %v1284 = vsub.s32 0, %v1283
    %v1285 = vrot.slane %v1280, %v1284
    %v1287 = vadd.f32 %v1276, %v1285
    %v1288 = vadd.f32 %v1277, %v1285
    %v1289 = vadd.f32 %v1278, %v1285
    %v1290 = vadd.f32 %v1279, %v1285
    %v1291 = vsel %vm255, %v1287, 0.0
    %1292 = vadd.xlane.f32.xlu0 %v1291
    %v1293 = vpop.xlane.xlu0 %1292
    %v1294 = vsel %vm255, %v1288, 0.0
    %1295 = vadd.xlane.f32.xlu0 %v1294
    %v1296 = vpop.xlane.xlu0 %1295
    %v1297 = vsel %vm255, %v1289, 0.0
    %1298 = vadd.xlane.f32.xlu0 %v1297
    %v1299 = vpop.xlane.xlu0 %1298
    %v1300 = vsel %vm255, %v1290, 0.0
    %1301 = vadd.xlane.f32.xlu0 %v1300
    %v1302 = vpop.xlane.xlu0 %1301
    %v1303 = vmul.f32 %v1293, %v330
    %v1304 = vmul.f32 %v1296, %v330
    %v1305 = vmul.f32 %v1299, %v330
    %v1306 = vmul.f32 %v1302, %v330
    %v1307 = vsub.f32 %v1287, %v1303
    %v1308 = vsub.f32 %v1288, %v1304
    %v1309 = vsub.f32 %v1289, %v1305
    %v1310 = vsub.f32 %v1290, %v1306
    %v1311 = vmul.f32 %v1307, %v1307
    %v1312 = vmul.f32 %v1308, %v1308
    %v1313 = vmul.f32 %v1309, %v1309
    %v1314 = vmul.f32 %v1310, %v1310
    %v1315 = vsel %vm255, %v1311, 0.0
    %1316 = vadd.xlane.f32.xlu0 %v1315
    %v1317 = vpop.xlane.xlu0 %1316
    %v1318 = vsel %vm255, %v1312, 0.0
    %1319 = vadd.xlane.f32.xlu0 %v1318
    %v1320 = vpop.xlane.xlu0 %1319
    %v1321 = vsel %vm255, %v1313, 0.0
    %1322 = vadd.xlane.f32.xlu0 %v1321
    %v1323 = vpop.xlane.xlu0 %1322
    %v1324 = vsel %vm255, %v1314, 0.0
    %1325 = vadd.xlane.f32.xlu0 %v1324
    %v1326 = vpop.xlane.xlu0 %1325
    %v1327 = vmul.f32 %v1317, %v330
    %v1328 = vmul.f32 %v1320, %v330
    %v1329 = vmul.f32 %v1323, %v330
    %v1330 = vmul.f32 %v1326, %v330
    %v1331 = vadd.f32 %v1327, 1e-05
    %v1332 = vadd.f32 %v1328, 1e-05
    %v1333 = vadd.f32 %v1329, 1e-05
    %v1334 = vadd.f32 %v1330, 1e-05
    %v1335 = vrsqrt.pop %v1331
    %v1336 = vrsqrt.pop %v1332
    %v1337 = vrsqrt.pop %v1333
    %v1338 = vrsqrt.pop %v1334
    %v1339 = vmul.f32 %v1307, %v1335
    %v1340 = vmul.f32 %v1308, %v1336
    %v1341 = vmul.f32 %v1309, %v1337
    %v1342 = vmul.f32 %v1310, %v1338
    %v1343 = vlaneseq
    %v1344 = vshrl.u32 %v1343, 7
    %v1345 = vsub.s32 1, %v1344
    %v1346 = vrot.slane %v315, %v1345
    %v1347 = vmul.f32 %v1339, %v1346
    %v1348 = vmul.f32 %v1340, %v1346
    %v1349 = vmul.f32 %v1341, %v1346
    %v1350 = vmul.f32 %v1342, %v1346
    %v1351 = vlaneseq
    %v1352 = vshrl.u32 %v1351, 7
    %v1353 = vsub.s32 1, %v1352
    %v1354 = vrot.slane %v316, %v1353
    %v1355 = vadd.f32 %v1347, %v1354
    %v1356 = vadd.f32 %v1348, %v1354
    %v1357 = vadd.f32 %v1349, %v1354
    %v1358 = vadd.f32 %v1350, %v1354
    %v1359 = vld [vmem:[%s13] sm:$0xf]
    %v1360 = vld [vmem:[%s13 + $0x4] sm:$0xf]
    %v1361 = vld [vmem:[%s13 + $0x8] sm:$0xf]
    %v1362 = vld [vmem:[%s13 + $0xc] sm:$0xf]
    %v1363 = vld [vmem:[%s13 + $0x10] sm:$0xf]
    %v1364 = vld [vmem:[%s13 + $0x14] sm:$0xf]
    %v1365 = vld [vmem:[%s13 + $0x18] sm:$0xf]
    %v1366 = vld [vmem:[%s13 + $0x1c] sm:$0xf]
    %v1367 = vpack.c.bf16 %v1356, %v1355
    %v1368 = vpack.c.bf16 %v1358, %v1357
    %v1369 = vld [vmem:[%s14] sm:$0x1]
    %v1371 = vlaneseq
    %v1372 = vshrl.u32 %v1371, 7
    %v1373 = vsub.s32 0, %v1372
    %v1374 = vrot.slane %v1369, %v1373
    %v1384 = vunpack.c.l.b16 %v1359
    %v1385 = vunpack.c.l.b16 %v1360
    %v1386 = vunpack.c.l.b16 %v1361
    %v1387 = vunpack.c.l.b16 %v1362
    %v1388 = vunpack.c.l.b16 %v1363
    %v1389 = vunpack.c.l.b16 %v1364
    %v1390 = vunpack.c.l.b16 %v1365
    %v1391 = vunpack.c.l.b16 %v1366
    %v1392 = vpack.c.b16 %v1385, %v1384
    %v1393 = vpack.c.b16 %v1387, %v1386
    %v1394 = vpack.c.b16 %v1389, %v1388
    %v1395 = vpack.c.b16 %v1391, %v1390
    %v1401 = vsel %vm255, %v1367, 0
    %v1404 = vsel %vm255, %v1368, 0
    %1406 = vmatprep.subr.bf16.mxu0 0
    %1407 = vmatpush1.bf16.msra.mxu0 %v1392
    %1408 = vmatprep.subr.bf16.mxu0 0
    %1409 = vmatpush1.bf16.msra.mxu0 %v1393
    %1410 = vmatprep.subr.bf16.mxu0 0
    %1411 = vmatpush1.bf16.msra.mxu0 %v1394
    %1412 = vmatprep.subr.bf16.mxu0 0
    %1413 = vmatpush1.bf16.msra.mxu0 %v1395
    %1414 = vmatprep.subr.bf16.mxu0 0
    %1415 = vmatpush1.bf16.msra.mxu0 0
    %1416 = vmatprep.subr.bf16.mxu0 0
    %1417 = vmatpush1.bf16.msra.mxu0 0
    %1418 = vmatprep.subr.bf16.mxu0 0
    %1419 = vmatpush1.bf16.msra.mxu0 0
    %1420 = vmatprep.subr.bf16.mxu0 0
    %1421 = vmatpush1.bf16.msra.mxu0 0
    %1422 = vmatprep.subr.bf16.mxu0 0
    %1423 = vmatpush1.bf16.msra.mxu0 0
    %1424 = vmatprep.subr.bf16.mxu0 0
    %1425 = vmatpush1.bf16.msra.mxu0 0
    %1426 = vmatprep.subr.bf16.mxu0 0
    %1427 = vmatpush1.bf16.msra.mxu0 0
    %1428 = vmatprep.subr.bf16.mxu0 0
    %1429 = vmatpush1.bf16.msra.mxu0 0
    %1430 = vmatprep.subr.bf16.mxu0 0
    %1431 = vmatpush1.bf16.msra.mxu0 0
    %1432 = vmatprep.subr.bf16.mxu0 0
    %1433 = vmatpush1.bf16.msra.mxu0 0
    %1434 = vmatprep.subr.bf16.mxu0 0
    %1435 = vmatpush1.bf16.msra.mxu0 0
    %1436 = vmatprep.subr.bf16.mxu0 0
    %1437 = vmatpush1.bf16.msra.mxu0 0
    %1438 = vmatprep.mubr.bf16.mxu0 0
    %1439 = vmatmul.mubr.bf16.gmra.mrb[0].mxu0 %v1401
    %v1440 = vpop.f32.mrb[0].mxu0
    %v1441 = vadd.f32 %v1374, %v1440
    %v1442 = vpop.f32.mrb[0].mxu0
    %v1443 = vpop.f32.mrb[0].mxu0
    %v1444 = vadd.f32 %v1374, %v1443
    %v1445 = vpop.f32.mrb[0].mxu0
    %1446 = vmatprep.mubr.bf16.mxu0 0
    %1447 = vmatmul.mubr.bf16.gmra.mrb[0].mxu0 %v1404
    %v1448 = vpop.f32.mrb[0].mxu0
    %v1449 = vadd.f32 %v1374, %v1448
    %v1450 = vpop.f32.mrb[0].mxu0
    %v1451 = vpop.f32.mrb[0].mxu0
    %v1452 = vadd.f32 %v1374, %v1451
    %v1453 = vpop.f32.mrb[0].mxu0
    %1454 = vdwg.mxu0
    %v1455 = vmul.f32 %v1441, %v1441
    %v1456 = vmul.f32 %v1444, %v1444
    %v1457 = vmul.f32 %v1449, %v1449
    %v1458 = vmul.f32 %v1452, %v1452
    %v1459 = vmul.f32 %v1441, %v1455
    %v1460 = vmul.f32 %v1444, %v1456
    %v1461 = vmul.f32 %v1449, %v1457
    %v1462 = vmul.f32 %v1452, %v1458
    %v1463 = vmul.f32 %v1459, 0.044715
    %v1464 = vmul.f32 %v1460, 0.044715
    %v1465 = vmul.f32 %v1461, 0.044715
    %v1466 = vmul.f32 %v1462, 0.044715
    %v1467 = vadd.f32 %v1441, %v1463
    %v1468 = vadd.f32 %v1444, %v1464
    %v1469 = vadd.f32 %v1449, %v1465
    %v1470 = vadd.f32 %v1452, %v1466
    %v1471 = vmul.f32 %v1467, 0.7978846
    %v1472 = vmul.f32 %v1468, 0.7978846
    %v1473 = vmul.f32 %v1469, 0.7978846
    %v1474 = vmul.f32 %v1470, 0.7978846
    %v1475 = vtanh.pop %v1471
    %v1476 = vtanh.pop %v1472
    %v1477 = vtanh.pop %v1473
    %v1478 = vtanh.pop %v1474
    %v1479 = vadd.f32 %v1475, 1.0
    %v1480 = vadd.f32 %v1476, 1.0
    %v1481 = vadd.f32 %v1477, 1.0
    %v1482 = vadd.f32 %v1478, 1.0
    %v1483 = vmul.f32 %v1479, 0.5
    %v1484 = vmul.f32 %v1480, 0.5
    %v1485 = vmul.f32 %v1481, 0.5
    %v1486 = vmul.f32 %v1482, 0.5
    %v1487 = vmul.f32 %v1441, %v1483
    %v1488 = vmul.f32 %v1444, %v1484
    %v1489 = vmul.f32 %v1449, %v1485
    %v1490 = vmul.f32 %v1452, %v1486
    %v1491 = vld [vmem:[%s15] sm:$0xf]
    %v1492 = vld [vmem:[%s15 + $0x4] sm:$0xf]
    %v1493 = vld [vmem:[%s15 + $0x8] sm:$0xf]
    %v1494 = vld [vmem:[%s15 + $0xc] sm:$0xf]
    %v1495 = vld [vmem:[%s15 + $0x10] sm:$0xf]
    %v1496 = vld [vmem:[%s15 + $0x14] sm:$0xf]
    %v1497 = vld [vmem:[%s15 + $0x18] sm:$0xf]
    %v1498 = vld [vmem:[%s15 + $0x1c] sm:$0xf]
    %v1499 = vld [vmem:[%s15 + $0x20] sm:$0xf]
    %v1500 = vld [vmem:[%s15 + $0x24] sm:$0xf]
    %v1501 = vld [vmem:[%s15 + $0x28] sm:$0xf]
    %v1502 = vld [vmem:[%s15 + $0x2c] sm:$0xf]
    %v1503 = vld [vmem:[%s15 + $0x30] sm:$0xf]
    %v1504 = vld [vmem:[%s15 + $0x34] sm:$0xf]
    %v1505 = vld [vmem:[%s15 + $0x38] sm:$0xf]
    %v1506 = vld [vmem:[%s15 + $0x3c] sm:$0xf]
    %v1507 = vpack.c.bf16 %v1488, %v1487
    %v1508 = vpack.c.bf16 %v1490, %v1489
    %v1525 = vunpack.c.l.b16 %v1491
    %v1526 = vunpack.c.l.b16 %v1492
    %v1527 = vunpack.c.l.b16 %v1493
    %v1528 = vunpack.c.l.b16 %v1494
    %v1529 = vunpack.c.l.b16 %v1495
    %v1530 = vunpack.c.l.b16 %v1496
    %v1531 = vunpack.c.l.b16 %v1497
    %v1532 = vunpack.c.l.b16 %v1498
    %v1533 = vunpack.c.l.b16 %v1499
    %v1534 = vunpack.c.l.b16 %v1500
    %v1535 = vunpack.c.l.b16 %v1501
    %v1536 = vunpack.c.l.b16 %v1502
    %v1537 = vunpack.c.l.b16 %v1503
    %v1538 = vunpack.c.l.b16 %v1504
    %v1539 = vunpack.c.l.b16 %v1505
    %v1540 = vunpack.c.l.b16 %v1506
    %v1541 = vpack.c.b16 %v1526, %v1525
    %v1542 = vpack.c.b16 %v1528, %v1527
    %v1543 = vpack.c.b16 %v1530, %v1529
    %v1544 = vpack.c.b16 %v1532, %v1531
    %v1545 = vpack.c.b16 %v1534, %v1533
    %v1546 = vpack.c.b16 %v1536, %v1535
    %v1547 = vpack.c.b16 %v1538, %v1537
    %v1548 = vpack.c.b16 %v1540, %v1539
    %1557 = vmatprep.subr.bf16.mxu0 0
    %1558 = vmatpush1.bf16.msra.mxu0 %v1541
    %1559 = vmatprep.subr.bf16.mxu0 0
    %1560 = vmatpush1.bf16.msra.mxu0 %v1542
    %1561 = vmatprep.subr.bf16.mxu0 0
    %1562 = vmatpush1.bf16.msra.mxu0 %v1543
    %1563 = vmatprep.subr.bf16.mxu0 0
    %1564 = vmatpush1.bf16.msra.mxu0 %v1544
    %1565 = vmatprep.subr.bf16.mxu0 0
    %1566 = vmatpush1.bf16.msra.mxu0 %v1545
    %1567 = vmatprep.subr.bf16.mxu0 0
    %1568 = vmatpush1.bf16.msra.mxu0 %v1546
    %1569 = vmatprep.subr.bf16.mxu0 0
    %1570 = vmatpush1.bf16.msra.mxu0 %v1547
    %1571 = vmatprep.subr.bf16.mxu0 0
    %1572 = vmatpush1.bf16.msra.mxu0 %v1548
    %1573 = vmatprep.subr.bf16.mxu0 0
    %1574 = vmatpush1.bf16.msra.mxu0 0
    %1575 = vmatprep.subr.bf16.mxu0 0
    %1576 = vmatpush1.bf16.msra.mxu0 0
    %1577 = vmatprep.subr.bf16.mxu0 0
    %1578 = vmatpush1.bf16.msra.mxu0 0
    %1579 = vmatprep.subr.bf16.mxu0 0
    %1580 = vmatpush1.bf16.msra.mxu0 0
    %1581 = vmatprep.subr.bf16.mxu0 0
    %1582 = vmatpush1.bf16.msra.mxu0 0
    %1583 = vmatprep.subr.bf16.mxu0 0
    %1584 = vmatpush1.bf16.msra.mxu0 0
    %1585 = vmatprep.subr.bf16.mxu0 0
    %1586 = vmatpush1.bf16.msra.mxu0 0
    %1587 = vmatprep.subr.bf16.mxu0 0
    %1588 = vmatpush1.bf16.msra.mxu0 0
    %1589 = vmatprep.mubr.bf16.mxu0 0
    %1590 = vmatmul.mubr.bf16.gmra.mrb[0].mxu0 %v1507
    %v1591 = vpop.f32.mrb[0].mxu0
    %v1592 = vadd.f32 0.0, %v1591
    %v1593 = vpop.f32.mrb[0].mxu0
    %v1594 = vpop.f32.mrb[0].mxu0
    %v1595 = vadd.f32 0.0, %v1594
    %v1596 = vpop.f32.mrb[0].mxu0
    %1597 = vmatprep.mubr.bf16.mxu0 0
    %1598 = vmatmul.mubr.bf16.gmra.mrb[0].mxu0 %v1508
    %v1599 = vpop.f32.mrb[0].mxu0
    %v1600 = vadd.f32 0.0, %v1599
    %v1601 = vpop.f32.mrb[0].mxu0
    %v1602 = vpop.f32.mrb[0].mxu0
    %v1603 = vadd.f32 0.0, %v1602
    %v1604 = vpop.f32.mrb[0].mxu0
    %1605 = vdwg.mxu0
    %v1606 = vadd.f32 %v1287, %v1592
    %v1607 = vadd.f32 %v1288, %v1595
    %v1608 = vadd.f32 %v1289, %v1600
    %v1609 = vadd.f32 %v1290, %v1603
    %v1610 = vld [vmem:[%s16] sm:$0x1]
    %v1612 = vlaneseq
    %v1613 = vshrl.u32 %v1612, 7
    %v1614 = vsub.s32 0, %v1613
    %v1615 = vrot.slane %v1610, %v1614
    %v1617 = vadd.f32 %v1606, %v1615
    %v1618 = vadd.f32 %v1607, %v1615
    %v1619 = vadd.f32 %v1608, %v1615
    %v1620 = vadd.f32 %v1609, %v1615
    %s1621 = scalar_lea.vmem %s5, 2
    %v1622 = vld [vmem:[%s1621] sm:$0x3]
    %s1623 = scalar_lea.vmem %s6, 2
    %v1624 = vld [vmem:[%s1623] sm:$0x3]
    %s1625 = scalar_lea.vmem %s10, 4
    %v1626 = vld [vmem:[%s1625] sm:$0x7]
    %v1627 = vsel %vm255, %v1617, 0.0
    %1628 = vadd.xlane.f32.xlu0 %v1627
    %v1629 = vpop.xlane.xlu0 %1628
    %v1630 = vsel %vm255, %v1618, 0.0
    %1631 = vadd.xlane.f32.xlu0 %v1630
    %v1632 = vpop.xlane.xlu0 %1631
    %v1633 = vsel %vm255, %v1619, 0.0
    %1634 = vadd.xlane.f32.xlu0 %v1633
    %v1635 = vpop.xlane.xlu0 %1634
    %v1636 = vsel %vm255, %v1620, 0.0
    %1637 = vadd.xlane.f32.xlu0 %v1636
    %v1638 = vpop.xlane.xlu0 %1637
    %v1639 = vmul.f32 %v1629, %v330
    %v1640 = vmul.f32 %v1632, %v330
    %v1641 = vmul.f32 %v1635, %v330
    %v1642 = vmul.f32 %v1638, %v330
    %v1643 = vsub.f32 %v1617, %v1639
    %v1644 = vsub.f32 %v1618, %v1640
    %v1645 = vsub.f32 %v1619, %v1641
    %v1646 = vsub.f32 %v1620, %v1642
    %v1647 = vmul.f32 %v1643, %v1643
    %v1648 = vmul.f32 %v1644, %v1644
    %v1649 = vmul.f32 %v1645, %v1645
    %v1650 = vmul.f32 %v1646, %v1646
    %v1651 = vsel %vm255, %v1647, 0.0
    %1652 = vadd.xlane.f32.xlu0 %v1651
    %v1653 = vpop.xlane.xlu0 %1652
    %v1654 = vsel %vm255, %v1648, 0.0
    %1655 = vadd.xlane.f32.xlu0 %v1654
    %v1656 = vpop.xlane.xlu0 %1655
    %v1657 = vsel %vm255, %v1649, 0.0
    %1658 = vadd.xlane.f32.xlu0 %v1657
    %v1659 = vpop.xlane.xlu0 %1658
    %v1660 = vsel %vm255, %v1650, 0.0
    %1661 = vadd.xlane.f32.xlu0 %v1660
    %v1662 = vpop.xlane.xlu0 %1661
    %v1663 = vmul.f32 %v1653, %v330
    %v1664 = vmul.f32 %v1656, %v330
    %v1665 = vmul.f32 %v1659, %v330
    %v1666 = vmul.f32 %v1662, %v330
    %v1667 = vadd.f32 %v1663, 1e-05
    %v1668 = vadd.f32 %v1664, 1e-05
    %v1669 = vadd.f32 %v1665, 1e-05
    %v1670 = vadd.f32 %v1666, 1e-05
    %v1671 = vrsqrt.pop %v1667
    %v1672 = vrsqrt.pop %v1668
    %v1673 = vrsqrt.pop %v1669
    %v1674 = vrsqrt.pop %v1670
    %v1675 = vmul.f32 %v1643, %v1671
    %v1676 = vmul.f32 %v1644, %v1672
    %v1677 = vmul.f32 %v1645, %v1673
    %v1678 = vmul.f32 %v1646, %v1674
    %v1679 = vlaneseq
    %v1680 = vshrl.u32 %v1679, 7
    %v1681 = vsub.s32 0, %v1680
    %v1682 = vrot.slane %v1622, %v1681
    %v1683 = vmul.f32 %v1675, %v1682
    %v1684 = vmul.f32 %v1676, %v1682
    %v1685 = vmul.f32 %v1677, %v1682
    %v1686 = vmul.f32 %v1678, %v1682
    %v1687 = vlaneseq
    %v1688 = vshrl.u32 %v1687, 7
    %v1689 = vsub.s32 0, %v1688
    %v1690 = vrot.slane %v1624, %v1689
    %v1691 = vadd.f32 %v1683, %v1690
    %v1692 = vadd.f32 %v1684, %v1690
    %v1693 = vadd.f32 %v1685, %v1690
    %v1694 = vadd.f32 %v1686, %v1690
    %s1695 = scalar_lea.vmem %s7, 32
    %v1696 = vld [vmem:[%s1695] sm:$0xf]
    %v1697 = vld [vmem:[%s1695 + $0x4] sm:$0xf]
    %v1698 = vld [vmem:[%s1695 + $0x8] sm:$0xf]
    %v1699 = vld [vmem:[%s1695 + $0xc] sm:$0xf]
    %v1700 = vld [vmem:[%s1695 + $0x10] sm:$0xf]
    %v1701 = vld [vmem:[%s1695 + $0x14] sm:$0xf]
    %v1702 = vld [vmem:[%s1695 + $0x18] sm:$0xf]
    %v1703 = vld [vmem:[%s1695 + $0x1c] sm:$0xf]
    %v1704 = vpack.c.bf16 %v1692, %v1691
    %v1705 = vpack.c.bf16 %v1694, %v1693
    %v1706 = vlaneseq
    %v1707 = vshrl.u32 %v1706, 7
    %v1708 = vsub.s32 0, %v1707
    %v1709 = vrot.slane %v1626, %v1708
    %v1718 = vunpack.c.l.b16 %v1696
    %v1719 = vunpack.c.l.b16 %v1697
    %v1720 = vunpack.c.l.b16 %v1698
    %v1721 = vunpack.c.l.b16 %v1699
    %v1722 = vunpack.c.l.b16 %v1700
    %v1723 = vunpack.c.l.b16 %v1701
    %v1724 = vunpack.c.l.b16 %v1702
    %v1725 = vunpack.c.l.b16 %v1703
    %v1726 = vpack.c.b16 %v1719, %v1718
    %v1727 = vpack.c.b16 %v1721, %v1720
    %v1728 = vpack.c.b16 %v1723, %v1722
    %v1729 = vpack.c.b16 %v1725, %v1724
    %v1735 = vsel %vm255, %v1704, 0
    %v1738 = vsel %vm255, %v1705, 0
    %1740 = vmatprep.subr.bf16.mxu0 0
    %1741 = vmatpush1.bf16.msra.mxu0 %v1726
    %1742 = vmatprep.subr.bf16.mxu0 0
    %1743 = vmatpush1.bf16.msra.mxu0 %v1727
    %1744 = vmatprep.subr.bf16.mxu0 0
    %1745 = vmatpush1.bf16.msra.mxu0 %v1728
    %1746 = vmatprep.subr.bf16.mxu0 0
    %1747 = vmatpush1.bf16.msra.mxu0 %v1729
    %1748 = vmatprep.subr.bf16.mxu0 0
    %1749 = vmatpush1.bf16.msra.mxu0 0
    %1750 = vmatprep.subr.bf16.mxu0 0
    %1751 = vmatpush1.bf16.msra.mxu0 0
    %1752 = vmatprep.subr.bf16.mxu0 0
    %1753 = vmatpush1.bf16.msra.mxu0 0
    %1754 = vmatprep.subr.bf16.mxu0 0
    %1755 = vmatpush1.bf16.msra.mxu0 0
    %1756 = vmatprep.subr.bf16.mxu0 0
    %1757 = vmatpush1.bf16.msra.mxu0 0
    %1758 = vmatprep.subr.bf16.mxu0 0
    %1759 = vmatpush1.bf16.msra.mxu0 0
    %1760 = vmatprep.subr.bf16.mxu0 0
    %1761 = vmatpush1.bf16.msra.mxu0 0
    %1762 = vmatprep.subr.bf16.mxu0 0
    %1763 = vmatpush1.bf16.msra.mxu0 0
    %1764 = vmatprep.subr.bf16.mxu0 0
    %1765 = vmatpush1.bf16.msra.mxu0 0
    %1766 = vmatprep.subr.bf16.mxu0 0
    %1767 = vmatpush1.bf16.msra.mxu0 0
    %1768 = vmatprep.subr.bf16.mxu0 0
    %1769 = vmatpush1.bf16.msra.mxu0 0
    %1770 = vmatprep.subr.bf16.mxu0 0
    %1771 = vmatpush1.bf16.msra.mxu0 0
    %1772 = vmatprep.mubr.bf16.mxu0 0
    %1773 = vmatmul.mubr.bf16.gmra.mrb[0].mxu0 %v1735
    %v1774 = vpop.f32.mrb[0].mxu0
    %v1775 = vadd.f32 %v1709, %v1774
    %v1776 = vpop.f32.mrb[0].mxu0
    %v1777 = vpop.f32.mrb[0].mxu0
    %v1778 = vadd.f32 %v1709, %v1777
    %v1779 = vpop.f32.mrb[0].mxu0
    %1780 = vmatprep.mubr.bf16.mxu0 0
    %1781 = vmatmul.mubr.bf16.gmra.mrb[0].mxu0 %v1738
    %v1782 = vpop.f32.mrb[0].mxu0
    %v1783 = vadd.f32 %v1709, %v1782
    %v1784 = vpop.f32.mrb[0].mxu0
    %v1785 = vpop.f32.mrb[0].mxu0
    %v1786 = vadd.f32 %v1709, %v1785
    %v1787 = vpop.f32.mrb[0].mxu0
    %1788 = vdwg.mxu0
    %s1789 = scalar_lea.vmem %s8, 32
    %v1790 = vld [vmem:[%s1789] sm:$0xf]
    %v1791 = vld [vmem:[%s1789 + $0x4] sm:$0xf]
    %v1792 = vld [vmem:[%s1789 + $0x8] sm:$0xf]
    %v1793 = vld [vmem:[%s1789 + $0xc] sm:$0xf]
    %v1794 = vld [vmem:[%s1789 + $0x10] sm:$0xf]
    %v1795 = vld [vmem:[%s1789 + $0x14] sm:$0xf]
    %v1796 = vld [vmem:[%s1789 + $0x18] sm:$0xf]
    %v1797 = vld [vmem:[%s1789 + $0x1c] sm:$0xf]
    %v1798 = vlaneseq
    %v1799 = vshrl.u32 %v1798, 7
    %v1800 = vsub.s32 1, %v1799
    %v1801 = vrot.slane %v1626, %v1800
    %v1810 = vunpack.c.l.b16 %v1790
    %v1811 = vunpack.c.l.b16 %v1791
    %v1812 = vunpack.c.l.b16 %v1792
    %v1813 = vunpack.c.l.b16 %v1793
    %v1814 = vunpack.c.l.b16 %v1794
    %v1815 = vunpack.c.l.b16 %v1795
    %v1816 = vunpack.c.l.b16 %v1796
    %v1817 = vunpack.c.l.b16 %v1797
    %v1818 = vpack.c.b16 %v1811, %v1810
    %v1819 = vpack.c.b16 %v1813, %v1812
    %v1820 = vpack.c.b16 %v1815, %v1814
    %v1821 = vpack.c.b16 %v1817, %v1816
    %1826 = vmatprep.subr.bf16.mxu0 0
    %1827 = vmatpush1.bf16.msra.mxu0 %v1818
    %1828 = vmatprep.subr.bf16.mxu0 0
    %1829 = vmatpush1.bf16.msra.mxu0 %v1819
    %1830 = vmatprep.subr.bf16.mxu0 0
    %1831 = vmatpush1.bf16.msra.mxu0 %v1820
    %1832 = vmatprep.subr.bf16.mxu0 0
    %1833 = vmatpush1.bf16.msra.mxu0 %v1821
    %1834 = vmatprep.subr.bf16.mxu0 0
    %1835 = vmatpush1.bf16.msra.mxu0 0
    %1836 = vmatprep.subr.bf16.mxu0 0
    %1837 = vmatpush1.bf16.msra.mxu0 0
    %1838 = vmatprep.subr.bf16.mxu0 0
    %1839 = vmatpush1.bf16.msra.mxu0 0
    %1840 = vmatprep.subr.bf16.mxu0 0
    %1841 = vmatpush1.bf16.msra.mxu0 0
    %1842 = vmatprep.subr.bf16.mxu0 0
    %1843 = vmatpush1.bf16.msra.mxu0 0
    %1844 = vmatprep.subr.bf16.mxu0 0
    %1845 = vmatpush1.bf16.msra.mxu0 0
    %1846 = vmatprep.subr.bf16.mxu0 0
    %1847 = vmatpush1.bf16.msra.mxu0 0
    %1848 = vmatprep.subr.bf16.mxu0 0
    %1849 = vmatpush1.bf16.msra.mxu0 0
    %1850 = vmatprep.subr.bf16.mxu0 0
    %1851 = vmatpush1.bf16.msra.mxu0 0
    %1852 = vmatprep.subr.bf16.mxu0 0
    %1853 = vmatpush1.bf16.msra.mxu0 0
    %1854 = vmatprep.subr.bf16.mxu0 0
    %1855 = vmatpush1.bf16.msra.mxu0 0
    %1856 = vmatprep.subr.bf16.mxu0 0
    %1857 = vmatpush1.bf16.msra.mxu0 0
    %1858 = vmatprep.mubr.bf16.mxu0 0
    %1859 = vmatmul.mubr.bf16.gmra.mrb[0].mxu0 %v1735
    %v1860 = vpop.f32.mrb[0].mxu0
    %v1861 = vadd.f32 %v1801, %v1860
    %v1862 = vpop.f32.mrb[0].mxu0
    %v1863 = vpop.f32.mrb[0].mxu0
    %v1864 = vadd.f32 %v1801, %v1863
    %v1865 = vpop.f32.mrb[0].mxu0
    %1866 = vmatprep.mubr.bf16.mxu0 0
    %1867 = vmatmul.mubr.bf16.gmra.mrb[0].mxu0 %v1738
    %v1868 = vpop.f32.mrb[0].mxu0
    %v1869 = vadd.f32 %v1801, %v1868
    %v1870 = vpop.f32.mrb[0].mxu0
    %v1871 = vpop.f32.mrb[0].mxu0
    %v1872 = vadd.f32 %v1801, %v1871
    %v1873 = vpop.f32.mrb[0].mxu0
    %1874 = vdwg.mxu0
    %s1875 = scalar_lea.vmem %s9, 32
    %v1876 = vld [vmem:[%s1875] sm:$0xf]
    %v1877 = vld [vmem:[%s1875 + $0x4] sm:$0xf]
    %v1878 = vld [vmem:[%s1875 + $0x8] sm:$0xf]
    %v1879 = vld [vmem:[%s1875 + $0xc] sm:$0xf]
    %v1880 = vld [vmem:[%s1875 + $0x10] sm:$0xf]
    %v1881 = vld [vmem:[%s1875 + $0x14] sm:$0xf]
    %v1882 = vld [vmem:[%s1875 + $0x18] sm:$0xf]
    %v1883 = vld [vmem:[%s1875 + $0x1c] sm:$0xf]
    %v1884 = vlaneseq
    %v1885 = vshrl.u32 %v1884, 7
    %v1886 = vsub.s32 2, %v1885
    %v1887 = vrot.slane %v1626, %v1886
    %v1896 = vunpack.c.l.b16 %v1876
    %v1897 = vunpack.c.l.b16 %v1877
    %v1898 = vunpack.c.l.b16 %v1878
    %v1899 = vunpack.c.l.b16 %v1879
    %v1900 = vunpack.c.l.b16 %v1880
    %v1901 = vunpack.c.l.b16 %v1881
    %v1902 = vunpack.c.l.b16 %v1882
    %v1903 = vunpack.c.l.b16 %v1883
    %v1904 = vpack.c.b16 %v1897, %v1896
    %v1905 = vpack.c.b16 %v1899, %v1898
    %v1906 = vpack.c.b16 %v1901, %v1900
    %v1907 = vpack.c.b16 %v1903, %v1902
    %1912 = vmatprep.subr.bf16.mxu0 0
    %1913 = vmatpush1.bf16.msra.mxu0 %v1904
    %1914 = vmatprep.subr.bf16.mxu0 0
    %1915 = vmatpush1.bf16.msra.mxu0 %v1905
    %1916 = vmatprep.subr.bf16.mxu0 0
    %1917 = vmatpush1.bf16.msra.mxu0 %v1906
    %1918 = vmatprep.subr.bf16.mxu0 0
    %1919 = vmatpush1.bf16.msra.mxu0 %v1907
    %1920 = vmatprep.subr.bf16.mxu0 0
    %1921 = vmatpush1.bf16.msra.mxu0 0
    %1922 = vmatprep.subr.bf16.mxu0 0
    %1923 = vmatpush1.bf16.msra.mxu0 0
    %1924 = vmatprep.subr.bf16.mxu0 0
    %1925 = vmatpush1.bf16.msra.mxu0 0
    %1926 = vmatprep.subr.bf16.mxu0 0
    %1927 = vmatpush1.bf16.msra.mxu0 0
    %1928 = vmatprep.subr.bf16.mxu0 0
    %1929 = vmatpush1.bf16.msra.mxu0 0
    %1930 = vmatprep.subr.bf16.mxu0 0
    %1931 = vmatpush1.bf16.msra.mxu0 0
    %1932 = vmatprep.subr.bf16.mxu0 0
    %1933 = vmatpush1.bf16.msra.mxu0 0
    %1934 = vmatprep.subr.bf16.mxu0 0
    %1935 = vmatpush1.bf16.msra.mxu0 0
    %1936 = vmatprep.subr.bf16.mxu0 0
    %1937 = vmatpush1.bf16.msra.mxu0 0
    %1938 = vmatprep.subr.bf16.mxu0 0
    %1939 = vmatpush1.bf16.msra.mxu0 0
    %1940 = vmatprep.subr.bf16.mxu0 0
    %1941 = vmatpush1.bf16.msra.mxu0 0
    %1942 = vmatprep.subr.bf16.mxu0 0
    %1943 = vmatpush1.bf16.msra.mxu0 0
    %1944 = vmatprep.mubr.bf16.mxu0 0
    %1945 = vmatmul.mubr.bf16.gmra.mrb[0].mxu0 %v1735
    %v1946 = vpop.f32.mrb[0].mxu0
    %v1947 = vadd.f32 %v1887, %v1946
    %v1948 = vpop.f32.mrb[0].mxu0
    %v1949 = vpop.f32.mrb[0].mxu0
    %v1950 = vadd.f32 %v1887, %v1949
    %v1951 = vpop.f32.mrb[0].mxu0
    %1952 = vmatprep.mubr.bf16.mxu0 0
    %1953 = vmatmul.mubr.bf16.gmra.mrb[0].mxu0 %v1738
    %v1954 = vpop.f32.mrb[0].mxu0
    %v1955 = vadd.f32 %v1887, %v1954
    %v1956 = vpop.f32.mrb[0].mxu0
    %v1957 = vpop.f32.mrb[0].mxu0
    %v1958 = vadd.f32 %v1887, %v1957
    %v1959 = vpop.f32.mrb[0].mxu0
    %1960 = vdwg.mxu0
    %v1961 = vmul.f32 %v1775, %v126
    %v1962 = vmul.f32 %v1778, %v127
    %v1963 = vmul.f32 %v1783, %v128
    %v1964 = vmul.f32 %v1786, %v129
    %v1965 = vmul.f32 %v1775, %v130
    %v1966 = vmul.f32 %v1778, %v131
    %v1967 = vmul.f32 %v1783, %v132
    %v1968 = vmul.f32 %v1786, %v133
    %v1969 = vmul.f32 %v1775, %v134
    %v1970 = vmul.f32 %v1778, %v135
    %v1971 = vmul.f32 %v1783, %v136
    %v1972 = vmul.f32 %v1786, %v137
    %v1973 = vmul.f32 %v1775, %v138
    %v1974 = vmul.f32 %v1778, %v139
    %v1975 = vmul.f32 %v1783, %v140
    %v1976 = vmul.f32 %v1786, %v141
    %v1977 = vpack.c.bf16 %v1962, %v1961
    %v1978 = vpack.c.bf16 %v1964, %v1963
    %v1979 = vpack.c.bf16 %v1966, %v1965
    %v1980 = vpack.c.bf16 %v1968, %v1967
    %v1981 = vpack.c.bf16 %v1970, %v1969
    %v1982 = vpack.c.bf16 %v1972, %v1971
    %v1983 = vpack.c.bf16 %v1974, %v1973
    %v1984 = vpack.c.bf16 %v1976, %v1975
    %v1985 = vpack.c.bf16 %v1864, %v1861
    %v1986 = vpack.c.bf16 %v1872, %v1869
    %v1988 = vsel %vm255, %v1977, 0
    %v1991 = vsel %vm255, %v1978, 0
    %v1994 = vsel %vm255, %v1979, 0
    %v1997 = vsel %vm255, %v1980, 0
    %v2000 = vsel %vm255, %v1981, 0
    %v2003 = vsel %vm255, %v1982, 0
    %v2006 = vsel %vm255, %v1983, 0
    %v2009 = vsel %vm255, %v1984, 0
    %v2012 = vsel %vm255, %v1985, 0
    %v2015 = vsel %vm255, %v1986, 0
    %2017 = vmatprep.subr.bf16.mxu0 0
    %2018 = vmatpush1.bf16.xpose.msra.mxu0 %v2012
    %2019 = vmatprep.subr.bf16.mxu0 0
    %2020 = vmatpush1.bf16.xpose.msra.mxu0 %v2015
    %2021 = vmatprep.subr.bf16.mxu0 0
    %2022 = vmatpush1.bf16.xpose.msra.mxu0 0
    %2023 = vmatprep.subr.bf16.mxu0 0
    %2024 = vmatpush1.bf16.xpose.msra.mxu0 0
    %2025 = vmatprep.subr.bf16.mxu0 0
    %2026 = vmatpush1.bf16.xpose.msra.mxu0 0
    %2027 = vmatprep.subr.bf16.mxu0 0
    %2028 = vmatpush1.bf16.xpose.msra.mxu0 0
    %2029 = vmatprep.subr.bf16.mxu0 0
    %2030 = vmatpush1.bf16.xpose.msra.mxu0 0
    %2031 = vmatprep.subr.bf16.mxu0 0
    %2032 = vmatpush1.bf16.xpose.msra.mxu0 0
    %2033 = vmatprep.subr.bf16.mxu0 0
    %2034 = vmatpush1.bf16.xpose.msra.mxu0 0
    %2035 = vmatprep.subr.bf16.mxu0 0
    %2036 = vmatpush1.bf16.xpose.msra.mxu0 0
    %2037 = vmatprep.subr.bf16.mxu0 0
    %2038 = vmatpush1.bf16.xpose.msra.mxu0 0
    %2039 = vmatprep.subr.bf16.mxu0 0
    %2040 = vmatpush1.bf16.xpose.msra.mxu0 0
    %2041 = vmatprep.subr.bf16.mxu0 0
    %2042 = vmatpush1.bf16.xpose.msra.mxu0 0
    %2043 = vmatprep.subr.bf16.mxu0 0
    %2044 = vmatpush1.bf16.xpose.msra.mxu0 0
    %2045 = vmatprep.subr.bf16.mxu0 0
    %2046 = vmatpush1.bf16.xpose.msra.mxu0 0
    %2047 = vmatprep.subr.bf16.mxu0 0
    %2048 = vmatpush1.bf16.xpose.msra.mxu0 0
    %2049 = vmatprep.mubr.bf16.mxu0 0
    %2050 = vmatmul.mubr.bf16.gmra.mrb[0].mxu0 %v1988
    %v2051 = vpop.f32.mrb[0].mxu0
    %v2052 = vadd.f32 0.0, %v2051
    %v2053 = vpop.f32.mrb[0].mxu0
    %v2054 = vpop.f32.mrb[0].mxu0
    %v2055 = vadd.f32 0.0, %v2054
    %v2056 = vpop.f32.mrb[0].mxu0
    %2057 = vmatprep.mubr.bf16.mxu0 0
    %2058 = vmatmul.mubr.bf16.gmra.mrb[0].mxu0 %v1991
    %v2059 = vpop.f32.mrb[0].mxu0
    %v2060 = vadd.f32 0.0, %v2059
    %v2061 = vpop.f32.mrb[0].mxu0
    %v2062 = vpop.f32.mrb[0].mxu0
    %v2063 = vadd.f32 0.0, %v2062
    %v2064 = vpop.f32.mrb[0].mxu0
    %2065 = vmatprep.mubr.bf16.mxu0 0
    %2066 = vmatmul.mubr.bf16.gmra.mrb[0].mxu0 %v1994
    %v2067 = vpop.f32.mrb[0].mxu0
    %v2068 = vadd.f32 0.0, %v2067
    %v2069 = vpop.f32.mrb[0].mxu0
    %v2070 = vpop.f32.mrb[0].mxu0
    %v2071 = vadd.f32 0.0, %v2070
    %v2072 = vpop.f32.mrb[0].mxu0
    %2073 = vmatprep.mubr.bf16.mxu0 0
    %2074 = vmatmul.mubr.bf16.gmra.mrb[0].mxu0 %v1997
    %v2075 = vpop.f32.mrb[0].mxu0
    %v2076 = vadd.f32 0.0, %v2075
    %v2077 = vpop.f32.mrb[0].mxu0
    %v2078 = vpop.f32.mrb[0].mxu0
    %v2079 = vadd.f32 0.0, %v2078
    %v2080 = vpop.f32.mrb[0].mxu0
    %2081 = vmatprep.mubr.bf16.mxu0 0
    %2082 = vmatmul.mubr.bf16.gmra.mrb[0].mxu0 %v2000
    %v2083 = vpop.f32.mrb[0].mxu0
    %v2084 = vadd.f32 0.0, %v2083
    %v2085 = vpop.f32.mrb[0].mxu0
    %v2086 = vpop.f32.mrb[0].mxu0
    %v2087 = vadd.f32 0.0, %v2086
    %v2088 = vpop.f32.mrb[0].mxu0
    %2089 = vmatprep.mubr.bf16.mxu0 0
    %2090 = vmatmul.mubr.bf16.gmra.mrb[0].mxu0 %v2003
    %v2091 = vpop.f32.mrb[0].mxu0
    %v2092 = vadd.f32 0.0, %v2091
    %v2093 = vpop.f32.mrb[0].mxu0
    %v2094 = vpop.f32.mrb[0].mxu0
    %v2095 = vadd.f32 0.0, %v2094
    %v2096 = vpop.f32.mrb[0].mxu0
    %2097 = vmatprep.mubr.bf16.mxu0 0
    %2098 = vmatmul.mubr.bf16.gmra.mrb[0].mxu0 %v2006
    %v2099 = vpop.f32.mrb[0].mxu0
    %v2100 = vadd.f32 0.0, %v2099
    %v2101 = vpop.f32.mrb[0].mxu0
    %v2102 = vpop.f32.mrb[0].mxu0
    %v2103 = vadd.f32 0.0, %v2102
    %v2104 = vpop.f32.mrb[0].mxu0
    %2105 = vmatprep.mubr.bf16.mxu0 0
    %2106 = vmatmul.mubr.bf16.gmra.mrb[0].mxu0 %v2009
    %v2107 = vpop.f32.mrb[0].mxu0
    %v2108 = vadd.f32 0.0, %v2107
    %v2109 = vpop.f32.mrb[0].mxu0
    %v2110 = vpop.f32.mrb[0].mxu0
    %v2111 = vadd.f32 0.0, %v2110
    %v2112 = vpop.f32.mrb[0].mxu0
    %2113 = vdwg.mxu0
    %v2114 = vmul.f32 %v2052, 0.25
    %v2115 = vmul.f32 %v2055, 0.25
    %v2116 = vmul.f32 %v2060, 0.25
    %v2117 = vmul.f32 %v2063, 0.25
    %v2118 = vmul.f32 %v2068, 0.25
    %v2119 = vmul.f32 %v2071, 0.25
    %v2120 = vmul.f32 %v2076, 0.25
    %v2121 = vmul.f32 %v2079, 0.25
    %v2122 = vmul.f32 %v2084, 0.25
    %v2123 = vmul.f32 %v2087, 0.25
    %v2124 = vmul.f32 %v2092, 0.25
    %v2125 = vmul.f32 %v2095, 0.25
    %v2126 = vmul.f32 %v2100, 0.25
    %v2127 = vmul.f32 %v2103, 0.25
    %v2128 = vmul.f32 %v2108, 0.25
    %v2129 = vmul.f32 %v2111, 0.25
    %v2130 = vadd.f32 %v2114, %v190
    %v2131 = vadd.f32 %v2115, %v191
    %v2132 = vadd.f32 %v2116, %v192
    %v2133 = vadd.f32 %v2117, %v193
    %v2134 = vadd.f32 %v2118, %v194
    %v2135 = vadd.f32 %v2119, %v195
    %v2136 = vadd.f32 %v2120, %v196
    %v2137 = vadd.f32 %v2121, %v197
    %v2138 = vadd.f32 %v2122, %v198
    %v2139 = vadd.f32 %v2123, %v199
    %v2140 = vadd.f32 %v2124, %v200
    %v2141 = vadd.f32 %v2125, %v201
    %v2142 = vadd.f32 %v2126, %v202
    %v2143 = vadd.f32 %v2127, %v203
    %v2144 = vadd.f32 %v2128, %v204
    %v2145 = vadd.f32 %v2129, %v205
    %v2146 = vsel %vm835, %v2130, -inf
    %2147 = vmax.xlane.f32.xlu0 %v2146
    %v2148 = vpop.xlane.xlu0 %2147
    %v2149 = vsel %vm835, %v2131, -inf
    %2150 = vmax.xlane.f32.xlu0 %v2149
    %v2151 = vpop.xlane.xlu0 %2150
    %v2152 = vsel %vm835, %v2132, -inf
    %2153 = vmax.xlane.f32.xlu0 %v2152
    %v2154 = vpop.xlane.xlu0 %2153
    %v2155 = vsel %vm835, %v2133, -inf
    %2156 = vmax.xlane.f32.xlu0 %v2155
    %v2157 = vpop.xlane.xlu0 %2156
    %v2158 = vsel %vm835, %v2134, -inf
    %2159 = vmax.xlane.f32.xlu0 %v2158
    %v2160 = vpop.xlane.xlu0 %2159
    %v2161 = vsel %vm835, %v2135, -inf
    %2162 = vmax.xlane.f32.xlu0 %v2161
    %v2163 = vpop.xlane.xlu0 %2162
    %v2164 = vsel %vm835, %v2136, -inf
    %2165 = vmax.xlane.f32.xlu0 %v2164
    %v2166 = vpop.xlane.xlu0 %2165
    %v2167 = vsel %vm835, %v2137, -inf
    %2168 = vmax.xlane.f32.xlu0 %v2167
    %v2169 = vpop.xlane.xlu0 %2168
    %v2170 = vsel %vm835, %v2138, -inf
    %2171 = vmax.xlane.f32.xlu0 %v2170
    %v2172 = vpop.xlane.xlu0 %2171
    %v2173 = vsel %vm835, %v2139, -inf
    %2174 = vmax.xlane.f32.xlu0 %v2173
    %v2175 = vpop.xlane.xlu0 %2174
    %v2176 = vsel %vm835, %v2140, -inf
    %2177 = vmax.xlane.f32.xlu0 %v2176
    %v2178 = vpop.xlane.xlu0 %2177
    %v2179 = vsel %vm835, %v2141, -inf
    %2180 = vmax.xlane.f32.xlu0 %v2179
    %v2181 = vpop.xlane.xlu0 %2180
    %v2182 = vsel %vm835, %v2142, -inf
    %2183 = vmax.xlane.f32.xlu0 %v2182
    %v2184 = vpop.xlane.xlu0 %2183
    %v2185 = vsel %vm835, %v2143, -inf
    %2186 = vmax.xlane.f32.xlu0 %v2185
    %v2187 = vpop.xlane.xlu0 %2186
    %v2188 = vsel %vm835, %v2144, -inf
    %2189 = vmax.xlane.f32.xlu0 %v2188
    %v2190 = vpop.xlane.xlu0 %2189
    %v2191 = vsel %vm835, %v2145, -inf
    %2192 = vmax.xlane.f32.xlu0 %v2191
    %v2193 = vpop.xlane.xlu0 %2192
    %v2194 = vsub.f32 %v2130, %v2148
    %v2195 = vsub.f32 %v2131, %v2151
    %v2196 = vsub.f32 %v2132, %v2154
    %v2197 = vsub.f32 %v2133, %v2157
    %v2198 = vsub.f32 %v2134, %v2160
    %v2199 = vsub.f32 %v2135, %v2163
    %v2200 = vsub.f32 %v2136, %v2166
    %v2201 = vsub.f32 %v2137, %v2169
    %v2202 = vsub.f32 %v2138, %v2172
    %v2203 = vsub.f32 %v2139, %v2175
    %v2204 = vsub.f32 %v2140, %v2178
    %v2205 = vsub.f32 %v2141, %v2181
    %v2206 = vsub.f32 %v2142, %v2184
    %v2207 = vsub.f32 %v2143, %v2187
    %v2208 = vsub.f32 %v2144, %v2190
    %v2209 = vsub.f32 %v2145, %v2193
    %v2210 = vmul.f32 %v2194, 1.442695
    %v2211 = vpow.pop %v2210
    %v2212 = vmul.f32 %v2195, 1.442695
    %v2213 = vpow.pop %v2212
    %v2214 = vmul.f32 %v2196, 1.442695
    %v2215 = vpow.pop %v2214
    %v2216 = vmul.f32 %v2197, 1.442695
    %v2217 = vpow.pop %v2216
    %v2218 = vmul.f32 %v2198, 1.442695
    %v2219 = vpow.pop %v2218
    %v2220 = vmul.f32 %v2199, 1.442695
    %v2221 = vpow.pop %v2220
    %v2222 = vmul.f32 %v2200, 1.442695
    %v2223 = vpow.pop %v2222
    %v2224 = vmul.f32 %v2201, 1.442695
    %v2225 = vpow.pop %v2224
    %v2226 = vmul.f32 %v2202, 1.442695
    %v2227 = vpow.pop %v2226
    %v2228 = vmul.f32 %v2203, 1.442695
    %v2229 = vpow.pop %v2228
    %v2230 = vmul.f32 %v2204, 1.442695
    %v2231 = vpow.pop %v2230
    %v2232 = vmul.f32 %v2205, 1.442695
    %v2233 = vpow.pop %v2232
    %v2234 = vmul.f32 %v2206, 1.442695
    %v2235 = vpow.pop %v2234
    %v2236 = vmul.f32 %v2207, 1.442695
    %v2237 = vpow.pop %v2236
    %v2238 = vmul.f32 %v2208, 1.442695
    %v2239 = vpow.pop %v2238
    %v2240 = vmul.f32 %v2209, 1.442695
    %v2241 = vpow.pop %v2240
    %v2242 = vsel %vm835, %v2211, 0.0
    %2243 = vadd.xlane.f32.xlu0 %v2242
    %v2244 = vpop.xlane.xlu0 %2243
    %v2245 = vsel %vm835, %v2213, 0.0
    %2246 = vadd.xlane.f32.xlu0 %v2245
    %v2247 = vpop.xlane.xlu0 %2246
    %v2248 = vsel %vm835, %v2215, 0.0
    %2249 = vadd.xlane.f32.xlu0 %v2248
    %v2250 = vpop.xlane.xlu0 %2249
    %v2251 = vsel %vm835, %v2217, 0.0
    %2252 = vadd.xlane.f32.xlu0 %v2251
    %v2253 = vpop.xlane.xlu0 %2252
    %v2254 = vsel %vm835, %v2219, 0.0
    %2255 = vadd.xlane.f32.xlu0 %v2254
    %v2256 = vpop.xlane.xlu0 %2255
    %v2257 = vsel %vm835, %v2221, 0.0
    %2258 = vadd.xlane.f32.xlu0 %v2257
    %v2259 = vpop.xlane.xlu0 %2258
    %v2260 = vsel %vm835, %v2223, 0.0
    %2261 = vadd.xlane.f32.xlu0 %v2260
    %v2262 = vpop.xlane.xlu0 %2261
    %v2263 = vsel %vm835, %v2225, 0.0
    %2264 = vadd.xlane.f32.xlu0 %v2263
    %v2265 = vpop.xlane.xlu0 %2264
    %v2266 = vsel %vm835, %v2227, 0.0
    %2267 = vadd.xlane.f32.xlu0 %v2266
    %v2268 = vpop.xlane.xlu0 %2267
    %v2269 = vsel %vm835, %v2229, 0.0
    %2270 = vadd.xlane.f32.xlu0 %v2269
    %v2271 = vpop.xlane.xlu0 %2270
    %v2272 = vsel %vm835, %v2231, 0.0
    %2273 = vadd.xlane.f32.xlu0 %v2272
    %v2274 = vpop.xlane.xlu0 %2273
    %v2275 = vsel %vm835, %v2233, 0.0
    %2276 = vadd.xlane.f32.xlu0 %v2275
    %v2277 = vpop.xlane.xlu0 %2276
    %v2278 = vsel %vm835, %v2235, 0.0
    %2279 = vadd.xlane.f32.xlu0 %v2278
    %v2280 = vpop.xlane.xlu0 %2279
    %v2281 = vsel %vm835, %v2237, 0.0
    %2282 = vadd.xlane.f32.xlu0 %v2281
    %v2283 = vpop.xlane.xlu0 %2282
    %v2284 = vsel %vm835, %v2239, 0.0
    %2285 = vadd.xlane.f32.xlu0 %v2284
    %v2286 = vpop.xlane.xlu0 %2285
    %v2287 = vsel %vm835, %v2241, 0.0
    %2288 = vadd.xlane.f32.xlu0 %v2287
    %v2289 = vpop.xlane.xlu0 %2288
    %v2290 = vrcp.pop %v2244
    %v2291 = vrcp.pop %v2247
    %v2292 = vrcp.pop %v2250
    %v2293 = vrcp.pop %v2253
    %v2294 = vrcp.pop %v2256
    %v2295 = vrcp.pop %v2259
    %v2296 = vrcp.pop %v2262
    %v2297 = vrcp.pop %v2265
    %v2298 = vrcp.pop %v2268
    %v2299 = vrcp.pop %v2271
    %v2300 = vrcp.pop %v2274
    %v2301 = vrcp.pop %v2277
    %v2302 = vrcp.pop %v2280
    %v2303 = vrcp.pop %v2283
    %v2304 = vrcp.pop %v2286
    %v2305 = vrcp.pop %v2289
    %v2306 = vmul.f32 %v2211, %v2290
    %v2307 = vmul.f32 %v2213, %v2291
    %v2308 = vmul.f32 %v2215, %v2292
    %v2309 = vmul.f32 %v2217, %v2293
    %v2310 = vmul.f32 %v2219, %v2294
    %v2311 = vmul.f32 %v2221, %v2295
    %v2312 = vmul.f32 %v2223, %v2296
    %v2313 = vmul.f32 %v2225, %v2297
    %v2314 = vmul.f32 %v2227, %v2298
    %v2315 = vmul.f32 %v2229, %v2299
    %v2316 = vmul.f32 %v2231, %v2300
    %v2317 = vmul.f32 %v2233, %v2301
    %v2318 = vmul.f32 %v2235, %v2302
    %v2319 = vmul.f32 %v2237, %v2303
    %v2320 = vmul.f32 %v2239, %v2304
    %v2321 = vmul.f32 %v2241, %v2305
    %v2322 = vpack.c.bf16 %v2307, %v2306
    %v2323 = vpack.c.bf16 %v2309, %v2308
    %v2324 = vpack.c.bf16 %v2311, %v2310
    %v2325 = vpack.c.bf16 %v2313, %v2312
    %v2326 = vpack.c.bf16 %v2315, %v2314
    %v2327 = vpack.c.bf16 %v2317, %v2316
    %v2328 = vpack.c.bf16 %v2319, %v2318
    %v2329 = vpack.c.bf16 %v2321, %v2320
    %v2330 = vpack.c.bf16 %v1950, %v1947
    %v2331 = vpack.c.bf16 %v1958, %v1955
    %v2333 = vsel %vm835, %v2322, 0
    %v2336 = vsel %vm835, %v2323, 0
    %v2339 = vsel %vm835, %v2324, 0
    %v2342 = vsel %vm835, %v2325, 0
    %v2345 = vsel %vm835, %v2326, 0
    %v2348 = vsel %vm835, %v2327, 0
    %v2351 = vsel %vm835, %v2328, 0
    %v2354 = vsel %vm835, %v2329, 0
    %2356 = vmatprep.subr.bf16.mxu0 0
    %2357 = vmatpush1.bf16.msra.mxu0 %v2330
    %2358 = vmatprep.subr.bf16.mxu0 0
    %2359 = vmatpush1.bf16.msra.mxu0 %v2331
    %2360 = vmatprep.subr.bf16.mxu0 0
    %2361 = vmatpush1.bf16.msra.mxu0 0
    %2362 = vmatprep.subr.bf16.mxu0 0
    %2363 = vmatpush1.bf16.msra.mxu0 0
    %2364 = vmatprep.subr.bf16.mxu0 0
    %2365 = vmatpush1.bf16.msra.mxu0 0
    %2366 = vmatprep.subr.bf16.mxu0 0
    %2367 = vmatpush1.bf16.msra.mxu0 0
    %2368 = vmatprep.subr.bf16.mxu0 0
    %2369 = vmatpush1.bf16.msra.mxu0 0
    %2370 = vmatprep.subr.bf16.mxu0 0
    %2371 = vmatpush1.bf16.msra.mxu0 0
    %2372 = vmatprep.subr.bf16.mxu0 0
    %2373 = vmatpush1.bf16.msra.mxu0 0
    %2374 = vmatprep.subr.bf16.mxu0 0
    %2375 = vmatpush1.bf16.msra.mxu0 0
    %2376 = vmatprep.subr.bf16.mxu0 0
    %2377 = vmatpush1.bf16.msra.mxu0 0
    %2378 = vmatprep.subr.bf16.mxu0 0
    %2379 = vmatpush1.bf16.msra.mxu0 0
    %2380 = vmatprep.subr.bf16.mxu0 0
    %2381 = vmatpush1.bf16.msra.mxu0 0
    %2382 = vmatprep.subr.bf16.mxu0 0
    %2383 = vmatpush1.bf16.msra.mxu0 0
    %2384 = vmatprep.subr.bf16.mxu0 0
    %2385 = vmatpush1.bf16.msra.mxu0 0
    %2386 = vmatprep.subr.bf16.mxu0 0
    %2387 = vmatpush1.bf16.msra.mxu0 0
    %2388 = vmatprep.mubr.bf16.mxu0 0
    %2389 = vmatmul.mubr.bf16.gmra.mrb[0].mxu0 %v2333
    %v2390 = vpop.f32.mrb[0].mxu0
    %v2391 = vadd.f32 0.0, %v2390
    %v2392 = vpop.f32.mrb[0].mxu0
    %v2393 = vpop.f32.mrb[0].mxu0
    %v2394 = vadd.f32 0.0, %v2393
    %v2395 = vpop.f32.mrb[0].mxu0
    %2396 = vmatprep.mubr.bf16.mxu0 0
    %2397 = vmatmul.mubr.bf16.gmra.mrb[0].mxu0 %v2336
    %v2398 = vpop.f32.mrb[0].mxu0
    %v2399 = vadd.f32 0.0, %v2398
    %v2400 = vpop.f32.mrb[0].mxu0
    %v2401 = vpop.f32.mrb[0].mxu0
    %v2402 = vadd.f32 0.0, %v2401
    %v2403 = vpop.f32.mrb[0].mxu0
    %2404 = vmatprep.mubr.bf16.mxu0 0
    %2405 = vmatmul.mubr.bf16.gmra.mrb[0].mxu0 %v2339
    %v2406 = vpop.f32.mrb[0].mxu0
    %v2407 = vadd.f32 0.0, %v2406
    %v2408 = vpop.f32.mrb[0].mxu0
    %v2409 = vpop.f32.mrb[0].mxu0
    %v2410 = vadd.f32 0.0, %v2409
    %v2411 = vpop.f32.mrb[0].mxu0
    %2412 = vmatprep.mubr.bf16.mxu0 0
    %2413 = vmatmul.mubr.bf16.gmra.mrb[0].mxu0 %v2342
    %v2414 = vpop.f32.mrb[0].mxu0
    %v2415 = vadd.f32 0.0, %v2414
    %v2416 = vpop.f32.mrb[0].mxu0
    %v2417 = vpop.f32.mrb[0].mxu0
    %v2418 = vadd.f32 0.0, %v2417
    %v2419 = vpop.f32.mrb[0].mxu0
    %2420 = vmatprep.mubr.bf16.mxu0 0
    %2421 = vmatmul.mubr.bf16.gmra.mrb[0].mxu0 %v2345
    %v2422 = vpop.f32.mrb[0].mxu0
    %v2423 = vadd.f32 0.0, %v2422
    %v2424 = vpop.f32.mrb[0].mxu0
    %v2425 = vpop.f32.mrb[0].mxu0
    %v2426 = vadd.f32 0.0, %v2425
    %v2427 = vpop.f32.mrb[0].mxu0
    %2428 = vmatprep.mubr.bf16.mxu0 0
    %2429 = vmatmul.mubr.bf16.gmra.mrb[0].mxu0 %v2348
    %v2430 = vpop.f32.mrb[0].mxu0
    %v2431 = vadd.f32 0.0, %v2430
    %v2432 = vpop.f32.mrb[0].mxu0
    %v2433 = vpop.f32.mrb[0].mxu0
    %v2434 = vadd.f32 0.0, %v2433
    %v2435 = vpop.f32.mrb[0].mxu0
    %2436 = vmatprep.mubr.bf16.mxu0 0
    %2437 = vmatmul.mubr.bf16.gmra.mrb[0].mxu0 %v2351
    %v2438 = vpop.f32.mrb[0].mxu0
    %v2439 = vadd.f32 0.0, %v2438
    %v2440 = vpop.f32.mrb[0].mxu0
    %v2441 = vpop.f32.mrb[0].mxu0
    %v2442 = vadd.f32 0.0, %v2441
    %v2443 = vpop.f32.mrb[0].mxu0
    %2444 = vmatprep.mubr.bf16.mxu0 0
    %2445 = vmatmul.mubr.bf16.gmra.mrb[0].mxu0 %v2354
    %v2446 = vpop.f32.mrb[0].mxu0
    %v2447 = vadd.f32 0.0, %v2446
    %v2448 = vpop.f32.mrb[0].mxu0
    %v2449 = vpop.f32.mrb[0].mxu0
    %v2450 = vadd.f32 0.0, %v2449
    %v2451 = vpop.f32.mrb[0].mxu0
    %2452 = vdwg.mxu0
    %v2453 = vmul.f32 %v2391, %v126
    %v2454 = vmul.f32 %v2394, %v127
    %v2455 = vmul.f32 %v2399, %v128
    %v2456 = vmul.f32 %v2402, %v129
    %v2457 = vmul.f32 %v2407, %v130
    %v2458 = vmul.f32 %v2410, %v131
    %v2459 = vmul.f32 %v2415, %v132
    %v2460 = vmul.f32 %v2418, %v133
    %v2461 = vmul.f32 %v2423, %v134
    %v2462 = vmul.f32 %v2426, %v135
    %v2463 = vmul.f32 %v2431, %v136
    %v2464 = vmul.f32 %v2434, %v137
    %v2465 = vmul.f32 %v2439, %v138
    %v2466 = vmul.f32 %v2442, %v139
    %v2467 = vmul.f32 %v2447, %v140
    %v2468 = vmul.f32 %v2450, %v141
    %v2469 = vsel %vm255, %v2453, 0.0
    %v2470 = vsel %vm255, %v2457, 0.0
    %v2471 = vadd.f32 %v2469, %v2470
    %v2472 = vsel %vm255, %v2461, 0.0
    %v2473 = vadd.f32 %v2471, %v2472
    %v2474 = vsel %vm255, %v2465, 0.0
    %v2475 = vadd.f32 %v2473, %v2474
    %v2476 = vsel %vm255, %v2454, 0.0
    %v2477 = vsel %vm255, %v2458, 0.0
    %v2478 = vadd.f32 %v2476, %v2477
    %v2479 = vsel %vm255, %v2462, 0.0
    %v2480 = vadd.f32 %v2478, %v2479
    %v2481 = vsel %vm255, %v2466, 0.0
    %v2482 = vadd.f32 %v2480, %v2481
    %v2483 = vsel %vm255, %v2455, 0.0
    %v2484 = vsel %vm255, %v2459, 0.0
    %v2485 = vadd.f32 %v2483, %v2484
    %v2486 = vsel %vm255, %v2463, 0.0
    %v2487 = vadd.f32 %v2485, %v2486
    %v2488 = vsel %vm255, %v2467, 0.0
    %v2489 = vadd.f32 %v2487, %v2488
    %v2490 = vsel %vm255, %v2456, 0.0
    %v2491 = vsel %vm255, %v2460, 0.0
    %v2492 = vadd.f32 %v2490, %v2491
    %v2493 = vsel %vm255, %v2464, 0.0
    %v2494 = vadd.f32 %v2492, %v2493
    %v2495 = vsel %vm255, %v2468, 0.0
    %v2496 = vadd.f32 %v2494, %v2495
    %s2497 = scalar_lea.vmem %s11, 32
    %v2498 = vld [vmem:[%s2497] sm:$0xf]
    %v2499 = vld [vmem:[%s2497 + $0x4] sm:$0xf]
    %v2500 = vld [vmem:[%s2497 + $0x8] sm:$0xf]
    %v2501 = vld [vmem:[%s2497 + $0xc] sm:$0xf]
    %v2502 = vld [vmem:[%s2497 + $0x10] sm:$0xf]
    %v2503 = vld [vmem:[%s2497 + $0x14] sm:$0xf]
    %v2504 = vld [vmem:[%s2497 + $0x18] sm:$0xf]
    %v2505 = vld [vmem:[%s2497 + $0x1c] sm:$0xf]
    %v2506 = vpack.c.bf16 %v2482, %v2475
    %v2507 = vpack.c.bf16 %v2496, %v2489
    %v2516 = vunpack.c.l.b16 %v2498
    %v2517 = vunpack.c.l.b16 %v2499
    %v2518 = vunpack.c.l.b16 %v2500
    %v2519 = vunpack.c.l.b16 %v2501
    %v2520 = vunpack.c.l.b16 %v2502
    %v2521 = vunpack.c.l.b16 %v2503
    %v2522 = vunpack.c.l.b16 %v2504
    %v2523 = vunpack.c.l.b16 %v2505
    %v2524 = vpack.c.b16 %v2517, %v2516
    %v2525 = vpack.c.b16 %v2519, %v2518
    %v2526 = vpack.c.b16 %v2521, %v2520
    %v2527 = vpack.c.b16 %v2523, %v2522
    %v2533 = vsel %vm255, %v2506, 0
    %v2536 = vsel %vm255, %v2507, 0
    %2538 = vmatprep.subr.bf16.mxu0 0
    %2539 = vmatpush1.bf16.msra.mxu0 %v2524
    %2540 = vmatprep.subr.bf16.mxu0 0
    %2541 = vmatpush1.bf16.msra.mxu0 %v2525
    %2542 = vmatprep.subr.bf16.mxu0 0
    %2543 = vmatpush1.bf16.msra.mxu0 %v2526
    %2544 = vmatprep.subr.bf16.mxu0 0
    %2545 = vmatpush1.bf16.msra.mxu0 %v2527
    %2546 = vmatprep.subr.bf16.mxu0 0
    %2547 = vmatpush1.bf16.msra.mxu0 0
    %2548 = vmatprep.subr.bf16.mxu0 0
    %2549 = vmatpush1.bf16.msra.mxu0 0
    %2550 = vmatprep.subr.bf16.mxu0 0
    %2551 = vmatpush1.bf16.msra.mxu0 0
    %2552 = vmatprep.subr.bf16.mxu0 0
    %2553 = vmatpush1.bf16.msra.mxu0 0
    %2554 = vmatprep.subr.bf16.mxu0 0
    %2555 = vmatpush1.bf16.msra.mxu0 0
    %2556 = vmatprep.subr.bf16.mxu0 0
    %2557 = vmatpush1.bf16.msra.mxu0 0
    %2558 = vmatprep.subr.bf16.mxu0 0
    %2559 = vmatpush1.bf16.msra.mxu0 0
    %2560 = vmatprep.subr.bf16.mxu0 0
    %2561 = vmatpush1.bf16.msra.mxu0 0
    %2562 = vmatprep.subr.bf16.mxu0 0
    %2563 = vmatpush1.bf16.msra.mxu0 0
    %2564 = vmatprep.subr.bf16.mxu0 0
    %2565 = vmatpush1.bf16.msra.mxu0 0
    %2566 = vmatprep.subr.bf16.mxu0 0
    %2567 = vmatpush1.bf16.msra.mxu0 0
    %2568 = vmatprep.subr.bf16.mxu0 0
    %2569 = vmatpush1.bf16.msra.mxu0 0
    %2570 = vmatprep.mubr.bf16.mxu0 0
    %2571 = vmatmul.mubr.bf16.gmra.mrb[0].mxu0 %v2533
    %v2572 = vpop.f32.mrb[0].mxu0
    %v2573 = vadd.f32 0.0, %v2572
    %v2574 = vpop.f32.mrb[0].mxu0
    %v2575 = vpop.f32.mrb[0].mxu0
    %v2576 = vadd.f32 0.0, %v2575
    %v2577 = vpop.f32.mrb[0].mxu0
    %2578 = vmatprep.mubr.bf16.mxu0 0
    %2579 = vmatmul.mubr.bf16.gmra.mrb[0].mxu0 %v2536
    %v2580 = vpop.f32.mrb[0].mxu0
    %v2581 = vadd.f32 0.0, %v2580
    %v2582 = vpop.f32.mrb[0].mxu0
    %v2583 = vpop.f32.mrb[0].mxu0
    %v2584 = vadd.f32 0.0, %v2583
    %v2585 = vpop.f32.mrb[0].mxu0
    %2586 = vdwg.mxu0
    %v2587 = vadd.f32 %v1617, %v2573
    %v2588 = vadd.f32 %v1618, %v2576
    %v2589 = vadd.f32 %v1619, %v2581
    %v2590 = vadd.f32 %v1620, %v2584
    %s2591 = scalar_lea.vmem %s12, 1
    %v2592 = vld [vmem:[%s2591] sm:$0x1]
    %v2594 = vlaneseq
    %v2595 = vshrl.u32 %v2594, 7
    %v2596 = vsub.s32 0, %v2595
    %v2597 = vrot.slane %v2592, %v2596
    %v2599 = vadd.f32 %v2587, %v2597
    %v2600 = vadd.f32 %v2588, %v2597
    %v2601 = vadd.f32 %v2589, %v2597
    %v2602 = vadd.f32 %v2590, %v2597
    %v2603 = vsel %vm255, %v2599, 0.0
    %2604 = vadd.xlane.f32.xlu0 %v2603
    %v2605 = vpop.xlane.xlu0 %2604
    %v2606 = vsel %vm255, %v2600, 0.0
    %2607 = vadd.xlane.f32.xlu0 %v2606
    %v2608 = vpop.xlane.xlu0 %2607
    %v2609 = vsel %vm255, %v2601, 0.0
    %2610 = vadd.xlane.f32.xlu0 %v2609
    %v2611 = vpop.xlane.xlu0 %2610
    %v2612 = vsel %vm255, %v2602, 0.0
    %2613 = vadd.xlane.f32.xlu0 %v2612
    %v2614 = vpop.xlane.xlu0 %2613
    %v2615 = vmul.f32 %v2605, %v330
    %v2616 = vmul.f32 %v2608, %v330
    %v2617 = vmul.f32 %v2611, %v330
    %v2618 = vmul.f32 %v2614, %v330
    %v2619 = vsub.f32 %v2599, %v2615
    %v2620 = vsub.f32 %v2600, %v2616
    %v2621 = vsub.f32 %v2601, %v2617
    %v2622 = vsub.f32 %v2602, %v2618
    %v2623 = vmul.f32 %v2619, %v2619
    %v2624 = vmul.f32 %v2620, %v2620
    %v2625 = vmul.f32 %v2621, %v2621
    %v2626 = vmul.f32 %v2622, %v2622
    %v2627 = vsel %vm255, %v2623, 0.0
    %2628 = vadd.xlane.f32.xlu0 %v2627
    %v2629 = vpop.xlane.xlu0 %2628
    %v2630 = vsel %vm255, %v2624, 0.0
    %2631 = vadd.xlane.f32.xlu0 %v2630
    %v2632 = vpop.xlane.xlu0 %2631
    %v2633 = vsel %vm255, %v2625, 0.0
    %2634 = vadd.xlane.f32.xlu0 %v2633
    %v2635 = vpop.xlane.xlu0 %2634
    %v2636 = vsel %vm255, %v2626, 0.0
    %2637 = vadd.xlane.f32.xlu0 %v2636
    %v2638 = vpop.xlane.xlu0 %2637
    %v2639 = vmul.f32 %v2629, %v330
    %v2640 = vmul.f32 %v2632, %v330
    %v2641 = vmul.f32 %v2635, %v330
    %v2642 = vmul.f32 %v2638, %v330
    %v2643 = vadd.f32 %v2639, 1e-05
    %v2644 = vadd.f32 %v2640, 1e-05
    %v2645 = vadd.f32 %v2641, 1e-05
    %v2646 = vadd.f32 %v2642, 1e-05
    %v2647 = vrsqrt.pop %v2643
    %v2648 = vrsqrt.pop %v2644
    %v2649 = vrsqrt.pop %v2645
    %v2650 = vrsqrt.pop %v2646
    %v2651 = vmul.f32 %v2619, %v2647
    %v2652 = vmul.f32 %v2620, %v2648
    %v2653 = vmul.f32 %v2621, %v2649
    %v2654 = vmul.f32 %v2622, %v2650
    %v2655 = vlaneseq
    %v2656 = vshrl.u32 %v2655, 7
    %v2657 = vsub.s32 1, %v2656
    %v2658 = vrot.slane %v1622, %v2657
    %v2659 = vmul.f32 %v2651, %v2658
    %v2660 = vmul.f32 %v2652, %v2658
    %v2661 = vmul.f32 %v2653, %v2658
    %v2662 = vmul.f32 %v2654, %v2658
    %v2663 = vlaneseq
    %v2664 = vshrl.u32 %v2663, 7
    %v2665 = vsub.s32 1, %v2664
    %v2666 = vrot.slane %v1624, %v2665
    %v2667 = vadd.f32 %v2659, %v2666
    %v2668 = vadd.f32 %v2660, %v2666
    %v2669 = vadd.f32 %v2661, %v2666
    %v2670 = vadd.f32 %v2662, %v2666
    %s2671 = scalar_lea.vmem %s13, 32
    %v2672 = vld [vmem:[%s2671] sm:$0xf]
    %v2673 = vld [vmem:[%s2671 + $0x4] sm:$0xf]
    %v2674 = vld [vmem:[%s2671 + $0x8] sm:$0xf]
    %v2675 = vld [vmem:[%s2671 + $0xc] sm:$0xf]
    %v2676 = vld [vmem:[%s2671 + $0x10] sm:$0xf]
    %v2677 = vld [vmem:[%s2671 + $0x14] sm:$0xf]
    %v2678 = vld [vmem:[%s2671 + $0x18] sm:$0xf]
    %v2679 = vld [vmem:[%s2671 + $0x1c] sm:$0xf]
    %v2680 = vpack.c.bf16 %v2668, %v2667
    %v2681 = vpack.c.bf16 %v2670, %v2669
    %s2682 = scalar_lea.vmem %s14, 1
    %v2683 = vld [vmem:[%s2682] sm:$0x1]
    %v2685 = vlaneseq
    %v2686 = vshrl.u32 %v2685, 7
    %v2687 = vsub.s32 0, %v2686
    %v2688 = vrot.slane %v2683, %v2687
    %v2698 = vunpack.c.l.b16 %v2672
    %v2699 = vunpack.c.l.b16 %v2673
    %v2700 = vunpack.c.l.b16 %v2674
    %v2701 = vunpack.c.l.b16 %v2675
    %v2702 = vunpack.c.l.b16 %v2676
    %v2703 = vunpack.c.l.b16 %v2677
    %v2704 = vunpack.c.l.b16 %v2678
    %v2705 = vunpack.c.l.b16 %v2679
    %v2706 = vpack.c.b16 %v2699, %v2698
    %v2707 = vpack.c.b16 %v2701, %v2700
    %v2708 = vpack.c.b16 %v2703, %v2702
    %v2709 = vpack.c.b16 %v2705, %v2704
    %v2715 = vsel %vm255, %v2680, 0
    %v2718 = vsel %vm255, %v2681, 0
    %2720 = vmatprep.subr.bf16.mxu0 0
    %2721 = vmatpush1.bf16.msra.mxu0 %v2706
    %2722 = vmatprep.subr.bf16.mxu0 0
    %2723 = vmatpush1.bf16.msra.mxu0 %v2707
    %2724 = vmatprep.subr.bf16.mxu0 0
    %2725 = vmatpush1.bf16.msra.mxu0 %v2708
    %2726 = vmatprep.subr.bf16.mxu0 0
    %2727 = vmatpush1.bf16.msra.mxu0 %v2709
    %2728 = vmatprep.subr.bf16.mxu0 0
    %2729 = vmatpush1.bf16.msra.mxu0 0
    %2730 = vmatprep.subr.bf16.mxu0 0
    %2731 = vmatpush1.bf16.msra.mxu0 0
    %2732 = vmatprep.subr.bf16.mxu0 0
    %2733 = vmatpush1.bf16.msra.mxu0 0
    %2734 = vmatprep.subr.bf16.mxu0 0
    %2735 = vmatpush1.bf16.msra.mxu0 0
    %2736 = vmatprep.subr.bf16.mxu0 0
    %2737 = vmatpush1.bf16.msra.mxu0 0
    %2738 = vmatprep.subr.bf16.mxu0 0
    %2739 = vmatpush1.bf16.msra.mxu0 0
    %2740 = vmatprep.subr.bf16.mxu0 0
    %2741 = vmatpush1.bf16.msra.mxu0 0
    %2742 = vmatprep.subr.bf16.mxu0 0
    %2743 = vmatpush1.bf16.msra.mxu0 0
    %2744 = vmatprep.subr.bf16.mxu0 0
    %2745 = vmatpush1.bf16.msra.mxu0 0
    %2746 = vmatprep.subr.bf16.mxu0 0
    %2747 = vmatpush1.bf16.msra.mxu0 0
    %2748 = vmatprep.subr.bf16.mxu0 0
    %2749 = vmatpush1.bf16.msra.mxu0 0
    %2750 = vmatprep.subr.bf16.mxu0 0
    %2751 = vmatpush1.bf16.msra.mxu0 0
    %2752 = vmatprep.mubr.bf16.mxu0 0
    %2753 = vmatmul.mubr.bf16.gmra.mrb[0].mxu0 %v2715
    %v2754 = vpop.f32.mrb[0].mxu0
    %v2755 = vadd.f32 %v2688, %v2754
    %v2756 = vpop.f32.mrb[0].mxu0
    %v2757 = vpop.f32.mrb[0].mxu0
    %v2758 = vadd.f32 %v2688, %v2757
    %v2759 = vpop.f32.mrb[0].mxu0
    %2760 = vmatprep.mubr.bf16.mxu0 0
    %2761 = vmatmul.mubr.bf16.gmra.mrb[0].mxu0 %v2718
    %v2762 = vpop.f32.mrb[0].mxu0
    %v2763 = vadd.f32 %v2688, %v2762
    %v2764 = vpop.f32.mrb[0].mxu0
    %v2765 = vpop.f32.mrb[0].mxu0
    %v2766 = vadd.f32 %v2688, %v2765
    %v2767 = vpop.f32.mrb[0].mxu0
    %2768 = vdwg.mxu0
    %v2769 = vmul.f32 %v2755, %v2755
    %v2770 = vmul.f32 %v2758, %v2758
    %v2771 = vmul.f32 %v2763, %v2763
    %v2772 = vmul.f32 %v2766, %v2766
    %v2773 = vmul.f32 %v2755, %v2769
    %v2774 = vmul.f32 %v2758, %v2770
    %v2775 = vmul.f32 %v2763, %v2771
    %v2776 = vmul.f32 %v2766, %v2772
    %v2777 = vmul.f32 %v2773, 0.044715
    %v2778 = vmul.f32 %v2774, 0.044715
    %v2779 = vmul.f32 %v2775, 0.044715
    %v2780 = vmul.f32 %v2776, 0.044715
    %v2781 = vadd.f32 %v2755, %v2777
    %v2782 = vadd.f32 %v2758, %v2778
    %v2783 = vadd.f32 %v2763, %v2779
    %v2784 = vadd.f32 %v2766, %v2780
    %v2785 = vmul.f32 %v2781, 0.7978846
    %v2786 = vmul.f32 %v2782, 0.7978846
    %v2787 = vmul.f32 %v2783, 0.7978846
    %v2788 = vmul.f32 %v2784, 0.7978846
    %v2789 = vtanh.pop %v2785
    %v2790 = vtanh.pop %v2786
    %v2791 = vtanh.pop %v2787
    %v2792 = vtanh.pop %v2788
    %v2793 = vadd.f32 %v2789, 1.0
    %v2794 = vadd.f32 %v2790, 1.0
    %v2795 = vadd.f32 %v2791, 1.0
    %v2796 = vadd.f32 %v2792, 1.0
    %v2797 = vmul.f32 %v2793, 0.5
    %v2798 = vmul.f32 %v2794, 0.5
    %v2799 = vmul.f32 %v2795, 0.5
    %v2800 = vmul.f32 %v2796, 0.5
    %v2801 = vmul.f32 %v2755, %v2797
    %v2802 = vmul.f32 %v2758, %v2798
    %v2803 = vmul.f32 %v2763, %v2799
    %v2804 = vmul.f32 %v2766, %v2800
    %s2805 = scalar_lea.vmem %s15, 64
    %v2806 = vld [vmem:[%s2805] sm:$0xf]
    %v2807 = vld [vmem:[%s2805 + $0x4] sm:$0xf]
    %v2808 = vld [vmem:[%s2805 + $0x8] sm:$0xf]
    %v2809 = vld [vmem:[%s2805 + $0xc] sm:$0xf]
    %v2810 = vld [vmem:[%s2805 + $0x10] sm:$0xf]
    %v2811 = vld [vmem:[%s2805 + $0x14] sm:$0xf]
    %v2812 = vld [vmem:[%s2805 + $0x18] sm:$0xf]
    %v2813 = vld [vmem:[%s2805 + $0x1c] sm:$0xf]
    %v2814 = vld [vmem:[%s2805 + $0x20] sm:$0xf]
    %v2815 = vld [vmem:[%s2805 + $0x24] sm:$0xf]
    %v2816 = vld [vmem:[%s2805 + $0x28] sm:$0xf]
    %v2817 = vld [vmem:[%s2805 + $0x2c] sm:$0xf]
    %v2818 = vld [vmem:[%s2805 + $0x30] sm:$0xf]
    %v2819 = vld [vmem:[%s2805 + $0x34] sm:$0xf]
    %v2820 = vld [vmem:[%s2805 + $0x38] sm:$0xf]
    %v2821 = vld [vmem:[%s2805 + $0x3c] sm:$0xf]
    %v2822 = vpack.c.bf16 %v2802, %v2801
    %v2823 = vpack.c.bf16 %v2804, %v2803
    %v2840 = vunpack.c.l.b16 %v2806
    %v2841 = vunpack.c.l.b16 %v2807
    %v2842 = vunpack.c.l.b16 %v2808
    %v2843 = vunpack.c.l.b16 %v2809
    %v2844 = vunpack.c.l.b16 %v2810
    %v2845 = vunpack.c.l.b16 %v2811
    %v2846 = vunpack.c.l.b16 %v2812
    %v2847 = vunpack.c.l.b16 %v2813
    %v2848 = vunpack.c.l.b16 %v2814
    %v2849 = vunpack.c.l.b16 %v2815
    %v2850 = vunpack.c.l.b16 %v2816
    %v2851 = vunpack.c.l.b16 %v2817
    %v2852 = vunpack.c.l.b16 %v2818
    %v2853 = vunpack.c.l.b16 %v2819
    %v2854 = vunpack.c.l.b16 %v2820
    %v2855 = vunpack.c.l.b16 %v2821
    %v2856 = vpack.c.b16 %v2841, %v2840
    %v2857 = vpack.c.b16 %v2843, %v2842
    %v2858 = vpack.c.b16 %v2845, %v2844
    %v2859 = vpack.c.b16 %v2847, %v2846
    %v2860 = vpack.c.b16 %v2849, %v2848
    %v2861 = vpack.c.b16 %v2851, %v2850
    %v2862 = vpack.c.b16 %v2853, %v2852
    %v2863 = vpack.c.b16 %v2855, %v2854
    %2872 = vmatprep.subr.bf16.mxu0 0
    %2873 = vmatpush1.bf16.msra.mxu0 %v2856
    %2874 = vmatprep.subr.bf16.mxu0 0
    %2875 = vmatpush1.bf16.msra.mxu0 %v2857
    %2876 = vmatprep.subr.bf16.mxu0 0
    %2877 = vmatpush1.bf16.msra.mxu0 %v2858
    %2878 = vmatprep.subr.bf16.mxu0 0
    %2879 = vmatpush1.bf16.msra.mxu0 %v2859
    %2880 = vmatprep.subr.bf16.mxu0 0
    %2881 = vmatpush1.bf16.msra.mxu0 %v2860
    %2882 = vmatprep.subr.bf16.mxu0 0
    %2883 = vmatpush1.bf16.msra.mxu0 %v2861
    %2884 = vmatprep.subr.bf16.mxu0 0
    %2885 = vmatpush1.bf16.msra.mxu0 %v2862
    %2886 = vmatprep.subr.bf16.mxu0 0
    %2887 = vmatpush1.bf16.msra.mxu0 %v2863
    %2888 = vmatprep.subr.bf16.mxu0 0
    %2889 = vmatpush1.bf16.msra.mxu0 0
    %2890 = vmatprep.subr.bf16.mxu0 0
    %2891 = vmatpush1.bf16.msra.mxu0 0
    %2892 = vmatprep.subr.bf16.mxu0 0
    %2893 = vmatpush1.bf16.msra.mxu0 0
    %2894 = vmatprep.subr.bf16.mxu0 0
    %2895 = vmatpush1.bf16.msra.mxu0 0
    %2896 = vmatprep.subr.bf16.mxu0 0
    %2897 = vmatpush1.bf16.msra.mxu0 0
    %2898 = vmatprep.subr.bf16.mxu0 0
    %2899 = vmatpush1.bf16.msra.mxu0 0
    %2900 = vmatprep.subr.bf16.mxu0 0
    %2901 = vmatpush1.bf16.msra.mxu0 0
    %2902 = vmatprep.subr.bf16.mxu0 0
    %2903 = vmatpush1.bf16.msra.mxu0 0
    %2904 = vmatprep.mubr.bf16.mxu0 0
    %2905 = vmatmul.mubr.bf16.gmra.mrb[0].mxu0 %v2822
    %v2906 = vpop.f32.mrb[0].mxu0
    %v2907 = vadd.f32 0.0, %v2906
    %v2908 = vpop.f32.mrb[0].mxu0
    %v2909 = vpop.f32.mrb[0].mxu0
    %v2910 = vadd.f32 0.0, %v2909
    %v2911 = vpop.f32.mrb[0].mxu0
    %2912 = vmatprep.mubr.bf16.mxu0 0
    %2913 = vmatmul.mubr.bf16.gmra.mrb[0].mxu0 %v2823
    %v2914 = vpop.f32.mrb[0].mxu0
    %v2915 = vadd.f32 0.0, %v2914
    %v2916 = vpop.f32.mrb[0].mxu0
    %v2917 = vpop.f32.mrb[0].mxu0
    %v2918 = vadd.f32 0.0, %v2917
    %v2919 = vpop.f32.mrb[0].mxu0
    %2920 = vdwg.mxu0
    %v2921 = vadd.f32 %v2599, %v2907
    %v2922 = vadd.f32 %v2600, %v2910
    %v2923 = vadd.f32 %v2601, %v2915
    %v2924 = vadd.f32 %v2602, %v2918
    %s2925 = scalar_lea.vmem %s16, 1
    %v2926 = vld [vmem:[%s2925] sm:$0x1]
    %v2928 = vlaneseq
    %v2929 = vshrl.u32 %v2928, 7
    %v2930 = vsub.s32 0, %v2929
    %v2931 = vrot.slane %v2926, %v2930
    %v2933 = vadd.f32 %v2921, %v2931
    %v2934 = vadd.f32 %v2922, %v2931
    %v2935 = vadd.f32 %v2923, %v2931
    %v2936 = vadd.f32 %v2924, %v2931
    %v2937 = vadd.f32 %v2933, %v208
    %v2938 = vadd.f32 %v2934, %v209
    %v2939 = vadd.f32 %v2935, %v208
    %v2940 = vadd.f32 %v2936, %v209
    %s2941 = scalar_lea.vmem %s5, 4
    %v2942 = vld [vmem:[%s2941] sm:$0x3]
    %s2943 = scalar_lea.vmem %s6, 4
    %v2944 = vld [vmem:[%s2943] sm:$0x3]
    %s2945 = scalar_lea.vmem %s10, 8
    %v2946 = vld [vmem:[%s2945] sm:$0x7]
    %v2947 = vsel %vm255, %v2937, 0.0
    %2948 = vadd.xlane.f32.xlu0 %v2947
    %v2949 = vpop.xlane.xlu0 %2948
    %v2950 = vsel %vm255, %v2938, 0.0
    %2951 = vadd.xlane.f32.xlu0 %v2950
    %v2952 = vpop.xlane.xlu0 %2951
    %v2953 = vsel %vm255, %v2939, 0.0
    %2954 = vadd.xlane.f32.xlu0 %v2953
    %v2955 = vpop.xlane.xlu0 %2954
    %v2956 = vsel %vm255, %v2940, 0.0
    %2957 = vadd.xlane.f32.xlu0 %v2956
    %v2958 = vpop.xlane.xlu0 %2957
    %v2959 = vmul.f32 %v2949, %v330
    %v2960 = vmul.f32 %v2952, %v330
    %v2961 = vmul.f32 %v2955, %v330
    %v2962 = vmul.f32 %v2958, %v330
    %v2963 = vsub.f32 %v2937, %v2959
    %v2964 = vsub.f32 %v2938, %v2960
    %v2965 = vsub.f32 %v2939, %v2961
    %v2966 = vsub.f32 %v2940, %v2962
    %v2967 = vmul.f32 %v2963, %v2963
    %v2968 = vmul.f32 %v2964, %v2964
    %v2969 = vmul.f32 %v2965, %v2965
    %v2970 = vmul.f32 %v2966, %v2966
    %v2971 = vsel %vm255, %v2967, 0.0
    %2972 = vadd.xlane.f32.xlu0 %v2971
    %v2973 = vpop.xlane.xlu0 %2972
    %v2974 = vsel %vm255, %v2968, 0.0
    %2975 = vadd.xlane.f32.xlu0 %v2974
    %v2976 = vpop.xlane.xlu0 %2975
    %v2977 = vsel %vm255, %v2969, 0.0
    %2978 = vadd.xlane.f32.xlu0 %v2977
    %v2979 = vpop.xlane.xlu0 %2978
    %v2980 = vsel %vm255, %v2970, 0.0
    %2981 = vadd.xlane.f32.xlu0 %v2980
    %v2982 = vpop.xlane.xlu0 %2981
    %v2983 = vmul.f32 %v2973, %v330
    %v2984 = vmul.f32 %v2976, %v330
    %v2985 = vmul.f32 %v2979, %v330
    %v2986 = vmul.f32 %v2982, %v330
    %v2987 = vadd.f32 %v2983, 1e-05
    %v2988 = vadd.f32 %v2984, 1e-05
    %v2989 = vadd.f32 %v2985, 1e-05
    %v2990 = vadd.f32 %v2986, 1e-05
    %v2991 = vrsqrt.pop %v2987
    %v2992 = vrsqrt.pop %v2988
    %v2993 = vrsqrt.pop %v2989
    %v2994 = vrsqrt.pop %v2990
    %v2995 = vmul.f32 %v2963, %v2991
    %v2996 = vmul.f32 %v2964, %v2992
    %v2997 = vmul.f32 %v2965, %v2993
    %v2998 = vmul.f32 %v2966, %v2994
    %v2999 = vlaneseq
    %v3000 = vshrl.u32 %v2999, 7
    %v3001 = vsub.s32 0, %v3000
    %v3002 = vrot.slane %v2942, %v3001
    %v3003 = vmul.f32 %v2995, %v3002
    %v3004 = vmul.f32 %v2996, %v3002
    %v3005 = vmul.f32 %v2997, %v3002
    %v3006 = vmul.f32 %v2998, %v3002
    %v3007 = vlaneseq
    %v3008 = vshrl.u32 %v3007, 7
    %v3009 = vsub.s32 0, %v3008
    %v3010 = vrot.slane %v2944, %v3009
    %v3011 = vadd.f32 %v3003, %v3010
    %v3012 = vadd.f32 %v3004, %v3010
    %v3013 = vadd.f32 %v3005, %v3010
    %v3014 = vadd.f32 %v3006, %v3010
    %s3015 = scalar_lea.vmem %s7, 64
    %v3016 = vld [vmem:[%s3015] sm:$0xf]
    %v3017 = vld [vmem:[%s3015 + $0x4] sm:$0xf]
    %v3018 = vld [vmem:[%s3015 + $0x8] sm:$0xf]
    %v3019 = vld [vmem:[%s3015 + $0xc] sm:$0xf]
    %v3020 = vld [vmem:[%s3015 + $0x10] sm:$0xf]
    %v3021 = vld [vmem:[%s3015 + $0x14] sm:$0xf]
    %v3022 = vld [vmem:[%s3015 + $0x18] sm:$0xf]
    %v3023 = vld [vmem:[%s3015 + $0x1c] sm:$0xf]
    %v3024 = vpack.c.bf16 %v3012, %v3011
    %v3025 = vpack.c.bf16 %v3014, %v3013
    %v3026 = vlaneseq
    %v3027 = vshrl.u32 %v3026, 7
    %v3028 = vsub.s32 0, %v3027
    %v3029 = vrot.slane %v2946, %v3028
    %v3038 = vunpack.c.l.b16 %v3016
    %v3039 = vunpack.c.l.b16 %v3017
    %v3040 = vunpack.c.l.b16 %v3018
    %v3041 = vunpack.c.l.b16 %v3019
    %v3042 = vunpack.c.l.b16 %v3020
    %v3043 = vunpack.c.l.b16 %v3021
    %v3044 = vunpack.c.l.b16 %v3022
    %v3045 = vunpack.c.l.b16 %v3023
    %v3046 = vpack.c.b16 %v3039, %v3038
    %v3047 = vpack.c.b16 %v3041, %v3040
    %v3048 = vpack.c.b16 %v3043, %v3042
    %v3049 = vpack.c.b16 %v3045, %v3044
    %v3055 = vsel %vm255, %v3024, 0
    %v3058 = vsel %vm255, %v3025, 0
    %3060 = vmatprep.subr.bf16.mxu0 0
    %3061 = vmatpush1.bf16.msra.mxu0 %v3046
    %3062 = vmatprep.subr.bf16.mxu0 0
    %3063 = vmatpush1.bf16.msra.mxu0 %v3047
    %3064 = vmatprep.subr.bf16.mxu0 0
    %3065 = vmatpush1.bf16.msra.mxu0 %v3048
    %3066 = vmatprep.subr.bf16.mxu0 0
    %3067 = vmatpush1.bf16.msra.mxu0 %v3049
    %3068 = vmatprep.subr.bf16.mxu0 0
    %3069 = vmatpush1.bf16.msra.mxu0 0
    %3070 = vmatprep.subr.bf16.mxu0 0
    %3071 = vmatpush1.bf16.msra.mxu0 0
    %3072 = vmatprep.subr.bf16.mxu0 0
    %3073 = vmatpush1.bf16.msra.mxu0 0
    %3074 = vmatprep.subr.bf16.mxu0 0
    %3075 = vmatpush1.bf16.msra.mxu0 0
    %3076 = vmatprep.subr.bf16.mxu0 0
    %3077 = vmatpush1.bf16.msra.mxu0 0
    %3078 = vmatprep.subr.bf16.mxu0 0
    %3079 = vmatpush1.bf16.msra.mxu0 0
    %3080 = vmatprep.subr.bf16.mxu0 0
    %3081 = vmatpush1.bf16.msra.mxu0 0
    %3082 = vmatprep.subr.bf16.mxu0 0
    %3083 = vmatpush1.bf16.msra.mxu0 0
    %3084 = vmatprep.subr.bf16.mxu0 0
    %3085 = vmatpush1.bf16.msra.mxu0 0
    %3086 = vmatprep.subr.bf16.mxu0 0
    %3087 = vmatpush1.bf16.msra.mxu0 0
    %3088 = vmatprep.subr.bf16.mxu0 0
    %3089 = vmatpush1.bf16.msra.mxu0 0
    %3090 = vmatprep.subr.bf16.mxu0 0
    %3091 = vmatpush1.bf16.msra.mxu0 0
    %3092 = vmatprep.mubr.bf16.mxu0 0
    %3093 = vmatmul.mubr.bf16.gmra.mrb[0].mxu0 %v3055
    %v3094 = vpop.f32.mrb[0].mxu0
    %v3095 = vadd.f32 %v3029, %v3094
    %v3096 = vpop.f32.mrb[0].mxu0
    %v3097 = vpop.f32.mrb[0].mxu0
    %v3098 = vadd.f32 %v3029, %v3097
    %v3099 = vpop.f32.mrb[0].mxu0
    %3100 = vmatprep.mubr.bf16.mxu0 0
    %3101 = vmatmul.mubr.bf16.gmra.mrb[0].mxu0 %v3058
    %v3102 = vpop.f32.mrb[0].mxu0
    %v3103 = vadd.f32 %v3029, %v3102
    %v3104 = vpop.f32.mrb[0].mxu0
    %v3105 = vpop.f32.mrb[0].mxu0
    %v3106 = vadd.f32 %v3029, %v3105
    %v3107 = vpop.f32.mrb[0].mxu0
    %3108 = vdwg.mxu0
    %s3109 = scalar_lea.vmem %s8, 64
    %v3110 = vld [vmem:[%s3109] sm:$0xf]
    %v3111 = vld [vmem:[%s3109 + $0x4] sm:$0xf]
    %v3112 = vld [vmem:[%s3109 + $0x8] sm:$0xf]
    %v3113 = vld [vmem:[%s3109 + $0xc] sm:$0xf]
    %v3114 = vld [vmem:[%s3109 + $0x10] sm:$0xf]
    %v3115 = vld [vmem:[%s3109 + $0x14] sm:$0xf]
    %v3116 = vld [vmem:[%s3109 + $0x18] sm:$0xf]
    %v3117 = vld [vmem:[%s3109 + $0x1c] sm:$0xf]
    %v3118 = vlaneseq
    %v3119 = vshrl.u32 %v3118, 7
    %v3120 = vsub.s32 1, %v3119
    %v3121 = vrot.slane %v2946, %v3120
    %v3130 = vunpack.c.l.b16 %v3110
    %v3131 = vunpack.c.l.b16 %v3111
    %v3132 = vunpack.c.l.b16 %v3112
    %v3133 = vunpack.c.l.b16 %v3113
    %v3134 = vunpack.c.l.b16 %v3114
    %v3135 = vunpack.c.l.b16 %v3115
    %v3136 = vunpack.c.l.b16 %v3116
    %v3137 = vunpack.c.l.b16 %v3117
    %v3138 = vpack.c.b16 %v3131, %v3130
    %v3139 = vpack.c.b16 %v3133, %v3132
    %v3140 = vpack.c.b16 %v3135, %v3134
    %v3141 = vpack.c.b16 %v3137, %v3136
    %3146 = vmatprep.subr.bf16.mxu0 0
    %3147 = vmatpush1.bf16.msra.mxu0 %v3138
    %3148 = vmatprep.subr.bf16.mxu0 0
    %3149 = vmatpush1.bf16.msra.mxu0 %v3139
    %3150 = vmatprep.subr.bf16.mxu0 0
    %3151 = vmatpush1.bf16.msra.mxu0 %v3140
    %3152 = vmatprep.subr.bf16.mxu0 0
    %3153 = vmatpush1.bf16.msra.mxu0 %v3141
    %3154 = vmatprep.subr.bf16.mxu0 0
    %3155 = vmatpush1.bf16.msra.mxu0 0
    %3156 = vmatprep.subr.bf16.mxu0 0
    %3157 = vmatpush1.bf16.msra.mxu0 0
    %3158 = vmatprep.subr.bf16.mxu0 0
    %3159 = vmatpush1.bf16.msra.mxu0 0
    %3160 = vmatprep.subr.bf16.mxu0 0
    %3161 = vmatpush1.bf16.msra.mxu0 0
    %3162 = vmatprep.subr.bf16.mxu0 0
    %3163 = vmatpush1.bf16.msra.mxu0 0
    %3164 = vmatprep.subr.bf16.mxu0 0
    %3165 = vmatpush1.bf16.msra.mxu0 0
    %3166 = vmatprep.subr.bf16.mxu0 0
    %3167 = vmatpush1.bf16.msra.mxu0 0
    %3168 = vmatprep.subr.bf16.mxu0 0
    %3169 = vmatpush1.bf16.msra.mxu0 0
    %3170 = vmatprep.subr.bf16.mxu0 0
    %3171 = vmatpush1.bf16.msra.mxu0 0
    %3172 = vmatprep.subr.bf16.mxu0 0
    %3173 = vmatpush1.bf16.msra.mxu0 0
    %3174 = vmatprep.subr.bf16.mxu0 0
    %3175 = vmatpush1.bf16.msra.mxu0 0
    %3176 = vmatprep.subr.bf16.mxu0 0
    %3177 = vmatpush1.bf16.msra.mxu0 0
    %3178 = vmatprep.mubr.bf16.mxu0 0
    %3179 = vmatmul.mubr.bf16.gmra.mrb[0].mxu0 %v3055
    %v3180 = vpop.f32.mrb[0].mxu0
    %v3181 = vadd.f32 %v3121, %v3180
    %v3182 = vpop.f32.mrb[0].mxu0
    %v3183 = vpop.f32.mrb[0].mxu0
    %v3184 = vadd.f32 %v3121, %v3183
    %v3185 = vpop.f32.mrb[0].mxu0
    %3186 = vmatprep.mubr.bf16.mxu0 0
    %3187 = vmatmul.mubr.bf16.gmra.mrb[0].mxu0 %v3058
    %v3188 = vpop.f32.mrb[0].mxu0
    %v3189 = vadd.f32 %v3121, %v3188
    %v3190 = vpop.f32.mrb[0].mxu0
    %v3191 = vpop.f32.mrb[0].mxu0
    %v3192 = vadd.f32 %v3121, %v3191
    %v3193 = vpop.f32.mrb[0].mxu0
    %3194 = vdwg.mxu0
    %s3195 = scalar_lea.vmem %s9, 64
    %v3196 = vld [vmem:[%s3195] sm:$0xf]
    %v3197 = vld [vmem:[%s3195 + $0x4] sm:$0xf]
    %v3198 = vld [vmem:[%s3195 + $0x8] sm:$0xf]
    %v3199 = vld [vmem:[%s3195 + $0xc] sm:$0xf]
    %v3200 = vld [vmem:[%s3195 + $0x10] sm:$0xf]
    %v3201 = vld [vmem:[%s3195 + $0x14] sm:$0xf]
    %v3202 = vld [vmem:[%s3195 + $0x18] sm:$0xf]
    %v3203 = vld [vmem:[%s3195 + $0x1c] sm:$0xf]
    %v3204 = vlaneseq
    %v3205 = vshrl.u32 %v3204, 7
    %v3206 = vsub.s32 2, %v3205
    %v3207 = vrot.slane %v2946, %v3206
    %v3216 = vunpack.c.l.b16 %v3196
    %v3217 = vunpack.c.l.b16 %v3197
    %v3218 = vunpack.c.l.b16 %v3198
    %v3219 = vunpack.c.l.b16 %v3199
    %v3220 = vunpack.c.l.b16 %v3200
    %v3221 = vunpack.c.l.b16 %v3201
    %v3222 = vunpack.c.l.b16 %v3202
    %v3223 = vunpack.c.l.b16 %v3203
    %v3224 = vpack.c.b16 %v3217, %v3216
    %v3225 = vpack.c.b16 %v3219, %v3218
    %v3226 = vpack.c.b16 %v3221, %v3220
    %v3227 = vpack.c.b16 %v3223, %v3222
    %3232 = vmatprep.subr.bf16.mxu0 0
    %3233 = vmatpush1.bf16.msra.mxu0 %v3224
    %3234 = vmatprep.subr.bf16.mxu0 0
    %3235 = vmatpush1.bf16.msra.mxu0 %v3225
    %3236 = vmatprep.subr.bf16.mxu0 0
    %3237 = vmatpush1.bf16.msra.mxu0 %v3226
    %3238 = vmatprep.subr.bf16.mxu0 0
    %3239 = vmatpush1.bf16.msra.mxu0 %v3227
    %3240 = vmatprep.subr.bf16.mxu0 0
    %3241 = vmatpush1.bf16.msra.mxu0 0
    %3242 = vmatprep.subr.bf16.mxu0 0
    %3243 = vmatpush1.bf16.msra.mxu0 0
    %3244 = vmatprep.subr.bf16.mxu0 0
    %3245 = vmatpush1.bf16.msra.mxu0 0
    %3246 = vmatprep.subr.bf16.mxu0 0
    %3247 = vmatpush1.bf16.msra.mxu0 0
    %3248 = vmatprep.subr.bf16.mxu0 0
    %3249 = vmatpush1.bf16.msra.mxu0 0
    %3250 = vmatprep.subr.bf16.mxu0 0
    %3251 = vmatpush1.bf16.msra.mxu0 0
    %3252 = vmatprep.subr.bf16.mxu0 0
    %3253 = vmatpush1.bf16.msra.mxu0 0
    %3254 = vmatprep.subr.bf16.mxu0 0
    %3255 = vmatpush1.bf16.msra.mxu0 0
    %3256 = vmatprep.subr.bf16.mxu0 0
    %3257 = vmatpush1.bf16.msra.mxu0 0
    %3258 = vmatprep.subr.bf16.mxu0 0
    %3259 = vmatpush1.bf16.msra.mxu0 0
    %3260 = vmatprep.subr.bf16.mxu0 0
    %3261 = vmatpush1.bf16.msra.mxu0 0
    %3262 = vmatprep.subr.bf16.mxu0 0
    %3263 = vmatpush1.bf16.msra.mxu0 0
    %3264 = vmatprep.mubr.bf16.mxu0 0
    %3265 = vmatmul.mubr.bf16.gmra.mrb[0].mxu0 %v3055
    %v3266 = vpop.f32.mrb[0].mxu0
    %v3267 = vadd.f32 %v3207, %v3266
    %v3268 = vpop.f32.mrb[0].mxu0
    %v3269 = vpop.f32.mrb[0].mxu0
    %v3270 = vadd.f32 %v3207, %v3269
    %v3271 = vpop.f32.mrb[0].mxu0
    %3272 = vmatprep.mubr.bf16.mxu0 0
    %3273 = vmatmul.mubr.bf16.gmra.mrb[0].mxu0 %v3058
    %v3274 = vpop.f32.mrb[0].mxu0
    %v3275 = vadd.f32 %v3207, %v3274
    %v3276 = vpop.f32.mrb[0].mxu0
    %v3277 = vpop.f32.mrb[0].mxu0
    %v3278 = vadd.f32 %v3207, %v3277
    %v3279 = vpop.f32.mrb[0].mxu0
    %3280 = vdwg.mxu0
    %v3281 = vmul.f32 %v3095, %v126
    %v3282 = vmul.f32 %v3098, %v127
    %v3283 = vmul.f32 %v3103, %v128
    %v3284 = vmul.f32 %v3106, %v129
    %v3285 = vmul.f32 %v3095, %v130
    %v3286 = vmul.f32 %v3098, %v131
    %v3287 = vmul.f32 %v3103, %v132
    %v3288 = vmul.f32 %v3106, %v133
    %v3289 = vmul.f32 %v3095, %v134
    %v3290 = vmul.f32 %v3098, %v135
    %v3291 = vmul.f32 %v3103, %v136
    %v3292 = vmul.f32 %v3106, %v137
    %v3293 = vmul.f32 %v3095, %v138
    %v3294 = vmul.f32 %v3098, %v139
    %v3295 = vmul.f32 %v3103, %v140
    %v3296 = vmul.f32 %v3106, %v141
    %v3297 = vpack.c.bf16 %v3282, %v3281
    %v3298 = vpack.c.bf16 %v3284, %v3283
    %v3299 = vpack.c.bf16 %v3286, %v3285
    %v3300 = vpack.c.bf16 %v3288, %v3287
    %v3301 = vpack.c.bf16 %v3290, %v3289
    %v3302 = vpack.c.bf16 %v3292, %v3291
    %v3303 = vpack.c.bf16 %v3294, %v3293
    %v3304 = vpack.c.bf16 %v3296, %v3295
    %v3305 = vpack.c.bf16 %v3184, %v3181
    %v3306 = vpack.c.bf16 %v3192, %v3189
    %v3308 = vsel %vm255, %v3297, 0
    %v3311 = vsel %vm255, %v3298, 0
    %v3314 = vsel %vm255, %v3299, 0
    %v3317 = vsel %vm255, %v3300, 0
    %v3320 = vsel %vm255, %v3301, 0
    %v3323 = vsel %vm255, %v3302, 0
    %v3326 = vsel %vm255, %v3303, 0
    %v3329 = vsel %vm255, %v3304, 0
    %v3332 = vsel %vm255, %v3305, 0
    %v3335 = vsel %vm255, %v3306, 0
    %3337 = vmatprep.subr.bf16.mxu0 0
    %3338 = vmatpush1.bf16.xpose.msra.mxu0 %v3332
    %3339 = vmatprep.subr.bf16.mxu0 0
    %3340 = vmatpush1.bf16.xpose.msra.mxu0 %v3335
    %3341 = vmatprep.subr.bf16.mxu0 0
    %3342 = vmatpush1.bf16.xpose.msra.mxu0 0
    %3343 = vmatprep.subr.bf16.mxu0 0
    %3344 = vmatpush1.bf16.xpose.msra.mxu0 0
    %3345 = vmatprep.subr.bf16.mxu0 0
    %3346 = vmatpush1.bf16.xpose.msra.mxu0 0
    %3347 = vmatprep.subr.bf16.mxu0 0
    %3348 = vmatpush1.bf16.xpose.msra.mxu0 0
    %3349 = vmatprep.subr.bf16.mxu0 0
    %3350 = vmatpush1.bf16.xpose.msra.mxu0 0
    %3351 = vmatprep.subr.bf16.mxu0 0
    %3352 = vmatpush1.bf16.xpose.msra.mxu0 0
    %3353 = vmatprep.subr.bf16.mxu0 0
    %3354 = vmatpush1.bf16.xpose.msra.mxu0 0
    %3355 = vmatprep.subr.bf16.mxu0 0
    %3356 = vmatpush1.bf16.xpose.msra.mxu0 0
    %3357 = vmatprep.subr.bf16.mxu0 0
    %3358 = vmatpush1.bf16.xpose.msra.mxu0 0
    %3359 = vmatprep.subr.bf16.mxu0 0
    %3360 = vmatpush1.bf16.xpose.msra.mxu0 0
    %3361 = vmatprep.subr.bf16.mxu0 0
    %3362 = vmatpush1.bf16.xpose.msra.mxu0 0
    %3363 = vmatprep.subr.bf16.mxu0 0
    %3364 = vmatpush1.bf16.xpose.msra.mxu0 0
    %3365 = vmatprep.subr.bf16.mxu0 0
    %3366 = vmatpush1.bf16.xpose.msra.mxu0 0
    %3367 = vmatprep.subr.bf16.mxu0 0
    %3368 = vmatpush1.bf16.xpose.msra.mxu0 0
    %3369 = vmatprep.mubr.bf16.mxu0 0
    %3370 = vmatmul.mubr.bf16.gmra.mrb[0].mxu0 %v3308
    %v3371 = vpop.f32.mrb[0].mxu0
    %v3372 = vadd.f32 0.0, %v3371
    %v3373 = vpop.f32.mrb[0].mxu0
    %v3374 = vpop.f32.mrb[0].mxu0
    %v3375 = vadd.f32 0.0, %v3374
    %v3376 = vpop.f32.mrb[0].mxu0
    %3377 = vmatprep.mubr.bf16.mxu0 0
    %3378 = vmatmul.mubr.bf16.gmra.mrb[0].mxu0 %v3311
    %v3379 = vpop.f32.mrb[0].mxu0
    %v3380 = vadd.f32 0.0, %v3379
    %v3381 = vpop.f32.mrb[0].mxu0
    %v3382 = vpop.f32.mrb[0].mxu0
    %v3383 = vadd.f32 0.0, %v3382
    %v3384 = vpop.f32.mrb[0].mxu0
    %3385 = vmatprep.mubr.bf16.mxu0 0
    %3386 = vmatmul.mubr.bf16.gmra.mrb[0].mxu0 %v3314
    %v3387 = vpop.f32.mrb[0].mxu0
    %v3388 = vadd.f32 0.0, %v3387
    %v3389 = vpop.f32.mrb[0].mxu0
    %v3390 = vpop.f32.mrb[0].mxu0
    %v3391 = vadd.f32 0.0, %v3390
    %v3392 = vpop.f32.mrb[0].mxu0
    %3393 = vmatprep.mubr.bf16.mxu0 0
    %3394 = vmatmul.mubr.bf16.gmra.mrb[0].mxu0 %v3317
    %v3395 = vpop.f32.mrb[0].mxu0
    %v3396 = vadd.f32 0.0, %v3395
    %v3397 = vpop.f32.mrb[0].mxu0
    %v3398 = vpop.f32.mrb[0].mxu0
    %v3399 = vadd.f32 0.0, %v3398
    %v3400 = vpop.f32.mrb[0].mxu0
    %3401 = vmatprep.mubr.bf16.mxu0 0
    %3402 = vmatmul.mubr.bf16.gmra.mrb[0].mxu0 %v3320
    %v3403 = vpop.f32.mrb[0].mxu0
    %v3404 = vadd.f32 0.0, %v3403
    %v3405 = vpop.f32.mrb[0].mxu0
    %v3406 = vpop.f32.mrb[0].mxu0
    %v3407 = vadd.f32 0.0, %v3406
    %v3408 = vpop.f32.mrb[0].mxu0
    %3409 = vmatprep.mubr.bf16.mxu0 0
    %3410 = vmatmul.mubr.bf16.gmra.mrb[0].mxu0 %v3323
    %v3411 = vpop.f32.mrb[0].mxu0
    %v3412 = vadd.f32 0.0, %v3411
    %v3413 = vpop.f32.mrb[0].mxu0
    %v3414 = vpop.f32.mrb[0].mxu0
    %v3415 = vadd.f32 0.0, %v3414
    %v3416 = vpop.f32.mrb[0].mxu0
    %3417 = vmatprep.mubr.bf16.mxu0 0
    %3418 = vmatmul.mubr.bf16.gmra.mrb[0].mxu0 %v3326
    %v3419 = vpop.f32.mrb[0].mxu0
    %v3420 = vadd.f32 0.0, %v3419
    %v3421 = vpop.f32.mrb[0].mxu0
    %v3422 = vpop.f32.mrb[0].mxu0
    %v3423 = vadd.f32 0.0, %v3422
    %v3424 = vpop.f32.mrb[0].mxu0
    %3425 = vmatprep.mubr.bf16.mxu0 0
    %3426 = vmatmul.mubr.bf16.gmra.mrb[0].mxu0 %v3329
    %v3427 = vpop.f32.mrb[0].mxu0
    %v3428 = vadd.f32 0.0, %v3427
    %v3429 = vpop.f32.mrb[0].mxu0
    %v3430 = vpop.f32.mrb[0].mxu0
    %v3431 = vadd.f32 0.0, %v3430
    %v3432 = vpop.f32.mrb[0].mxu0
    %3433 = vdwg.mxu0
    %v3434 = vmul.f32 %v3372, 0.25
    %v3435 = vmul.f32 %v3375, 0.25
    %v3436 = vmul.f32 %v3380, 0.25
    %v3437 = vmul.f32 %v3383, 0.25
    %v3438 = vmul.f32 %v3388, 0.25
    %v3439 = vmul.f32 %v3391, 0.25
    %v3440 = vmul.f32 %v3396, 0.25
    %v3441 = vmul.f32 %v3399, 0.25
    %v3442 = vmul.f32 %v3404, 0.25
    %v3443 = vmul.f32 %v3407, 0.25
    %v3444 = vmul.f32 %v3412, 0.25
    %v3445 = vmul.f32 %v3415, 0.25
    %v3446 = vmul.f32 %v3420, 0.25
    %v3447 = vmul.f32 %v3423, 0.25
    %v3448 = vmul.f32 %v3428, 0.25
    %v3449 = vmul.f32 %v3431, 0.25
    %v3450 = vadd.f32 %v3434, %v190
    %v3451 = vadd.f32 %v3435, %v191
    %v3452 = vadd.f32 %v3436, %v192
    %v3453 = vadd.f32 %v3437, %v193
    %v3454 = vadd.f32 %v3438, %v194
    %v3455 = vadd.f32 %v3439, %v195
    %v3456 = vadd.f32 %v3440, %v196
    %v3457 = vadd.f32 %v3441, %v197
    %v3458 = vadd.f32 %v3442, %v198
    %v3459 = vadd.f32 %v3443, %v199
    %v3460 = vadd.f32 %v3444, %v200
    %v3461 = vadd.f32 %v3445, %v201
    %v3462 = vadd.f32 %v3446, %v202
    %v3463 = vadd.f32 %v3447, %v203
    %v3464 = vadd.f32 %v3448, %v204
    %v3465 = vadd.f32 %v3449, %v205
    %v3466 = vsel %vm835, %v3450, -inf
    %3467 = vmax.xlane.f32.xlu0 %v3466
    %v3468 = vpop.xlane.xlu0 %3467
    %v3469 = vsel %vm835, %v3451, -inf
    %3470 = vmax.xlane.f32.xlu0 %v3469
    %v3471 = vpop.xlane.xlu0 %3470
    %v3472 = vsel %vm835, %v3452, -inf
    %3473 = vmax.xlane.f32.xlu0 %v3472
    %v3474 = vpop.xlane.xlu0 %3473
    %v3475 = vsel %vm835, %v3453, -inf
    %3476 = vmax.xlane.f32.xlu0 %v3475
    %v3477 = vpop.xlane.xlu0 %3476
    %v3478 = vsel %vm835, %v3454, -inf
    %3479 = vmax.xlane.f32.xlu0 %v3478
    %v3480 = vpop.xlane.xlu0 %3479
    %v3481 = vsel %vm835, %v3455, -inf
    %3482 = vmax.xlane.f32.xlu0 %v3481
    %v3483 = vpop.xlane.xlu0 %3482
    %v3484 = vsel %vm835, %v3456, -inf
    %3485 = vmax.xlane.f32.xlu0 %v3484
    %v3486 = vpop.xlane.xlu0 %3485
    %v3487 = vsel %vm835, %v3457, -inf
    %3488 = vmax.xlane.f32.xlu0 %v3487
    %v3489 = vpop.xlane.xlu0 %3488
    %v3490 = vsel %vm835, %v3458, -inf
    %3491 = vmax.xlane.f32.xlu0 %v3490
    %v3492 = vpop.xlane.xlu0 %3491
    %v3493 = vsel %vm835, %v3459, -inf
    %3494 = vmax.xlane.f32.xlu0 %v3493
    %v3495 = vpop.xlane.xlu0 %3494
    %v3496 = vsel %vm835, %v3460, -inf
    %3497 = vmax.xlane.f32.xlu0 %v3496
    %v3498 = vpop.xlane.xlu0 %3497
    %v3499 = vsel %vm835, %v3461, -inf
    %3500 = vmax.xlane.f32.xlu0 %v3499
    %v3501 = vpop.xlane.xlu0 %3500
    %v3502 = vsel %vm835, %v3462, -inf
    %3503 = vmax.xlane.f32.xlu0 %v3502
    %v3504 = vpop.xlane.xlu0 %3503
    %v3505 = vsel %vm835, %v3463, -inf
    %3506 = vmax.xlane.f32.xlu0 %v3505
    %v3507 = vpop.xlane.xlu0 %3506
    %v3508 = vsel %vm835, %v3464, -inf
    %3509 = vmax.xlane.f32.xlu0 %v3508
    %v3510 = vpop.xlane.xlu0 %3509
    %v3511 = vsel %vm835, %v3465, -inf
    %3512 = vmax.xlane.f32.xlu0 %v3511
    %v3513 = vpop.xlane.xlu0 %3512
    %v3514 = vsub.f32 %v3450, %v3468
    %v3515 = vsub.f32 %v3451, %v3471
    %v3516 = vsub.f32 %v3452, %v3474
    %v3517 = vsub.f32 %v3453, %v3477
    %v3518 = vsub.f32 %v3454, %v3480
    %v3519 = vsub.f32 %v3455, %v3483
    %v3520 = vsub.f32 %v3456, %v3486
    %v3521 = vsub.f32 %v3457, %v3489
    %v3522 = vsub.f32 %v3458, %v3492
    %v3523 = vsub.f32 %v3459, %v3495
    %v3524 = vsub.f32 %v3460, %v3498
    %v3525 = vsub.f32 %v3461, %v3501
    %v3526 = vsub.f32 %v3462, %v3504
    %v3527 = vsub.f32 %v3463, %v3507
    %v3528 = vsub.f32 %v3464, %v3510
    %v3529 = vsub.f32 %v3465, %v3513
    %v3530 = vmul.f32 %v3514, 1.442695
    %v3531 = vpow.pop %v3530
    %v3532 = vmul.f32 %v3515, 1.442695
    %v3533 = vpow.pop %v3532
    %v3534 = vmul.f32 %v3516, 1.442695
    %v3535 = vpow.pop %v3534
    %v3536 = vmul.f32 %v3517, 1.442695
    %v3537 = vpow.pop %v3536
    %v3538 = vmul.f32 %v3518, 1.442695
    %v3539 = vpow.pop %v3538
    %v3540 = vmul.f32 %v3519, 1.442695
    %v3541 = vpow.pop %v3540
    %v3542 = vmul.f32 %v3520, 1.442695
    %v3543 = vpow.pop %v3542
    %v3544 = vmul.f32 %v3521, 1.442695
    %v3545 = vpow.pop %v3544
    %v3546 = vmul.f32 %v3522, 1.442695
    %v3547 = vpow.pop %v3546
    %v3548 = vmul.f32 %v3523, 1.442695
    %v3549 = vpow.pop %v3548
    %v3550 = vmul.f32 %v3524, 1.442695
    %v3551 = vpow.pop %v3550
    %v3552 = vmul.f32 %v3525, 1.442695
    %v3553 = vpow.pop %v3552
    %v3554 = vmul.f32 %v3526, 1.442695
    %v3555 = vpow.pop %v3554
    %v3556 = vmul.f32 %v3527, 1.442695
    %v3557 = vpow.pop %v3556
    %v3558 = vmul.f32 %v3528, 1.442695
    %v3559 = vpow.pop %v3558
    %v3560 = vmul.f32 %v3529, 1.442695
    %v3561 = vpow.pop %v3560
    %v3562 = vsel %vm835, %v3531, 0.0
    %3563 = vadd.xlane.f32.xlu0 %v3562
    %v3564 = vpop.xlane.xlu0 %3563
    %v3565 = vsel %vm835, %v3533, 0.0
    %3566 = vadd.xlane.f32.xlu0 %v3565
    %v3567 = vpop.xlane.xlu0 %3566
    %v3568 = vsel %vm835, %v3535, 0.0
    %3569 = vadd.xlane.f32.xlu0 %v3568
    %v3570 = vpop.xlane.xlu0 %3569
    %v3571 = vsel %vm835, %v3537, 0.0
    %3572 = vadd.xlane.f32.xlu0 %v3571
    %v3573 = vpop.xlane.xlu0 %3572
    %v3574 = vsel %vm835, %v3539, 0.0
    %3575 = vadd.xlane.f32.xlu0 %v3574
    %v3576 = vpop.xlane.xlu0 %3575
    %v3577 = vsel %vm835, %v3541, 0.0
    %3578 = vadd.xlane.f32.xlu0 %v3577
    %v3579 = vpop.xlane.xlu0 %3578
    %v3580 = vsel %vm835, %v3543, 0.0
    %3581 = vadd.xlane.f32.xlu0 %v3580
    %v3582 = vpop.xlane.xlu0 %3581
    %v3583 = vsel %vm835, %v3545, 0.0
    %3584 = vadd.xlane.f32.xlu0 %v3583
    %v3585 = vpop.xlane.xlu0 %3584
    %v3586 = vsel %vm835, %v3547, 0.0
    %3587 = vadd.xlane.f32.xlu0 %v3586
    %v3588 = vpop.xlane.xlu0 %3587
    %v3589 = vsel %vm835, %v3549, 0.0
    %3590 = vadd.xlane.f32.xlu0 %v3589
    %v3591 = vpop.xlane.xlu0 %3590
    %v3592 = vsel %vm835, %v3551, 0.0
    %3593 = vadd.xlane.f32.xlu0 %v3592
    %v3594 = vpop.xlane.xlu0 %3593
    %v3595 = vsel %vm835, %v3553, 0.0
    %3596 = vadd.xlane.f32.xlu0 %v3595
    %v3597 = vpop.xlane.xlu0 %3596
    %v3598 = vsel %vm835, %v3555, 0.0
    %3599 = vadd.xlane.f32.xlu0 %v3598
    %v3600 = vpop.xlane.xlu0 %3599
    %v3601 = vsel %vm835, %v3557, 0.0
    %3602 = vadd.xlane.f32.xlu0 %v3601
    %v3603 = vpop.xlane.xlu0 %3602
    %v3604 = vsel %vm835, %v3559, 0.0
    %3605 = vadd.xlane.f32.xlu0 %v3604
    %v3606 = vpop.xlane.xlu0 %3605
    %v3607 = vsel %vm835, %v3561, 0.0
    %3608 = vadd.xlane.f32.xlu0 %v3607
    %v3609 = vpop.xlane.xlu0 %3608
    %v3610 = vrcp.pop %v3564
    %v3611 = vrcp.pop %v3567
    %v3612 = vrcp.pop %v3570
    %v3613 = vrcp.pop %v3573
    %v3614 = vrcp.pop %v3576
    %v3615 = vrcp.pop %v3579
    %v3616 = vrcp.pop %v3582
    %v3617 = vrcp.pop %v3585
    %v3618 = vrcp.pop %v3588
    %v3619 = vrcp.pop %v3591
    %v3620 = vrcp.pop %v3594
    %v3621 = vrcp.pop %v3597
    %v3622 = vrcp.pop %v3600
    %v3623 = vrcp.pop %v3603
    %v3624 = vrcp.pop %v3606
    %v3625 = vrcp.pop %v3609
    %v3626 = vmul.f32 %v3531, %v3610
    %v3627 = vmul.f32 %v3533, %v3611
    %v3628 = vmul.f32 %v3535, %v3612
    %v3629 = vmul.f32 %v3537, %v3613
    %v3630 = vmul.f32 %v3539, %v3614
    %v3631 = vmul.f32 %v3541, %v3615
    %v3632 = vmul.f32 %v3543, %v3616
    %v3633 = vmul.f32 %v3545, %v3617
    %v3634 = vmul.f32 %v3547, %v3618
    %v3635 = vmul.f32 %v3549, %v3619
    %v3636 = vmul.f32 %v3551, %v3620
    %v3637 = vmul.f32 %v3553, %v3621
    %v3638 = vmul.f32 %v3555, %v3622
    %v3639 = vmul.f32 %v3557, %v3623
    %v3640 = vmul.f32 %v3559, %v3624
    %v3641 = vmul.f32 %v3561, %v3625
    %v3642 = vpack.c.bf16 %v3627, %v3626
    %v3643 = vpack.c.bf16 %v3629, %v3628
    %v3644 = vpack.c.bf16 %v3631, %v3630
    %v3645 = vpack.c.bf16 %v3633, %v3632
    %v3646 = vpack.c.bf16 %v3635, %v3634
    %v3647 = vpack.c.bf16 %v3637, %v3636
    %v3648 = vpack.c.bf16 %v3639, %v3638
    %v3649 = vpack.c.bf16 %v3641, %v3640
    %v3650 = vpack.c.bf16 %v3270, %v3267
    %v3651 = vpack.c.bf16 %v3278, %v3275
    %v3653 = vsel %vm835, %v3642, 0
    %v3656 = vsel %vm835, %v3643, 0
    %v3659 = vsel %vm835, %v3644, 0
    %v3662 = vsel %vm835, %v3645, 0
    %v3665 = vsel %vm835, %v3646, 0
    %v3668 = vsel %vm835, %v3647, 0
    %v3671 = vsel %vm835, %v3648, 0
    %v3674 = vsel %vm835, %v3649, 0
    %3676 = vmatprep.subr.bf16.mxu0 0
    %3677 = vmatpush1.bf16.msra.mxu0 %v3650
    %3678 = vmatprep.subr.bf16.mxu0 0
    %3679 = vmatpush1.bf16.msra.mxu0 %v3651
    %3680 = vmatprep.subr.bf16.mxu0 0
    %3681 = vmatpush1.bf16.msra.mxu0 0
    %3682 = vmatprep.subr.bf16.mxu0 0
    %3683 = vmatpush1.bf16.msra.mxu0 0
    %3684 = vmatprep.subr.bf16.mxu0 0
    %3685 = vmatpush1.bf16.msra.mxu0 0
    %3686 = vmatprep.subr.bf16.mxu0 0
    %3687 = vmatpush1.bf16.msra.mxu0 0
    %3688 = vmatprep.subr.bf16.mxu0 0
    %3689 = vmatpush1.bf16.msra.mxu0 0
    %3690 = vmatprep.subr.bf16.mxu0 0
    %3691 = vmatpush1.bf16.msra.mxu0 0
    %3692 = vmatprep.subr.bf16.mxu0 0
    %3693 = vmatpush1.bf16.msra.mxu0 0
    %3694 = vmatprep.subr.bf16.mxu0 0
    %3695 = vmatpush1.bf16.msra.mxu0 0
    %3696 = vmatprep.subr.bf16.mxu0 0
    %3697 = vmatpush1.bf16.msra.mxu0 0
    %3698 = vmatprep.subr.bf16.mxu0 0
    %3699 = vmatpush1.bf16.msra.mxu0 0
    %3700 = vmatprep.subr.bf16.mxu0 0
    %3701 = vmatpush1.bf16.msra.mxu0 0
    %3702 = vmatprep.subr.bf16.mxu0 0
    %3703 = vmatpush1.bf16.msra.mxu0 0
    %3704 = vmatprep.subr.bf16.mxu0 0
    %3705 = vmatpush1.bf16.msra.mxu0 0
    %3706 = vmatprep.subr.bf16.mxu0 0
    %3707 = vmatpush1.bf16.msra.mxu0 0
    %3708 = vmatprep.mubr.bf16.mxu0 0
    %3709 = vmatmul.mubr.bf16.gmra.mrb[0].mxu0 %v3653
    %v3710 = vpop.f32.mrb[0].mxu0
    %v3711 = vadd.f32 0.0, %v3710
    %v3712 = vpop.f32.mrb[0].mxu0
    %v3713 = vpop.f32.mrb[0].mxu0
    %v3714 = vadd.f32 0.0, %v3713
    %v3715 = vpop.f32.mrb[0].mxu0
    %3716 = vmatprep.mubr.bf16.mxu0 0
    %3717 = vmatmul.mubr.bf16.gmra.mrb[0].mxu0 %v3656
    %v3718 = vpop.f32.mrb[0].mxu0
    %v3719 = vadd.f32 0.0, %v3718
    %v3720 = vpop.f32.mrb[0].mxu0
    %v3721 = vpop.f32.mrb[0].mxu0
    %v3722 = vadd.f32 0.0, %v3721
    %v3723 = vpop.f32.mrb[0].mxu0
    %3724 = vmatprep.mubr.bf16.mxu0 0
    %3725 = vmatmul.mubr.bf16.gmra.mrb[0].mxu0 %v3659
    %v3726 = vpop.f32.mrb[0].mxu0
    %v3727 = vadd.f32 0.0, %v3726
    %v3728 = vpop.f32.mrb[0].mxu0
    %v3729 = vpop.f32.mrb[0].mxu0
    %v3730 = vadd.f32 0.0, %v3729
    %v3731 = vpop.f32.mrb[0].mxu0
    %3732 = vmatprep.mubr.bf16.mxu0 0
    %3733 = vmatmul.mubr.bf16.gmra.mrb[0].mxu0 %v3662
    %v3734 = vpop.f32.mrb[0].mxu0
    %v3735 = vadd.f32 0.0, %v3734
    %v3736 = vpop.f32.mrb[0].mxu0
    %v3737 = vpop.f32.mrb[0].mxu0
    %v3738 = vadd.f32 0.0, %v3737
    %v3739 = vpop.f32.mrb[0].mxu0
    %3740 = vmatprep.mubr.bf16.mxu0 0
    %3741 = vmatmul.mubr.bf16.gmra.mrb[0].mxu0 %v3665
    %v3742 = vpop.f32.mrb[0].mxu0
    %v3743 = vadd.f32 0.0, %v3742
    %v3744 = vpop.f32.mrb[0].mxu0
    %v3745 = vpop.f32.mrb[0].mxu0
    %v3746 = vadd.f32 0.0, %v3745
    %v3747 = vpop.f32.mrb[0].mxu0
    %3748 = vmatprep.mubr.bf16.mxu0 0
    %3749 = vmatmul.mubr.bf16.gmra.mrb[0].mxu0 %v3668
    %v3750 = vpop.f32.mrb[0].mxu0
    %v3751 = vadd.f32 0.0, %v3750
    %v3752 = vpop.f32.mrb[0].mxu0
    %v3753 = vpop.f32.mrb[0].mxu0
    %v3754 = vadd.f32 0.0, %v3753
    %v3755 = vpop.f32.mrb[0].mxu0
    %3756 = vmatprep.mubr.bf16.mxu0 0
    %3757 = vmatmul.mubr.bf16.gmra.mrb[0].mxu0 %v3671
    %v3758 = vpop.f32.mrb[0].mxu0
    %v3759 = vadd.f32 0.0, %v3758
    %v3760 = vpop.f32.mrb[0].mxu0
    %v3761 = vpop.f32.mrb[0].mxu0
    %v3762 = vadd.f32 0.0, %v3761
    %v3763 = vpop.f32.mrb[0].mxu0
    %3764 = vmatprep.mubr.bf16.mxu0 0
    %3765 = vmatmul.mubr.bf16.gmra.mrb[0].mxu0 %v3674
    %v3766 = vpop.f32.mrb[0].mxu0
    %v3767 = vadd.f32 0.0, %v3766
    %v3768 = vpop.f32.mrb[0].mxu0
    %v3769 = vpop.f32.mrb[0].mxu0
    %v3770 = vadd.f32 0.0, %v3769
    %v3771 = vpop.f32.mrb[0].mxu0
    %3772 = vdwg.mxu0
    %v3773 = vmul.f32 %v3711, %v126
    %v3774 = vmul.f32 %v3714, %v127
    %v3775 = vmul.f32 %v3719, %v128
    %v3776 = vmul.f32 %v3722, %v129
    %v3777 = vmul.f32 %v3727, %v130
    %v3778 = vmul.f32 %v3730, %v131
    %v3779 = vmul.f32 %v3735, %v132
    %v3780 = vmul.f32 %v3738, %v133
    %v3781 = vmul.f32 %v3743, %v134
    %v3782 = vmul.f32 %v3746, %v135
    %v3783 = vmul.f32 %v3751, %v136
    %v3784 = vmul.f32 %v3754, %v137
    %v3785 = vmul.f32 %v3759, %v138
    %v3786 = vmul.f32 %v3762, %v139
    %v3787 = vmul.f32 %v3767, %v140
    %v3788 = vmul.f32 %v3770, %v141
    %v3789 = vsel %vm255, %v3773, 0.0
    %v3790 = vsel %vm255, %v3777, 0.0
    %v3791 = vadd.f32 %v3789, %v3790
    %v3792 = vsel %vm255, %v3781, 0.0
    %v3793 = vadd.f32 %v3791, %v3792
    %v3794 = vsel %vm255, %v3785, 0.0
    %v3795 = vadd.f32 %v3793, %v3794
    %v3796 = vsel %vm255, %v3774, 0.0
    %v3797 = vsel %vm255, %v3778, 0.0
    %v3798 = vadd.f32 %v3796, %v3797
    %v3799 = vsel %vm255, %v3782, 0.0
    %v3800 = vadd.f32 %v3798, %v3799
    %v3801 = vsel %vm255, %v3786, 0.0
    %v3802 = vadd.f32 %v3800, %v3801
    %v3803 = vsel %vm255, %v3775, 0.0
    %v3804 = vsel %vm255, %v3779, 0.0
    %v3805 = vadd.f32 %v3803, %v3804
    %v3806 = vsel %vm255, %v3783, 0.0
    %v3807 = vadd.f32 %v3805, %v3806
    %v3808 = vsel %vm255, %v3787, 0.0
    %v3809 = vadd.f32 %v3807, %v3808
    %v3810 = vsel %vm255, %v3776, 0.0
    %v3811 = vsel %vm255, %v3780, 0.0
    %v3812 = vadd.f32 %v3810, %v3811
    %v3813 = vsel %vm255, %v3784, 0.0
    %v3814 = vadd.f32 %v3812, %v3813
    %v3815 = vsel %vm255, %v3788, 0.0
    %v3816 = vadd.f32 %v3814, %v3815
    %s3817 = scalar_lea.vmem %s11, 64
    %v3818 = vld [vmem:[%s3817] sm:$0xf]
    %v3819 = vld [vmem:[%s3817 + $0x4] sm:$0xf]
    %v3820 = vld [vmem:[%s3817 + $0x8] sm:$0xf]
    %v3821 = vld [vmem:[%s3817 + $0xc] sm:$0xf]
    %v3822 = vld [vmem:[%s3817 + $0x10] sm:$0xf]
    %v3823 = vld [vmem:[%s3817 + $0x14] sm:$0xf]
    %v3824 = vld [vmem:[%s3817 + $0x18] sm:$0xf]
    %v3825 = vld [vmem:[%s3817 + $0x1c] sm:$0xf]
    %v3826 = vpack.c.bf16 %v3802, %v3795
    %v3827 = vpack.c.bf16 %v3816, %v3809
    %v3836 = vunpack.c.l.b16 %v3818
    %v3837 = vunpack.c.l.b16 %v3819
    %v3838 = vunpack.c.l.b16 %v3820
    %v3839 = vunpack.c.l.b16 %v3821
    %v3840 = vunpack.c.l.b16 %v3822
    %v3841 = vunpack.c.l.b16 %v3823
    %v3842 = vunpack.c.l.b16 %v3824
    %v3843 = vunpack.c.l.b16 %v3825
    %v3844 = vpack.c.b16 %v3837, %v3836
    %v3845 = vpack.c.b16 %v3839, %v3838
    %v3846 = vpack.c.b16 %v3841, %v3840
    %v3847 = vpack.c.b16 %v3843, %v3842
    %v3853 = vsel %vm255, %v3826, 0
    %v3856 = vsel %vm255, %v3827, 0
    %3858 = vmatprep.subr.bf16.mxu0 0
    %3859 = vmatpush1.bf16.msra.mxu0 %v3844
    %3860 = vmatprep.subr.bf16.mxu0 0
    %3861 = vmatpush1.bf16.msra.mxu0 %v3845
    %3862 = vmatprep.subr.bf16.mxu0 0
    %3863 = vmatpush1.bf16.msra.mxu0 %v3846
    %3864 = vmatprep.subr.bf16.mxu0 0
    %3865 = vmatpush1.bf16.msra.mxu0 %v3847
    %3866 = vmatprep.subr.bf16.mxu0 0
    %3867 = vmatpush1.bf16.msra.mxu0 0
    %3868 = vmatprep.subr.bf16.mxu0 0
    %3869 = vmatpush1.bf16.msra.mxu0 0
    %3870 = vmatprep.subr.bf16.mxu0 0
    %3871 = vmatpush1.bf16.msra.mxu0 0
    %3872 = vmatprep.subr.bf16.mxu0 0
    %3873 = vmatpush1.bf16.msra.mxu0 0
    %3874 = vmatprep.subr.bf16.mxu0 0
    %3875 = vmatpush1.bf16.msra.mxu0 0
    %3876 = vmatprep.subr.bf16.mxu0 0
    %3877 = vmatpush1.bf16.msra.mxu0 0
    %3878 = vmatprep.subr.bf16.mxu0 0
    %3879 = vmatpush1.bf16.msra.mxu0 0
    %3880 = vmatprep.subr.bf16.mxu0 0
    %3881 = vmatpush1.bf16.msra.mxu0 0
    %3882 = vmatprep.subr.bf16.mxu0 0
    %3883 = vmatpush1.bf16.msra.mxu0 0
    %3884 = vmatprep.subr.bf16.mxu0 0
    %3885 = vmatpush1.bf16.msra.mxu0 0
    %3886 = vmatprep.subr.bf16.mxu0 0
    %3887 = vmatpush1.bf16.msra.mxu0 0
    %3888 = vmatprep.subr.bf16.mxu0 0
    %3889 = vmatpush1.bf16.msra.mxu0 0
    %3890 = vmatprep.mubr.bf16.mxu0 0
    %3891 = vmatmul.mubr.bf16.gmra.mrb[0].mxu0 %v3853
    %v3892 = vpop.f32.mrb[0].mxu0
    %v3893 = vadd.f32 0.0, %v3892
    %v3894 = vpop.f32.mrb[0].mxu0
    %v3895 = vpop.f32.mrb[0].mxu0
    %v3896 = vadd.f32 0.0, %v3895
    %v3897 = vpop.f32.mrb[0].mxu0
    %3898 = vmatprep.mubr.bf16.mxu0 0
    %3899 = vmatmul.mubr.bf16.gmra.mrb[0].mxu0 %v3856
    %v3900 = vpop.f32.mrb[0].mxu0
    %v3901 = vadd.f32 0.0, %v3900
    %v3902 = vpop.f32.mrb[0].mxu0
    %v3903 = vpop.f32.mrb[0].mxu0
    %v3904 = vadd.f32 0.0, %v3903
    %v3905 = vpop.f32.mrb[0].mxu0
    %3906 = vdwg.mxu0
    %v3907 = vadd.f32 %v2937, %v3893
    %v3908 = vadd.f32 %v2938, %v3896
    %v3909 = vadd.f32 %v2939, %v3901
    %v3910 = vadd.f32 %v2940, %v3904
    %s3911 = scalar_lea.vmem %s12, 2
    %v3912 = vld [vmem:[%s3911] sm:$0x1]
    %v3914 = vlaneseq
    %v3915 = vshrl.u32 %v3914, 7
    %v3916 = vsub.s32 0, %v3915
    %v3917 = vrot.slane %v3912, %v3916
    %v3919 = vadd.f32 %v3907, %v3917
    %v3920 = vadd.f32 %v3908, %v3917
    %v3921 = vadd.f32 %v3909, %v3917
    %v3922 = vadd.f32 %v3910, %v3917
    %v3923 = vsel %vm255, %v3919, 0.0
    %3924 = vadd.xlane.f32.xlu0 %v3923
    %v3925 = vpop.xlane.xlu0 %3924
    %v3926 = vsel %vm255, %v3920, 0.0
    %3927 = vadd.xlane.f32.xlu0 %v3926
    %v3928 = vpop.xlane.xlu0 %3927
    %v3929 = vsel %vm255, %v3921, 0.0
    %3930 = vadd.xlane.f32.xlu0 %v3929
    %v3931 = vpop.xlane.xlu0 %3930
    %v3932 = vsel %vm255, %v3922, 0.0
    %3933 = vadd.xlane.f32.xlu0 %v3932
    %v3934 = vpop.xlane.xlu0 %3933
    %v3935 = vmul.f32 %v3925, %v330
    %v3936 = vmul.f32 %v3928, %v330
    %v3937 = vmul.f32 %v3931, %v330
    %v3938 = vmul.f32 %v3934, %v330
    %v3939 = vsub.f32 %v3919, %v3935
    %v3940 = vsub.f32 %v3920, %v3936
    %v3941 = vsub.f32 %v3921, %v3937
    %v3942 = vsub.f32 %v3922, %v3938
    %v3943 = vmul.f32 %v3939, %v3939
    %v3944 = vmul.f32 %v3940, %v3940
    %v3945 = vmul.f32 %v3941, %v3941
    %v3946 = vmul.f32 %v3942, %v3942
    %v3947 = vsel %vm255, %v3943, 0.0
    %3948 = vadd.xlane.f32.xlu0 %v3947
    %v3949 = vpop.xlane.xlu0 %3948
    %v3950 = vsel %vm255, %v3944, 0.0
    %3951 = vadd.xlane.f32.xlu0 %v3950
    %v3952 = vpop.xlane.xlu0 %3951
    %v3953 = vsel %vm255, %v3945, 0.0
    %3954 = vadd.xlane.f32.xlu0 %v3953
    %v3955 = vpop.xlane.xlu0 %3954
    %v3956 = vsel %vm255, %v3946, 0.0
    %3957 = vadd.xlane.f32.xlu0 %v3956
    %v3958 = vpop.xlane.xlu0 %3957
    %v3959 = vmul.f32 %v3949, %v330
    %v3960 = vmul.f32 %v3952, %v330
    %v3961 = vmul.f32 %v3955, %v330
    %v3962 = vmul.f32 %v3958, %v330
    %v3963 = vadd.f32 %v3959, 1e-05
    %v3964 = vadd.f32 %v3960, 1e-05
    %v3965 = vadd.f32 %v3961, 1e-05
    %v3966 = vadd.f32 %v3962, 1e-05
    %v3967 = vrsqrt.pop %v3963
    %v3968 = vrsqrt.pop %v3964
    %v3969 = vrsqrt.pop %v3965
    %v3970 = vrsqrt.pop %v3966
    %v3971 = vmul.f32 %v3939, %v3967
    %v3972 = vmul.f32 %v3940, %v3968
    %v3973 = vmul.f32 %v3941, %v3969
    %v3974 = vmul.f32 %v3942, %v3970
    %v3975 = vlaneseq
    %v3976 = vshrl.u32 %v3975, 7
    %v3977 = vsub.s32 1, %v3976
    %v3978 = vrot.slane %v2942, %v3977
    %v3979 = vmul.f32 %v3971, %v3978
    %v3980 = vmul.f32 %v3972, %v3978
    %v3981 = vmul.f32 %v3973, %v3978
    %v3982 = vmul.f32 %v3974, %v3978
    %v3983 = vlaneseq
    %v3984 = vshrl.u32 %v3983, 7
    %v3985 = vsub.s32 1, %v3984
    %v3986 = vrot.slane %v2944, %v3985
    %v3987 = vadd.f32 %v3979, %v3986
    %v3988 = vadd.f32 %v3980, %v3986
    %v3989 = vadd.f32 %v3981, %v3986
    %v3990 = vadd.f32 %v3982, %v3986
    %s3991 = scalar_lea.vmem %s13, 64
    %v3992 = vld [vmem:[%s3991] sm:$0xf]
    %v3993 = vld [vmem:[%s3991 + $0x4] sm:$0xf]
    %v3994 = vld [vmem:[%s3991 + $0x8] sm:$0xf]
    %v3995 = vld [vmem:[%s3991 + $0xc] sm:$0xf]
    %v3996 = vld [vmem:[%s3991 + $0x10] sm:$0xf]
    %v3997 = vld [vmem:[%s3991 + $0x14] sm:$0xf]
    %v3998 = vld [vmem:[%s3991 + $0x18] sm:$0xf]
    %v3999 = vld [vmem:[%s3991 + $0x1c] sm:$0xf]
    %v4000 = vpack.c.bf16 %v3988, %v3987
    %v4001 = vpack.c.bf16 %v3990, %v3989
    %s4002 = scalar_lea.vmem %s14, 2
    %v4003 = vld [vmem:[%s4002] sm:$0x1]
    %v4005 = vlaneseq
    %v4006 = vshrl.u32 %v4005, 7
    %v4007 = vsub.s32 0, %v4006
    %v4008 = vrot.slane %v4003, %v4007
    %v4018 = vunpack.c.l.b16 %v3992
    %v4019 = vunpack.c.l.b16 %v3993
    %v4020 = vunpack.c.l.b16 %v3994
    %v4021 = vunpack.c.l.b16 %v3995
    %v4022 = vunpack.c.l.b16 %v3996
    %v4023 = vunpack.c.l.b16 %v3997
    %v4024 = vunpack.c.l.b16 %v3998
    %v4025 = vunpack.c.l.b16 %v3999
    %v4026 = vpack.c.b16 %v4019, %v4018
    %v4027 = vpack.c.b16 %v4021, %v4020
    %v4028 = vpack.c.b16 %v4023, %v4022
    %v4029 = vpack.c.b16 %v4025, %v4024
    %v4035 = vsel %vm255, %v4000, 0
    %v4038 = vsel %vm255, %v4001, 0
    %4040 = vmatprep.subr.bf16.mxu0 0
    %4041 = vmatpush1.bf16.msra.mxu0 %v4026
    %4042 = vmatprep.subr.bf16.mxu0 0
    %4043 = vmatpush1.bf16.msra.mxu0 %v4027
    %4044 = vmatprep.subr.bf16.mxu0 0
    %4045 = vmatpush1.bf16.msra.mxu0 %v4028
    %4046 = vmatprep.subr.bf16.mxu0 0
    %4047 = vmatpush1.bf16.msra.mxu0 %v4029
    %4048 = vmatprep.subr.bf16.mxu0 0
    %4049 = vmatpush1.bf16.msra.mxu0 0
    %4050 = vmatprep.subr.bf16.mxu0 0
    %4051 = vmatpush1.bf16.msra.mxu0 0
    %4052 = vmatprep.subr.bf16.mxu0 0
    %4053 = vmatpush1.bf16.msra.mxu0 0
    %4054 = vmatprep.subr.bf16.mxu0 0
    %4055 = vmatpush1.bf16.msra.mxu0 0
    %4056 = vmatprep.subr.bf16.mxu0 0
    %4057 = vmatpush1.bf16.msra.mxu0 0
    %4058 = vmatprep.subr.bf16.mxu0 0
    %4059 = vmatpush1.bf16.msra.mxu0 0
    %4060 = vmatprep.subr.bf16.mxu0 0
    %4061 = vmatpush1.bf16.msra.mxu0 0
    %4062 = vmatprep.subr.bf16.mxu0 0
    %4063 = vmatpush1.bf16.msra.mxu0 0
    %4064 = vmatprep.subr.bf16.mxu0 0
    %4065 = vmatpush1.bf16.msra.mxu0 0
    %4066 = vmatprep.subr.bf16.mxu0 0
    %4067 = vmatpush1.bf16.msra.mxu0 0
    %4068 = vmatprep.subr.bf16.mxu0 0
    %4069 = vmatpush1.bf16.msra.mxu0 0
    %4070 = vmatprep.subr.bf16.mxu0 0
    %4071 = vmatpush1.bf16.msra.mxu0 0
    %4072 = vmatprep.mubr.bf16.mxu0 0
    %4073 = vmatmul.mubr.bf16.gmra.mrb[0].mxu0 %v4035
    %v4074 = vpop.f32.mrb[0].mxu0
    %v4075 = vadd.f32 %v4008, %v4074
    %v4076 = vpop.f32.mrb[0].mxu0
    %v4077 = vpop.f32.mrb[0].mxu0
    %v4078 = vadd.f32 %v4008, %v4077
    %v4079 = vpop.f32.mrb[0].mxu0
    %4080 = vmatprep.mubr.bf16.mxu0 0
    %4081 = vmatmul.mubr.bf16.gmra.mrb[0].mxu0 %v4038
    %v4082 = vpop.f32.mrb[0].mxu0
    %v4083 = vadd.f32 %v4008, %v4082
    %v4084 = vpop.f32.mrb[0].mxu0
    %v4085 = vpop.f32.mrb[0].mxu0
    %v4086 = vadd.f32 %v4008, %v4085
    %v4087 = vpop.f32.mrb[0].mxu0
    %4088 = vdwg.mxu0
    %v4089 = vmul.f32 %v4075, %v4075
    %v4090 = vmul.f32 %v4078, %v4078
    %v4091 = vmul.f32 %v4083, %v4083
    %v4092 = vmul.f32 %v4086, %v4086
    %v4093 = vmul.f32 %v4075, %v4089
    %v4094 = vmul.f32 %v4078, %v4090
    %v4095 = vmul.f32 %v4083, %v4091
    %v4096 = vmul.f32 %v4086, %v4092
    %v4097 = vmul.f32 %v4093, 0.044715
    %v4098 = vmul.f32 %v4094, 0.044715
    %v4099 = vmul.f32 %v4095, 0.044715
    %v4100 = vmul.f32 %v4096, 0.044715
    %v4101 = vadd.f32 %v4075, %v4097
    %v4102 = vadd.f32 %v4078, %v4098
    %v4103 = vadd.f32 %v4083, %v4099
    %v4104 = vadd.f32 %v4086, %v4100
    %v4105 = vmul.f32 %v4101, 0.7978846
    %v4106 = vmul.f32 %v4102, 0.7978846
    %v4107 = vmul.f32 %v4103, 0.7978846
    %v4108 = vmul.f32 %v4104, 0.7978846
    %v4109 = vtanh.pop %v4105
    %v4110 = vtanh.pop %v4106
    %v4111 = vtanh.pop %v4107
    %v4112 = vtanh.pop %v4108
    %v4113 = vadd.f32 %v4109, 1.0
    %v4114 = vadd.f32 %v4110, 1.0
    %v4115 = vadd.f32 %v4111, 1.0
    %v4116 = vadd.f32 %v4112, 1.0
    %v4117 = vmul.f32 %v4113, 0.5
    %v4118 = vmul.f32 %v4114, 0.5
    %v4119 = vmul.f32 %v4115, 0.5
    %v4120 = vmul.f32 %v4116, 0.5
    %v4121 = vmul.f32 %v4075, %v4117
    %v4122 = vmul.f32 %v4078, %v4118
    %v4123 = vmul.f32 %v4083, %v4119
    %v4124 = vmul.f32 %v4086, %v4120
    %s4125 = scalar_lea.vmem %s15, 128
    %v4126 = vld [vmem:[%s4125] sm:$0xf]
    %v4127 = vld [vmem:[%s4125 + $0x4] sm:$0xf]
    %v4128 = vld [vmem:[%s4125 + $0x8] sm:$0xf]
    %v4129 = vld [vmem:[%s4125 + $0xc] sm:$0xf]
    %v4130 = vld [vmem:[%s4125 + $0x10] sm:$0xf]
    %v4131 = vld [vmem:[%s4125 + $0x14] sm:$0xf]
    %v4132 = vld [vmem:[%s4125 + $0x18] sm:$0xf]
    %v4133 = vld [vmem:[%s4125 + $0x1c] sm:$0xf]
    %v4134 = vld [vmem:[%s4125 + $0x20] sm:$0xf]
    %v4135 = vld [vmem:[%s4125 + $0x24] sm:$0xf]
    %v4136 = vld [vmem:[%s4125 + $0x28] sm:$0xf]
    %v4137 = vld [vmem:[%s4125 + $0x2c] sm:$0xf]
    %v4138 = vld [vmem:[%s4125 + $0x30] sm:$0xf]
    %v4139 = vld [vmem:[%s4125 + $0x34] sm:$0xf]
    %v4140 = vld [vmem:[%s4125 + $0x38] sm:$0xf]
    %v4141 = vld [vmem:[%s4125 + $0x3c] sm:$0xf]
    %v4142 = vpack.c.bf16 %v4122, %v4121
    %v4143 = vpack.c.bf16 %v4124, %v4123
    %v4160 = vunpack.c.l.b16 %v4126
    %v4161 = vunpack.c.l.b16 %v4127
    %v4162 = vunpack.c.l.b16 %v4128
    %v4163 = vunpack.c.l.b16 %v4129
    %v4164 = vunpack.c.l.b16 %v4130
    %v4165 = vunpack.c.l.b16 %v4131
    %v4166 = vunpack.c.l.b16 %v4132
    %v4167 = vunpack.c.l.b16 %v4133
    %v4168 = vunpack.c.l.b16 %v4134
    %v4169 = vunpack.c.l.b16 %v4135
    %v4170 = vunpack.c.l.b16 %v4136
    %v4171 = vunpack.c.l.b16 %v4137
    %v4172 = vunpack.c.l.b16 %v4138
    %v4173 = vunpack.c.l.b16 %v4139
    %v4174 = vunpack.c.l.b16 %v4140
    %v4175 = vunpack.c.l.b16 %v4141
    %v4176 = vpack.c.b16 %v4161, %v4160
    %v4177 = vpack.c.b16 %v4163, %v4162
    %v4178 = vpack.c.b16 %v4165, %v4164
    %v4179 = vpack.c.b16 %v4167, %v4166
    %v4180 = vpack.c.b16 %v4169, %v4168
    %v4181 = vpack.c.b16 %v4171, %v4170
    %v4182 = vpack.c.b16 %v4173, %v4172
    %v4183 = vpack.c.b16 %v4175, %v4174
    %4192 = vmatprep.subr.bf16.mxu0 0
    %4193 = vmatpush1.bf16.msra.mxu0 %v4176
    %4194 = vmatprep.subr.bf16.mxu0 0
    %4195 = vmatpush1.bf16.msra.mxu0 %v4177
    %4196 = vmatprep.subr.bf16.mxu0 0
    %4197 = vmatpush1.bf16.msra.mxu0 %v4178
    %4198 = vmatprep.subr.bf16.mxu0 0
    %4199 = vmatpush1.bf16.msra.mxu0 %v4179
    %4200 = vmatprep.subr.bf16.mxu0 0
    %4201 = vmatpush1.bf16.msra.mxu0 %v4180
    %4202 = vmatprep.subr.bf16.mxu0 0
    %4203 = vmatpush1.bf16.msra.mxu0 %v4181
    %4204 = vmatprep.subr.bf16.mxu0 0
    %4205 = vmatpush1.bf16.msra.mxu0 %v4182
    %4206 = vmatprep.subr.bf16.mxu0 0
    %4207 = vmatpush1.bf16.msra.mxu0 %v4183
    %4208 = vmatprep.subr.bf16.mxu0 0
    %4209 = vmatpush1.bf16.msra.mxu0 0
    %4210 = vmatprep.subr.bf16.mxu0 0
    %4211 = vmatpush1.bf16.msra.mxu0 0
    %4212 = vmatprep.subr.bf16.mxu0 0
    %4213 = vmatpush1.bf16.msra.mxu0 0
    %4214 = vmatprep.subr.bf16.mxu0 0
    %4215 = vmatpush1.bf16.msra.mxu0 0
    %4216 = vmatprep.subr.bf16.mxu0 0
    %4217 = vmatpush1.bf16.msra.mxu0 0
    %4218 = vmatprep.subr.bf16.mxu0 0
    %4219 = vmatpush1.bf16.msra.mxu0 0
    %4220 = vmatprep.subr.bf16.mxu0 0
    %4221 = vmatpush1.bf16.msra.mxu0 0
    %4222 = vmatprep.subr.bf16.mxu0 0
    %4223 = vmatpush1.bf16.msra.mxu0 0
    %4224 = vmatprep.mubr.bf16.mxu0 0
    %4225 = vmatmul.mubr.bf16.gmra.mrb[0].mxu0 %v4142
    %v4226 = vpop.f32.mrb[0].mxu0
    %v4227 = vadd.f32 0.0, %v4226
    %v4228 = vpop.f32.mrb[0].mxu0
    %v4229 = vpop.f32.mrb[0].mxu0
    %v4230 = vadd.f32 0.0, %v4229
    %v4231 = vpop.f32.mrb[0].mxu0
    %4232 = vmatprep.mubr.bf16.mxu0 0
    %4233 = vmatmul.mubr.bf16.gmra.mrb[0].mxu0 %v4143
    %v4234 = vpop.f32.mrb[0].mxu0
    %v4235 = vadd.f32 0.0, %v4234
    %v4236 = vpop.f32.mrb[0].mxu0
    %v4237 = vpop.f32.mrb[0].mxu0
    %v4238 = vadd.f32 0.0, %v4237
    %v4239 = vpop.f32.mrb[0].mxu0
    %4240 = vdwg.mxu0
    %v4241 = vadd.f32 %v3919, %v4227
    %v4242 = vadd.f32 %v3920, %v4230
    %v4243 = vadd.f32 %v3921, %v4235
    %v4244 = vadd.f32 %v3922, %v4238
    %s4245 = scalar_lea.vmem %s16, 2
    %v4246 = vld [vmem:[%s4245] sm:$0x1]
    %v4248 = vlaneseq
    %v4249 = vshrl.u32 %v4248, 7
    %v4250 = vsub.s32 0, %v4249
    %v4251 = vrot.slane %v4246, %v4250
    %v4253 = vadd.f32 %v4241, %v4251
    %v4254 = vadd.f32 %v4242, %v4251
    %v4255 = vadd.f32 %v4243, %v4251
    %v4256 = vadd.f32 %v4244, %v4251
    %s4257 = scalar_lea.vmem %s5, 6
    %v4258 = vld [vmem:[%s4257] sm:$0x3]
    %s4259 = scalar_lea.vmem %s6, 6
    %v4260 = vld [vmem:[%s4259] sm:$0x3]
    %s4261 = scalar_lea.vmem %s10, 12
    %v4262 = vld [vmem:[%s4261] sm:$0x7]
    %v4263 = vsel %vm255, %v4253, 0.0
    %4264 = vadd.xlane.f32.xlu0 %v4263
    %v4265 = vpop.xlane.xlu0 %4264
    %v4266 = vsel %vm255, %v4254, 0.0
    %4267 = vadd.xlane.f32.xlu0 %v4266
    %v4268 = vpop.xlane.xlu0 %4267
    %v4269 = vsel %vm255, %v4255, 0.0
    %4270 = vadd.xlane.f32.xlu0 %v4269
    %v4271 = vpop.xlane.xlu0 %4270
    %v4272 = vsel %vm255, %v4256, 0.0
    %4273 = vadd.xlane.f32.xlu0 %v4272
    %v4274 = vpop.xlane.xlu0 %4273
    %v4275 = vmul.f32 %v4265, %v330
    %v4276 = vmul.f32 %v4268, %v330
    %v4277 = vmul.f32 %v4271, %v330
    %v4278 = vmul.f32 %v4274, %v330
    %v4279 = vsub.f32 %v4253, %v4275
    %v4280 = vsub.f32 %v4254, %v4276
    %v4281 = vsub.f32 %v4255, %v4277
    %v4282 = vsub.f32 %v4256, %v4278
    %v4283 = vmul.f32 %v4279, %v4279
    %v4284 = vmul.f32 %v4280, %v4280
    %v4285 = vmul.f32 %v4281, %v4281
    %v4286 = vmul.f32 %v4282, %v4282
    %v4287 = vsel %vm255, %v4283, 0.0
    %4288 = vadd.xlane.f32.xlu0 %v4287
    %v4289 = vpop.xlane.xlu0 %4288
    %v4290 = vsel %vm255, %v4284, 0.0
    %4291 = vadd.xlane.f32.xlu0 %v4290
    %v4292 = vpop.xlane.xlu0 %4291
    %v4293 = vsel %vm255, %v4285, 0.0
    %4294 = vadd.xlane.f32.xlu0 %v4293
    %v4295 = vpop.xlane.xlu0 %4294
    %v4296 = vsel %vm255, %v4286, 0.0
    %4297 = vadd.xlane.f32.xlu0 %v4296
    %v4298 = vpop.xlane.xlu0 %4297
    %v4299 = vmul.f32 %v4289, %v330
    %v4300 = vmul.f32 %v4292, %v330
    %v4301 = vmul.f32 %v4295, %v330
    %v4302 = vmul.f32 %v4298, %v330
    %v4303 = vadd.f32 %v4299, 1e-05
    %v4304 = vadd.f32 %v4300, 1e-05
    %v4305 = vadd.f32 %v4301, 1e-05
    %v4306 = vadd.f32 %v4302, 1e-05
    %v4307 = vrsqrt.pop %v4303
    %v4308 = vrsqrt.pop %v4304
    %v4309 = vrsqrt.pop %v4305
    %v4310 = vrsqrt.pop %v4306
    %v4311 = vmul.f32 %v4279, %v4307
    %v4312 = vmul.f32 %v4280, %v4308
    %v4313 = vmul.f32 %v4281, %v4309
    %v4314 = vmul.f32 %v4282, %v4310
    %v4315 = vlaneseq
    %v4316 = vshrl.u32 %v4315, 7
    %v4317 = vsub.s32 0, %v4316
    %v4318 = vrot.slane %v4258, %v4317
    %v4319 = vmul.f32 %v4311, %v4318
    %v4320 = vmul.f32 %v4312, %v4318
    %v4321 = vmul.f32 %v4313, %v4318
    %v4322 = vmul.f32 %v4314, %v4318
    %v4323 = vlaneseq
    %v4324 = vshrl.u32 %v4323, 7
    %v4325 = vsub.s32 0, %v4324
    %v4326 = vrot.slane %v4260, %v4325
    %v4327 = vadd.f32 %v4319, %v4326
    %v4328 = vadd.f32 %v4320, %v4326
    %v4329 = vadd.f32 %v4321, %v4326
    %v4330 = vadd.f32 %v4322, %v4326
    %s4331 = scalar_lea.vmem %s7, 96
    %v4332 = vld [vmem:[%s4331] sm:$0xf]
    %v4333 = vld [vmem:[%s4331 + $0x4] sm:$0xf]
    %v4334 = vld [vmem:[%s4331 + $0x8] sm:$0xf]
    %v4335 = vld [vmem:[%s4331 + $0xc] sm:$0xf]
    %v4336 = vld [vmem:[%s4331 + $0x10] sm:$0xf]
    %v4337 = vld [vmem:[%s4331 + $0x14] sm:$0xf]
    %v4338 = vld [vmem:[%s4331 + $0x18] sm:$0xf]
    %v4339 = vld [vmem:[%s4331 + $0x1c] sm:$0xf]
    %v4340 = vpack.c.bf16 %v4328, %v4327
    %v4341 = vpack.c.bf16 %v4330, %v4329
    %v4342 = vlaneseq
    %v4343 = vshrl.u32 %v4342, 7
    %v4344 = vsub.s32 0, %v4343
    %v4345 = vrot.slane %v4262, %v4344
    %v4354 = vunpack.c.l.b16 %v4332
    %v4355 = vunpack.c.l.b16 %v4333
    %v4356 = vunpack.c.l.b16 %v4334
    %v4357 = vunpack.c.l.b16 %v4335
    %v4358 = vunpack.c.l.b16 %v4336
    %v4359 = vunpack.c.l.b16 %v4337
    %v4360 = vunpack.c.l.b16 %v4338
    %v4361 = vunpack.c.l.b16 %v4339
    %v4362 = vpack.c.b16 %v4355, %v4354
    %v4363 = vpack.c.b16 %v4357, %v4356
    %v4364 = vpack.c.b16 %v4359, %v4358
    %v4365 = vpack.c.b16 %v4361, %v4360
    %v4371 = vsel %vm255, %v4340, 0
    %v4374 = vsel %vm255, %v4341, 0
    %4376 = vmatprep.subr.bf16.mxu0 0
    %4377 = vmatpush1.bf16.msra.mxu0 %v4362
    %4378 = vmatprep.subr.bf16.mxu0 0
    %4379 = vmatpush1.bf16.msra.mxu0 %v4363
    %4380 = vmatprep.subr.bf16.mxu0 0
    %4381 = vmatpush1.bf16.msra.mxu0 %v4364
    %4382 = vmatprep.subr.bf16.mxu0 0
    %4383 = vmatpush1.bf16.msra.mxu0 %v4365
    %4384 = vmatprep.subr.bf16.mxu0 0
    %4385 = vmatpush1.bf16.msra.mxu0 0
    %4386 = vmatprep.subr.bf16.mxu0 0
    %4387 = vmatpush1.bf16.msra.mxu0 0
    %4388 = vmatprep.subr.bf16.mxu0 0
    %4389 = vmatpush1.bf16.msra.mxu0 0
    %4390 = vmatprep.subr.bf16.mxu0 0
    %4391 = vmatpush1.bf16.msra.mxu0 0
    %4392 = vmatprep.subr.bf16.mxu0 0
    %4393 = vmatpush1.bf16.msra.mxu0 0
    %4394 = vmatprep.subr.bf16.mxu0 0
    %4395 = vmatpush1.bf16.msra.mxu0 0
    %4396 = vmatprep.subr.bf16.mxu0 0
    %4397 = vmatpush1.bf16.msra.mxu0 0
    %4398 = vmatprep.subr.bf16.mxu0 0
    %4399 = vmatpush1.bf16.msra.mxu0 0
    %4400 = vmatprep.subr.bf16.mxu0 0
    %4401 = vmatpush1.bf16.msra.mxu0 0
    %4402 = vmatprep.subr.bf16.mxu0 0
    %4403 = vmatpush1.bf16.msra.mxu0 0
    %4404 = vmatprep.subr.bf16.mxu0 0
    %4405 = vmatpush1.bf16.msra.mxu0 0
    %4406 = vmatprep.subr.bf16.mxu0 0
    %4407 = vmatpush1.bf16.msra.mxu0 0
    %4408 = vmatprep.mubr.bf16.mxu0 0
    %4409 = vmatmul.mubr.bf16.gmra.mrb[0].mxu0 %v4371
    %v4410 = vpop.f32.mrb[0].mxu0
    %v4411 = vadd.f32 %v4345, %v4410
    %v4412 = vpop.f32.mrb[0].mxu0
    %v4413 = vpop.f32.mrb[0].mxu0
    %v4414 = vadd.f32 %v4345, %v4413
    %v4415 = vpop.f32.mrb[0].mxu0
    %4416 = vmatprep.mubr.bf16.mxu0 0
    %4417 = vmatmul.mubr.bf16.gmra.mrb[0].mxu0 %v4374
    %v4418 = vpop.f32.mrb[0].mxu0
    %v4419 = vadd.f32 %v4345, %v4418
    %v4420 = vpop.f32.mrb[0].mxu0
    %v4421 = vpop.f32.mrb[0].mxu0
    %v4422 = vadd.f32 %v4345, %v4421
    %v4423 = vpop.f32.mrb[0].mxu0
    %4424 = vdwg.mxu0
    %s4425 = scalar_lea.vmem %s8, 96
    %v4426 = vld [vmem:[%s4425] sm:$0xf]
    %v4427 = vld [vmem:[%s4425 + $0x4] sm:$0xf]
    %v4428 = vld [vmem:[%s4425 + $0x8] sm:$0xf]
    %v4429 = vld [vmem:[%s4425 + $0xc] sm:$0xf]
    %v4430 = vld [vmem:[%s4425 + $0x10] sm:$0xf]
    %v4431 = vld [vmem:[%s4425 + $0x14] sm:$0xf]
    %v4432 = vld [vmem:[%s4425 + $0x18] sm:$0xf]
    %v4433 = vld [vmem:[%s4425 + $0x1c] sm:$0xf]
    %v4434 = vlaneseq
    %v4435 = vshrl.u32 %v4434, 7
    %v4436 = vsub.s32 1, %v4435
    %v4437 = vrot.slane %v4262, %v4436
    %v4446 = vunpack.c.l.b16 %v4426
    %v4447 = vunpack.c.l.b16 %v4427
    %v4448 = vunpack.c.l.b16 %v4428
    %v4449 = vunpack.c.l.b16 %v4429
    %v4450 = vunpack.c.l.b16 %v4430
    %v4451 = vunpack.c.l.b16 %v4431
    %v4452 = vunpack.c.l.b16 %v4432
    %v4453 = vunpack.c.l.b16 %v4433
    %v4454 = vpack.c.b16 %v4447, %v4446
    %v4455 = vpack.c.b16 %v4449, %v4448
    %v4456 = vpack.c.b16 %v4451, %v4450
    %v4457 = vpack.c.b16 %v4453, %v4452
    %4462 = vmatprep.subr.bf16.mxu0 0
    %4463 = vmatpush1.bf16.msra.mxu0 %v4454
    %4464 = vmatprep.subr.bf16.mxu0 0
    %4465 = vmatpush1.bf16.msra.mxu0 %v4455
    %4466 = vmatprep.subr.bf16.mxu0 0
    %4467 = vmatpush1.bf16.msra.mxu0 %v4456
    %4468 = vmatprep.subr.bf16.mxu0 0
    %4469 = vmatpush1.bf16.msra.mxu0 %v4457
    %4470 = vmatprep.subr.bf16.mxu0 0
    %4471 = vmatpush1.bf16.msra.mxu0 0
    %4472 = vmatprep.subr.bf16.mxu0 0
    %4473 = vmatpush1.bf16.msra.mxu0 0
    %4474 = vmatprep.subr.bf16.mxu0 0
    %4475 = vmatpush1.bf16.msra.mxu0 0
    %4476 = vmatprep.subr.bf16.mxu0 0
    %4477 = vmatpush1.bf16.msra.mxu0 0
    %4478 = vmatprep.subr.bf16.mxu0 0
    %4479 = vmatpush1.bf16.msra.mxu0 0
    %4480 = vmatprep.subr.bf16.mxu0 0
    %4481 = vmatpush1.bf16.msra.mxu0 0
    %4482 = vmatprep.subr.bf16.mxu0 0
    %4483 = vmatpush1.bf16.msra.mxu0 0
    %4484 = vmatprep.subr.bf16.mxu0 0
    %4485 = vmatpush1.bf16.msra.mxu0 0
    %4486 = vmatprep.subr.bf16.mxu0 0
    %4487 = vmatpush1.bf16.msra.mxu0 0
    %4488 = vmatprep.subr.bf16.mxu0 0
    %4489 = vmatpush1.bf16.msra.mxu0 0
    %4490 = vmatprep.subr.bf16.mxu0 0
    %4491 = vmatpush1.bf16.msra.mxu0 0
    %4492 = vmatprep.subr.bf16.mxu0 0
    %4493 = vmatpush1.bf16.msra.mxu0 0
    %4494 = vmatprep.mubr.bf16.mxu0 0
    %4495 = vmatmul.mubr.bf16.gmra.mrb[0].mxu0 %v4371
    %v4496 = vpop.f32.mrb[0].mxu0
    %v4497 = vadd.f32 %v4437, %v4496
    %v4498 = vpop.f32.mrb[0].mxu0
    %v4499 = vpop.f32.mrb[0].mxu0
    %v4500 = vadd.f32 %v4437, %v4499
    %v4501 = vpop.f32.mrb[0].mxu0
    %4502 = vmatprep.mubr.bf16.mxu0 0
    %4503 = vmatmul.mubr.bf16.gmra.mrb[0].mxu0 %v4374
    %v4504 = vpop.f32.mrb[0].mxu0
    %v4505 = vadd.f32 %v4437, %v4504
    %v4506 = vpop.f32.mrb[0].mxu0
    %v4507 = vpop.f32.mrb[0].mxu0
    %v4508 = vadd.f32 %v4437, %v4507
    %v4509 = vpop.f32.mrb[0].mxu0
    %4510 = vdwg.mxu0
    %s4511 = scalar_lea.vmem %s9, 96
    %v4512 = vld [vmem:[%s4511] sm:$0xf]
    %v4513 = vld [vmem:[%s4511 + $0x4] sm:$0xf]
    %v4514 = vld [vmem:[%s4511 + $0x8] sm:$0xf]
    %v4515 = vld [vmem:[%s4511 + $0xc] sm:$0xf]
    %v4516 = vld [vmem:[%s4511 + $0x10] sm:$0xf]
    %v4517 = vld [vmem:[%s4511 + $0x14] sm:$0xf]
    %v4518 = vld [vmem:[%s4511 + $0x18] sm:$0xf]
    %v4519 = vld [vmem:[%s4511 + $0x1c] sm:$0xf]
    %v4520 = vlaneseq
    %v4521 = vshrl.u32 %v4520, 7
    %v4522 = vsub.s32 2, %v4521
    %v4523 = vrot.slane %v4262, %v4522
    %v4532 = vunpack.c.l.b16 %v4512
    %v4533 = vunpack.c.l.b16 %v4513
    %v4534 = vunpack.c.l.b16 %v4514
    %v4535 = vunpack.c.l.b16 %v4515
    %v4536 = vunpack.c.l.b16 %v4516
    %v4537 = vunpack.c.l.b16 %v4517
    %v4538 = vunpack.c.l.b16 %v4518
    %v4539 = vunpack.c.l.b16 %v4519
    %v4540 = vpack.c.b16 %v4533, %v4532
    %v4541 = vpack.c.b16 %v4535, %v4534
    %v4542 = vpack.c.b16 %v4537, %v4536
    %v4543 = vpack.c.b16 %v4539, %v4538
    %4548 = vmatprep.subr.bf16.mxu0 0
    %4549 = vmatpush1.bf16.msra.mxu0 %v4540
    %4550 = vmatprep.subr.bf16.mxu0 0
    %4551 = vmatpush1.bf16.msra.mxu0 %v4541
    %4552 = vmatprep.subr.bf16.mxu0 0
    %4553 = vmatpush1.bf16.msra.mxu0 %v4542
    %4554 = vmatprep.subr.bf16.mxu0 0
    %4555 = vmatpush1.bf16.msra.mxu0 %v4543
    %4556 = vmatprep.subr.bf16.mxu0 0
    %4557 = vmatpush1.bf16.msra.mxu0 0
    %4558 = vmatprep.subr.bf16.mxu0 0
    %4559 = vmatpush1.bf16.msra.mxu0 0
    %4560 = vmatprep.subr.bf16.mxu0 0
    %4561 = vmatpush1.bf16.msra.mxu0 0
    %4562 = vmatprep.subr.bf16.mxu0 0
    %4563 = vmatpush1.bf16.msra.mxu0 0
    %4564 = vmatprep.subr.bf16.mxu0 0
    %4565 = vmatpush1.bf16.msra.mxu0 0
    %4566 = vmatprep.subr.bf16.mxu0 0
    %4567 = vmatpush1.bf16.msra.mxu0 0
    %4568 = vmatprep.subr.bf16.mxu0 0
    %4569 = vmatpush1.bf16.msra.mxu0 0
    %4570 = vmatprep.subr.bf16.mxu0 0
    %4571 = vmatpush1.bf16.msra.mxu0 0
    %4572 = vmatprep.subr.bf16.mxu0 0
    %4573 = vmatpush1.bf16.msra.mxu0 0
    %4574 = vmatprep.subr.bf16.mxu0 0
    %4575 = vmatpush1.bf16.msra.mxu0 0
    %4576 = vmatprep.subr.bf16.mxu0 0
    %4577 = vmatpush1.bf16.msra.mxu0 0
    %4578 = vmatprep.subr.bf16.mxu0 0
    %4579 = vmatpush1.bf16.msra.mxu0 0
    %4580 = vmatprep.mubr.bf16.mxu0 0
    %4581 = vmatmul.mubr.bf16.gmra.mrb[0].mxu0 %v4371
    %v4582 = vpop.f32.mrb[0].mxu0
    %v4583 = vadd.f32 %v4523, %v4582
    %v4584 = vpop.f32.mrb[0].mxu0
    %v4585 = vpop.f32.mrb[0].mxu0
    %v4586 = vadd.f32 %v4523, %v4585
    %v4587 = vpop.f32.mrb[0].mxu0
    %4588 = vmatprep.mubr.bf16.mxu0 0
    %4589 = vmatmul.mubr.bf16.gmra.mrb[0].mxu0 %v4374
    %v4590 = vpop.f32.mrb[0].mxu0
    %v4591 = vadd.f32 %v4523, %v4590
    %v4592 = vpop.f32.mrb[0].mxu0
    %v4593 = vpop.f32.mrb[0].mxu0
    %v4594 = vadd.f32 %v4523, %v4593
    %v4595 = vpop.f32.mrb[0].mxu0
    %4596 = vdwg.mxu0
    %v4597 = vmul.f32 %v4411, %v126
    %v4598 = vmul.f32 %v4414, %v127
    %v4599 = vmul.f32 %v4419, %v128
    %v4600 = vmul.f32 %v4422, %v129
    %v4601 = vmul.f32 %v4411, %v130
    %v4602 = vmul.f32 %v4414, %v131
    %v4603 = vmul.f32 %v4419, %v132
    %v4604 = vmul.f32 %v4422, %v133
    %v4605 = vmul.f32 %v4411, %v134
    %v4606 = vmul.f32 %v4414, %v135
    %v4607 = vmul.f32 %v4419, %v136
    %v4608 = vmul.f32 %v4422, %v137
    %v4609 = vmul.f32 %v4411, %v138
    %v4610 = vmul.f32 %v4414, %v139
    %v4611 = vmul.f32 %v4419, %v140
    %v4612 = vmul.f32 %v4422, %v141
    %v4613 = vpack.c.bf16 %v4598, %v4597
    %v4614 = vpack.c.bf16 %v4600, %v4599
    %v4615 = vpack.c.bf16 %v4602, %v4601
    %v4616 = vpack.c.bf16 %v4604, %v4603
    %v4617 = vpack.c.bf16 %v4606, %v4605
    %v4618 = vpack.c.bf16 %v4608, %v4607
    %v4619 = vpack.c.bf16 %v4610, %v4609
    %v4620 = vpack.c.bf16 %v4612, %v4611
    %v4621 = vpack.c.bf16 %v4500, %v4497
    %v4622 = vpack.c.bf16 %v4508, %v4505
    %v4624 = vsel %vm255, %v4613, 0
    %v4627 = vsel %vm255, %v4614, 0
    %v4630 = vsel %vm255, %v4615, 0
    %v4633 = vsel %vm255, %v4616, 0
    %v4636 = vsel %vm255, %v4617, 0
    %v4639 = vsel %vm255, %v4618, 0
    %v4642 = vsel %vm255, %v4619, 0
    %v4645 = vsel %vm255, %v4620, 0
    %v4648 = vsel %vm255, %v4621, 0
    %v4651 = vsel %vm255, %v4622, 0
    %4653 = vmatprep.subr.bf16.mxu0 0
    %4654 = vmatpush1.bf16.xpose.msra.mxu0 %v4648
    %4655 = vmatprep.subr.bf16.mxu0 0
    %4656 = vmatpush1.bf16.xpose.msra.mxu0 %v4651
    %4657 = vmatprep.subr.bf16.mxu0 0
    %4658 = vmatpush1.bf16.xpose.msra.mxu0 0
    %4659 = vmatprep.subr.bf16.mxu0 0
    %4660 = vmatpush1.bf16.xpose.msra.mxu0 0
    %4661 = vmatprep.subr.bf16.mxu0 0
    %4662 = vmatpush1.bf16.xpose.msra.mxu0 0
    %4663 = vmatprep.subr.bf16.mxu0 0
    %4664 = vmatpush1.bf16.xpose.msra.mxu0 0
    %4665 = vmatprep.subr.bf16.mxu0 0
    %4666 = vmatpush1.bf16.xpose.msra.mxu0 0
    %4667 = vmatprep.subr.bf16.mxu0 0
    %4668 = vmatpush1.bf16.xpose.msra.mxu0 0
    %4669 = vmatprep.subr.bf16.mxu0 0
    %4670 = vmatpush1.bf16.xpose.msra.mxu0 0
    %4671 = vmatprep.subr.bf16.mxu0 0
    %4672 = vmatpush1.bf16.xpose.msra.mxu0 0
    %4673 = vmatprep.subr.bf16.mxu0 0
    %4674 = vmatpush1.bf16.xpose.msra.mxu0 0
    %4675 = vmatprep.subr.bf16.mxu0 0
    %4676 = vmatpush1.bf16.xpose.msra.mxu0 0
    %4677 = vmatprep.subr.bf16.mxu0 0
    %4678 = vmatpush1.bf16.xpose.msra.mxu0 0
    %4679 = vmatprep.subr.bf16.mxu0 0
    %4680 = vmatpush1.bf16.xpose.msra.mxu0 0
    %4681 = vmatprep.subr.bf16.mxu0 0
    %4682 = vmatpush1.bf16.xpose.msra.mxu0 0
    %4683 = vmatprep.subr.bf16.mxu0 0
    %4684 = vmatpush1.bf16.xpose.msra.mxu0 0
    %4685 = vmatprep.mubr.bf16.mxu0 0
    %4686 = vmatmul.mubr.bf16.gmra.mrb[0].mxu0 %v4624
    %v4687 = vpop.f32.mrb[0].mxu0
    %v4688 = vadd.f32 0.0, %v4687
    %v4689 = vpop.f32.mrb[0].mxu0
    %v4690 = vpop.f32.mrb[0].mxu0
    %v4691 = vadd.f32 0.0, %v4690
    %v4692 = vpop.f32.mrb[0].mxu0
    %4693 = vmatprep.mubr.bf16.mxu0 0
    %4694 = vmatmul.mubr.bf16.gmra.mrb[0].mxu0 %v4627
    %v4695 = vpop.f32.mrb[0].mxu0
    %v4696 = vadd.f32 0.0, %v4695
    %v4697 = vpop.f32.mrb[0].mxu0
    %v4698 = vpop.f32.mrb[0].mxu0
    %v4699 = vadd.f32 0.0, %v4698
    %v4700 = vpop.f32.mrb[0].mxu0
    %4701 = vmatprep.mubr.bf16.mxu0 0
    %4702 = vmatmul.mubr.bf16.gmra.mrb[0].mxu0 %v4630
    %v4703 = vpop.f32.mrb[0].mxu0
    %v4704 = vadd.f32 0.0, %v4703
    %v4705 = vpop.f32.mrb[0].mxu0
    %v4706 = vpop.f32.mrb[0].mxu0
    %v4707 = vadd.f32 0.0, %v4706
    %v4708 = vpop.f32.mrb[0].mxu0
    %4709 = vmatprep.mubr.bf16.mxu0 0
    %4710 = vmatmul.mubr.bf16.gmra.mrb[0].mxu0 %v4633
    %v4711 = vpop.f32.mrb[0].mxu0
    %v4712 = vadd.f32 0.0, %v4711
    %v4713 = vpop.f32.mrb[0].mxu0
    %v4714 = vpop.f32.mrb[0].mxu0
    %v4715 = vadd.f32 0.0, %v4714
    %v4716 = vpop.f32.mrb[0].mxu0
    %4717 = vmatprep.mubr.bf16.mxu0 0
    %4718 = vmatmul.mubr.bf16.gmra.mrb[0].mxu0 %v4636
    %v4719 = vpop.f32.mrb[0].mxu0
    %v4720 = vadd.f32 0.0, %v4719
    %v4721 = vpop.f32.mrb[0].mxu0
    %v4722 = vpop.f32.mrb[0].mxu0
    %v4723 = vadd.f32 0.0, %v4722
    %v4724 = vpop.f32.mrb[0].mxu0
    %4725 = vmatprep.mubr.bf16.mxu0 0
    %4726 = vmatmul.mubr.bf16.gmra.mrb[0].mxu0 %v4639
    %v4727 = vpop.f32.mrb[0].mxu0
    %v4728 = vadd.f32 0.0, %v4727
    %v4729 = vpop.f32.mrb[0].mxu0
    %v4730 = vpop.f32.mrb[0].mxu0
    %v4731 = vadd.f32 0.0, %v4730
    %v4732 = vpop.f32.mrb[0].mxu0
    %4733 = vmatprep.mubr.bf16.mxu0 0
    %4734 = vmatmul.mubr.bf16.gmra.mrb[0].mxu0 %v4642
    %v4735 = vpop.f32.mrb[0].mxu0
    %v4736 = vadd.f32 0.0, %v4735
    %v4737 = vpop.f32.mrb[0].mxu0
    %v4738 = vpop.f32.mrb[0].mxu0
    %v4739 = vadd.f32 0.0, %v4738
    %v4740 = vpop.f32.mrb[0].mxu0
    %4741 = vmatprep.mubr.bf16.mxu0 0
    %4742 = vmatmul.mubr.bf16.gmra.mrb[0].mxu0 %v4645
    %v4743 = vpop.f32.mrb[0].mxu0
    %v4744 = vadd.f32 0.0, %v4743
    %v4745 = vpop.f32.mrb[0].mxu0
    %v4746 = vpop.f32.mrb[0].mxu0
    %v4747 = vadd.f32 0.0, %v4746
    %v4748 = vpop.f32.mrb[0].mxu0
    %4749 = vdwg.mxu0
    %v4750 = vmul.f32 %v4688, 0.25
    %v4751 = vmul.f32 %v4691, 0.25
    %v4752 = vmul.f32 %v4696, 0.25
    %v4753 = vmul.f32 %v4699, 0.25
    %v4754 = vmul.f32 %v4704, 0.25
    %v4755 = vmul.f32 %v4707, 0.25
    %v4756 = vmul.f32 %v4712, 0.25
    %v4757 = vmul.f32 %v4715, 0.25
    %v4758 = vmul.f32 %v4720, 0.25
    %v4759 = vmul.f32 %v4723, 0.25
    %v4760 = vmul.f32 %v4728, 0.25
    %v4761 = vmul.f32 %v4731, 0.25
    %v4762 = vmul.f32 %v4736, 0.25
    %v4763 = vmul.f32 %v4739, 0.25
    %v4764 = vmul.f32 %v4744, 0.25
    %v4765 = vmul.f32 %v4747, 0.25
    %v4766 = vadd.f32 %v4750, %v190
    %v4767 = vadd.f32 %v4751, %v191
    %v4768 = vadd.f32 %v4752, %v192
    %v4769 = vadd.f32 %v4753, %v193
    %v4770 = vadd.f32 %v4754, %v194
    %v4771 = vadd.f32 %v4755, %v195
    %v4772 = vadd.f32 %v4756, %v196
    %v4773 = vadd.f32 %v4757, %v197
    %v4774 = vadd.f32 %v4758, %v198
    %v4775 = vadd.f32 %v4759, %v199
    %v4776 = vadd.f32 %v4760, %v200
    %v4777 = vadd.f32 %v4761, %v201
    %v4778 = vadd.f32 %v4762, %v202
    %v4779 = vadd.f32 %v4763, %v203
    %v4780 = vadd.f32 %v4764, %v204
    %v4781 = vadd.f32 %v4765, %v205
    %v4782 = vsel %vm835, %v4766, -inf
    %4783 = vmax.xlane.f32.xlu0 %v4782
    %v4784 = vpop.xlane.xlu0 %4783
    %v4785 = vsel %vm835, %v4767, -inf
    %4786 = vmax.xlane.f32.xlu0 %v4785
    %v4787 = vpop.xlane.xlu0 %4786
    %v4788 = vsel %vm835, %v4768, -inf
    %4789 = vmax.xlane.f32.xlu0 %v4788
    %v4790 = vpop.xlane.xlu0 %4789
    %v4791 = vsel %vm835, %v4769, -inf
    %4792 = vmax.xlane.f32.xlu0 %v4791
    %v4793 = vpop.xlane.xlu0 %4792
    %v4794 = vsel %vm835, %v4770, -inf
    %4795 = vmax.xlane.f32.xlu0 %v4794
    %v4796 = vpop.xlane.xlu0 %4795
    %v4797 = vsel %vm835, %v4771, -inf
    %4798 = vmax.xlane.f32.xlu0 %v4797
    %v4799 = vpop.xlane.xlu0 %4798
    %v4800 = vsel %vm835, %v4772, -inf
    %4801 = vmax.xlane.f32.xlu0 %v4800
    %v4802 = vpop.xlane.xlu0 %4801
    %v4803 = vsel %vm835, %v4773, -inf
    %4804 = vmax.xlane.f32.xlu0 %v4803
    %v4805 = vpop.xlane.xlu0 %4804
    %v4806 = vsel %vm835, %v4774, -inf
    %4807 = vmax.xlane.f32.xlu0 %v4806
    %v4808 = vpop.xlane.xlu0 %4807
    %v4809 = vsel %vm835, %v4775, -inf
    %4810 = vmax.xlane.f32.xlu0 %v4809
    %v4811 = vpop.xlane.xlu0 %4810
    %v4812 = vsel %vm835, %v4776, -inf
    %4813 = vmax.xlane.f32.xlu0 %v4812
    %v4814 = vpop.xlane.xlu0 %4813
    %v4815 = vsel %vm835, %v4777, -inf
    %4816 = vmax.xlane.f32.xlu0 %v4815
    %v4817 = vpop.xlane.xlu0 %4816
    %v4818 = vsel %vm835, %v4778, -inf
    %4819 = vmax.xlane.f32.xlu0 %v4818
    %v4820 = vpop.xlane.xlu0 %4819
    %v4821 = vsel %vm835, %v4779, -inf
    %4822 = vmax.xlane.f32.xlu0 %v4821
    %v4823 = vpop.xlane.xlu0 %4822
    %v4824 = vsel %vm835, %v4780, -inf
    %4825 = vmax.xlane.f32.xlu0 %v4824
    %v4826 = vpop.xlane.xlu0 %4825
    %v4827 = vsel %vm835, %v4781, -inf
    %4828 = vmax.xlane.f32.xlu0 %v4827
    %v4829 = vpop.xlane.xlu0 %4828
    %v4830 = vsub.f32 %v4766, %v4784
    %v4831 = vsub.f32 %v4767, %v4787
    %v4832 = vsub.f32 %v4768, %v4790
    %v4833 = vsub.f32 %v4769, %v4793
    %v4834 = vsub.f32 %v4770, %v4796
    %v4835 = vsub.f32 %v4771, %v4799
    %v4836 = vsub.f32 %v4772, %v4802
    %v4837 = vsub.f32 %v4773, %v4805
    %v4838 = vsub.f32 %v4774, %v4808
    %v4839 = vsub.f32 %v4775, %v4811
    %v4840 = vsub.f32 %v4776, %v4814
    %v4841 = vsub.f32 %v4777, %v4817
    %v4842 = vsub.f32 %v4778, %v4820
    %v4843 = vsub.f32 %v4779, %v4823
    %v4844 = vsub.f32 %v4780, %v4826
    %v4845 = vsub.f32 %v4781, %v4829
    %v4846 = vmul.f32 %v4830, 1.442695
    %v4847 = vpow.pop %v4846
    %v4848 = vmul.f32 %v4831, 1.442695
    %v4849 = vpow.pop %v4848
    %v4850 = vmul.f32 %v4832, 1.442695
    %v4851 = vpow.pop %v4850
    %v4852 = vmul.f32 %v4833, 1.442695
    %v4853 = vpow.pop %v4852
    %v4854 = vmul.f32 %v4834, 1.442695
    %v4855 = vpow.pop %v4854
    %v4856 = vmul.f32 %v4835, 1.442695
    %v4857 = vpow.pop %v4856
    %v4858 = vmul.f32 %v4836, 1.442695
    %v4859 = vpow.pop %v4858
    %v4860 = vmul.f32 %v4837, 1.442695
    %v4861 = vpow.pop %v4860
    %v4862 = vmul.f32 %v4838, 1.442695
    %v4863 = vpow.pop %v4862
    %v4864 = vmul.f32 %v4839, 1.442695
    %v4865 = vpow.pop %v4864
    %v4866 = vmul.f32 %v4840, 1.442695
    %v4867 = vpow.pop %v4866
    %v4868 = vmul.f32 %v4841, 1.442695
    %v4869 = vpow.pop %v4868
    %v4870 = vmul.f32 %v4842, 1.442695
    %v4871 = vpow.pop %v4870
    %v4872 = vmul.f32 %v4843, 1.442695
    %v4873 = vpow.pop %v4872
    %v4874 = vmul.f32 %v4844, 1.442695
    %v4875 = vpow.pop %v4874
    %v4876 = vmul.f32 %v4845, 1.442695
    %v4877 = vpow.pop %v4876
    %v4878 = vsel %vm835, %v4847, 0.0
    %4879 = vadd.xlane.f32.xlu0 %v4878
    %v4880 = vpop.xlane.xlu0 %4879
    %v4881 = vsel %vm835, %v4849, 0.0
    %4882 = vadd.xlane.f32.xlu0 %v4881
    %v4883 = vpop.xlane.xlu0 %4882
    %v4884 = vsel %vm835, %v4851, 0.0
    %4885 = vadd.xlane.f32.xlu0 %v4884
    %v4886 = vpop.xlane.xlu0 %4885
    %v4887 = vsel %vm835, %v4853, 0.0
    %4888 = vadd.xlane.f32.xlu0 %v4887
    %v4889 = vpop.xlane.xlu0 %4888
    %v4890 = vsel %vm835, %v4855, 0.0
    %4891 = vadd.xlane.f32.xlu0 %v4890
    %v4892 = vpop.xlane.xlu0 %4891
    %v4893 = vsel %vm835, %v4857, 0.0
    %4894 = vadd.xlane.f32.xlu0 %v4893
    %v4895 = vpop.xlane.xlu0 %4894
    %v4896 = vsel %vm835, %v4859, 0.0
    %4897 = vadd.xlane.f32.xlu0 %v4896
    %v4898 = vpop.xlane.xlu0 %4897
    %v4899 = vsel %vm835, %v4861, 0.0
    %4900 = vadd.xlane.f32.xlu0 %v4899
    %v4901 = vpop.xlane.xlu0 %4900
    %v4902 = vsel %vm835, %v4863, 0.0
    %4903 = vadd.xlane.f32.xlu0 %v4902
    %v4904 = vpop.xlane.xlu0 %4903
    %v4905 = vsel %vm835, %v4865, 0.0
    %4906 = vadd.xlane.f32.xlu0 %v4905
    %v4907 = vpop.xlane.xlu0 %4906
    %v4908 = vsel %vm835, %v4867, 0.0
    %4909 = vadd.xlane.f32.xlu0 %v4908
    %v4910 = vpop.xlane.xlu0 %4909
    %v4911 = vsel %vm835, %v4869, 0.0
    %4912 = vadd.xlane.f32.xlu0 %v4911
    %v4913 = vpop.xlane.xlu0 %4912
    %v4914 = vsel %vm835, %v4871, 0.0
    %4915 = vadd.xlane.f32.xlu0 %v4914
    %v4916 = vpop.xlane.xlu0 %4915
    %v4917 = vsel %vm835, %v4873, 0.0
    %4918 = vadd.xlane.f32.xlu0 %v4917
    %v4919 = vpop.xlane.xlu0 %4918
    %v4920 = vsel %vm835, %v4875, 0.0
    %4921 = vadd.xlane.f32.xlu0 %v4920
    %v4922 = vpop.xlane.xlu0 %4921
    %v4923 = vsel %vm835, %v4877, 0.0
    %4924 = vadd.xlane.f32.xlu0 %v4923
    %v4925 = vpop.xlane.xlu0 %4924
    %v4926 = vrcp.pop %v4880
    %v4927 = vrcp.pop %v4883
    %v4928 = vrcp.pop %v4886
    %v4929 = vrcp.pop %v4889
    %v4930 = vrcp.pop %v4892
    %v4931 = vrcp.pop %v4895
    %v4932 = vrcp.pop %v4898
    %v4933 = vrcp.pop %v4901
    %v4934 = vrcp.pop %v4904
    %v4935 = vrcp.pop %v4907
    %v4936 = vrcp.pop %v4910
    %v4937 = vrcp.pop %v4913
    %v4938 = vrcp.pop %v4916
    %v4939 = vrcp.pop %v4919
    %v4940 = vrcp.pop %v4922
    %v4941 = vrcp.pop %v4925
    %v4942 = vmul.f32 %v4847, %v4926
    %v4943 = vmul.f32 %v4849, %v4927
    %v4944 = vmul.f32 %v4851, %v4928
    %v4945 = vmul.f32 %v4853, %v4929
    %v4946 = vmul.f32 %v4855, %v4930
    %v4947 = vmul.f32 %v4857, %v4931
    %v4948 = vmul.f32 %v4859, %v4932
    %v4949 = vmul.f32 %v4861, %v4933
    %v4950 = vmul.f32 %v4863, %v4934
    %v4951 = vmul.f32 %v4865, %v4935
    %v4952 = vmul.f32 %v4867, %v4936
    %v4953 = vmul.f32 %v4869, %v4937
    %v4954 = vmul.f32 %v4871, %v4938
    %v4955 = vmul.f32 %v4873, %v4939
    %v4956 = vmul.f32 %v4875, %v4940
    %v4957 = vmul.f32 %v4877, %v4941
    %v4958 = vpack.c.bf16 %v4943, %v4942
    %v4959 = vpack.c.bf16 %v4945, %v4944
    %v4960 = vpack.c.bf16 %v4947, %v4946
    %v4961 = vpack.c.bf16 %v4949, %v4948
    %v4962 = vpack.c.bf16 %v4951, %v4950
    %v4963 = vpack.c.bf16 %v4953, %v4952
    %v4964 = vpack.c.bf16 %v4955, %v4954
    %v4965 = vpack.c.bf16 %v4957, %v4956
    %v4966 = vpack.c.bf16 %v4586, %v4583
    %v4967 = vpack.c.bf16 %v4594, %v4591
    %v4969 = vsel %vm835, %v4958, 0
    %v4972 = vsel %vm835, %v4959, 0
    %v4975 = vsel %vm835, %v4960, 0
    %v4978 = vsel %vm835, %v4961, 0
    %v4981 = vsel %vm835, %v4962, 0
    %v4984 = vsel %vm835, %v4963, 0
    %v4987 = vsel %vm835, %v4964, 0
    %v4990 = vsel %vm835, %v4965, 0
    %4992 = vmatprep.subr.bf16.mxu0 0
    %4993 = vmatpush1.bf16.msra.mxu0 %v4966
    %4994 = vmatprep.subr.bf16.mxu0 0
    %4995 = vmatpush1.bf16.msra.mxu0 %v4967
    %4996 = vmatprep.subr.bf16.mxu0 0
    %4997 = vmatpush1.bf16.msra.mxu0 0
    %4998 = vmatprep.subr.bf16.mxu0 0
    %4999 = vmatpush1.bf16.msra.mxu0 0
    %5000 = vmatprep.subr.bf16.mxu0 0
    %5001 = vmatpush1.bf16.msra.mxu0 0
    %5002 = vmatprep.subr.bf16.mxu0 0
    %5003 = vmatpush1.bf16.msra.mxu0 0
    %5004 = vmatprep.subr.bf16.mxu0 0
    %5005 = vmatpush1.bf16.msra.mxu0 0
    %5006 = vmatprep.subr.bf16.mxu0 0
    %5007 = vmatpush1.bf16.msra.mxu0 0
    %5008 = vmatprep.subr.bf16.mxu0 0
    %5009 = vmatpush1.bf16.msra.mxu0 0
    %5010 = vmatprep.subr.bf16.mxu0 0
    %5011 = vmatpush1.bf16.msra.mxu0 0
    %5012 = vmatprep.subr.bf16.mxu0 0
    %5013 = vmatpush1.bf16.msra.mxu0 0
    %5014 = vmatprep.subr.bf16.mxu0 0
    %5015 = vmatpush1.bf16.msra.mxu0 0
    %5016 = vmatprep.subr.bf16.mxu0 0
    %5017 = vmatpush1.bf16.msra.mxu0 0
    %5018 = vmatprep.subr.bf16.mxu0 0
    %5019 = vmatpush1.bf16.msra.mxu0 0
    %5020 = vmatprep.subr.bf16.mxu0 0
    %5021 = vmatpush1.bf16.msra.mxu0 0
    %5022 = vmatprep.subr.bf16.mxu0 0
    %5023 = vmatpush1.bf16.msra.mxu0 0
    %5024 = vmatprep.mubr.bf16.mxu0 0
    %5025 = vmatmul.mubr.bf16.gmra.mrb[0].mxu0 %v4969
    %v5026 = vpop.f32.mrb[0].mxu0
    %v5027 = vadd.f32 0.0, %v5026
    %v5028 = vpop.f32.mrb[0].mxu0
    %v5029 = vpop.f32.mrb[0].mxu0
    %v5030 = vadd.f32 0.0, %v5029
    %v5031 = vpop.f32.mrb[0].mxu0
    %5032 = vmatprep.mubr.bf16.mxu0 0
    %5033 = vmatmul.mubr.bf16.gmra.mrb[0].mxu0 %v4972
    %v5034 = vpop.f32.mrb[0].mxu0
    %v5035 = vadd.f32 0.0, %v5034
    %v5036 = vpop.f32.mrb[0].mxu0
    %v5037 = vpop.f32.mrb[0].mxu0
    %v5038 = vadd.f32 0.0, %v5037
    %v5039 = vpop.f32.mrb[0].mxu0
    %5040 = vmatprep.mubr.bf16.mxu0 0
    %5041 = vmatmul.mubr.bf16.gmra.mrb[0].mxu0 %v4975
    %v5042 = vpop.f32.mrb[0].mxu0
    %v5043 = vadd.f32 0.0, %v5042
    %v5044 = vpop.f32.mrb[0].mxu0
    %v5045 = vpop.f32.mrb[0].mxu0
    %v5046 = vadd.f32 0.0, %v5045
    %v5047 = vpop.f32.mrb[0].mxu0
    %5048 = vmatprep.mubr.bf16.mxu0 0
    %5049 = vmatmul.mubr.bf16.gmra.mrb[0].mxu0 %v4978
    %v5050 = vpop.f32.mrb[0].mxu0
    %v5051 = vadd.f32 0.0, %v5050
    %v5052 = vpop.f32.mrb[0].mxu0
    %v5053 = vpop.f32.mrb[0].mxu0
    %v5054 = vadd.f32 0.0, %v5053
    %v5055 = vpop.f32.mrb[0].mxu0
    %5056 = vmatprep.mubr.bf16.mxu0 0
    %5057 = vmatmul.mubr.bf16.gmra.mrb[0].mxu0 %v4981
    %v5058 = vpop.f32.mrb[0].mxu0
    %v5059 = vadd.f32 0.0, %v5058
    %v5060 = vpop.f32.mrb[0].mxu0
    %v5061 = vpop.f32.mrb[0].mxu0
    %v5062 = vadd.f32 0.0, %v5061
    %v5063 = vpop.f32.mrb[0].mxu0
    %5064 = vmatprep.mubr.bf16.mxu0 0
    %5065 = vmatmul.mubr.bf16.gmra.mrb[0].mxu0 %v4984
    %v5066 = vpop.f32.mrb[0].mxu0
    %v5067 = vadd.f32 0.0, %v5066
    %v5068 = vpop.f32.mrb[0].mxu0
    %v5069 = vpop.f32.mrb[0].mxu0
    %v5070 = vadd.f32 0.0, %v5069
    %v5071 = vpop.f32.mrb[0].mxu0
    %5072 = vmatprep.mubr.bf16.mxu0 0
    %5073 = vmatmul.mubr.bf16.gmra.mrb[0].mxu0 %v4987
    %v5074 = vpop.f32.mrb[0].mxu0
    %v5075 = vadd.f32 0.0, %v5074
    %v5076 = vpop.f32.mrb[0].mxu0
    %v5077 = vpop.f32.mrb[0].mxu0
    %v5078 = vadd.f32 0.0, %v5077
    %v5079 = vpop.f32.mrb[0].mxu0
    %5080 = vmatprep.mubr.bf16.mxu0 0
    %5081 = vmatmul.mubr.bf16.gmra.mrb[0].mxu0 %v4990
    %v5082 = vpop.f32.mrb[0].mxu0
    %v5083 = vadd.f32 0.0, %v5082
    %v5084 = vpop.f32.mrb[0].mxu0
    %v5085 = vpop.f32.mrb[0].mxu0
    %v5086 = vadd.f32 0.0, %v5085
    %v5087 = vpop.f32.mrb[0].mxu0
    %5088 = vdwg.mxu0
    %v5089 = vmul.f32 %v5027, %v126
    %v5090 = vmul.f32 %v5030, %v127
    %v5091 = vmul.f32 %v5035, %v128
    %v5092 = vmul.f32 %v5038, %v129
    %v5093 = vmul.f32 %v5043, %v130
    %v5094 = vmul.f32 %v5046, %v131
    %v5095 = vmul.f32 %v5051, %v132
    %v5096 = vmul.f32 %v5054, %v133
    %v5097 = vmul.f32 %v5059, %v134
    %v5098 = vmul.f32 %v5062, %v135
    %v5099 = vmul.f32 %v5067, %v136
    %v5100 = vmul.f32 %v5070, %v137
    %v5101 = vmul.f32 %v5075, %v138
    %v5102 = vmul.f32 %v5078, %v139
    %v5103 = vmul.f32 %v5083, %v140
    %v5104 = vmul.f32 %v5086, %v141
    %v5105 = vsel %vm255, %v5089, 0.0
    %v5106 = vsel %vm255, %v5093, 0.0
    %v5107 = vadd.f32 %v5105, %v5106
    %v5108 = vsel %vm255, %v5097, 0.0
    %v5109 = vadd.f32 %v5107, %v5108
    %v5110 = vsel %vm255, %v5101, 0.0
    %v5111 = vadd.f32 %v5109, %v5110
    %v5112 = vsel %vm255, %v5090, 0.0
    %v5113 = vsel %vm255, %v5094, 0.0
    %v5114 = vadd.f32 %v5112, %v5113
    %v5115 = vsel %vm255, %v5098, 0.0
    %v5116 = vadd.f32 %v5114, %v5115
    %v5117 = vsel %vm255, %v5102, 0.0
    %v5118 = vadd.f32 %v5116, %v5117
    %v5119 = vsel %vm255, %v5091, 0.0
    %v5120 = vsel %vm255, %v5095, 0.0
    %v5121 = vadd.f32 %v5119, %v5120
    %v5122 = vsel %vm255, %v5099, 0.0
    %v5123 = vadd.f32 %v5121, %v5122
    %v5124 = vsel %vm255, %v5103, 0.0
    %v5125 = vadd.f32 %v5123, %v5124
    %v5126 = vsel %vm255, %v5092, 0.0
    %v5127 = vsel %vm255, %v5096, 0.0
    %v5128 = vadd.f32 %v5126, %v5127
    %v5129 = vsel %vm255, %v5100, 0.0
    %v5130 = vadd.f32 %v5128, %v5129
    %v5131 = vsel %vm255, %v5104, 0.0
    %v5132 = vadd.f32 %v5130, %v5131
    %s5133 = scalar_lea.vmem %s11, 96
    %v5134 = vld [vmem:[%s5133] sm:$0xf]
    %v5135 = vld [vmem:[%s5133 + $0x4] sm:$0xf]
    %v5136 = vld [vmem:[%s5133 + $0x8] sm:$0xf]
    %v5137 = vld [vmem:[%s5133 + $0xc] sm:$0xf]
    %v5138 = vld [vmem:[%s5133 + $0x10] sm:$0xf]
    %v5139 = vld [vmem:[%s5133 + $0x14] sm:$0xf]
    %v5140 = vld [vmem:[%s5133 + $0x18] sm:$0xf]
    %v5141 = vld [vmem:[%s5133 + $0x1c] sm:$0xf]
    %v5142 = vpack.c.bf16 %v5118, %v5111
    %v5143 = vpack.c.bf16 %v5132, %v5125
    %v5152 = vunpack.c.l.b16 %v5134
    %v5153 = vunpack.c.l.b16 %v5135
    %v5154 = vunpack.c.l.b16 %v5136
    %v5155 = vunpack.c.l.b16 %v5137
    %v5156 = vunpack.c.l.b16 %v5138
    %v5157 = vunpack.c.l.b16 %v5139
    %v5158 = vunpack.c.l.b16 %v5140
    %v5159 = vunpack.c.l.b16 %v5141
    %v5160 = vpack.c.b16 %v5153, %v5152
    %v5161 = vpack.c.b16 %v5155, %v5154
    %v5162 = vpack.c.b16 %v5157, %v5156
    %v5163 = vpack.c.b16 %v5159, %v5158
    %v5169 = vsel %vm255, %v5142, 0
    %v5172 = vsel %vm255, %v5143, 0
    %5174 = vmatprep.subr.bf16.mxu0 0
    %5175 = vmatpush1.bf16.msra.mxu0 %v5160
    %5176 = vmatprep.subr.bf16.mxu0 0
    %5177 = vmatpush1.bf16.msra.mxu0 %v5161
    %5178 = vmatprep.subr.bf16.mxu0 0
    %5179 = vmatpush1.bf16.msra.mxu0 %v5162
    %5180 = vmatprep.subr.bf16.mxu0 0
    %5181 = vmatpush1.bf16.msra.mxu0 %v5163
    %5182 = vmatprep.subr.bf16.mxu0 0
    %5183 = vmatpush1.bf16.msra.mxu0 0
    %5184 = vmatprep.subr.bf16.mxu0 0
    %5185 = vmatpush1.bf16.msra.mxu0 0
    %5186 = vmatprep.subr.bf16.mxu0 0
    %5187 = vmatpush1.bf16.msra.mxu0 0
    %5188 = vmatprep.subr.bf16.mxu0 0
    %5189 = vmatpush1.bf16.msra.mxu0 0
    %5190 = vmatprep.subr.bf16.mxu0 0
    %5191 = vmatpush1.bf16.msra.mxu0 0
    %5192 = vmatprep.subr.bf16.mxu0 0
    %5193 = vmatpush1.bf16.msra.mxu0 0
    %5194 = vmatprep.subr.bf16.mxu0 0
    %5195 = vmatpush1.bf16.msra.mxu0 0
    %5196 = vmatprep.subr.bf16.mxu0 0
    %5197 = vmatpush1.bf16.msra.mxu0 0
    %5198 = vmatprep.subr.bf16.mxu0 0
    %5199 = vmatpush1.bf16.msra.mxu0 0
    %5200 = vmatprep.subr.bf16.mxu0 0
    %5201 = vmatpush1.bf16.msra.mxu0 0
    %5202 = vmatprep.subr.bf16.mxu0 0
    %5203 = vmatpush1.bf16.msra.mxu0 0
    %5204 = vmatprep.subr.bf16.mxu0 0
    %5205 = vmatpush1.bf16.msra.mxu0 0
    %5206 = vmatprep.mubr.bf16.mxu0 0
    %5207 = vmatmul.mubr.bf16.gmra.mrb[0].mxu0 %v5169
    %v5208 = vpop.f32.mrb[0].mxu0
    %v5209 = vadd.f32 0.0, %v5208
    %v5210 = vpop.f32.mrb[0].mxu0
    %v5211 = vpop.f32.mrb[0].mxu0
    %v5212 = vadd.f32 0.0, %v5211
    %v5213 = vpop.f32.mrb[0].mxu0
    %5214 = vmatprep.mubr.bf16.mxu0 0
    %5215 = vmatmul.mubr.bf16.gmra.mrb[0].mxu0 %v5172
    %v5216 = vpop.f32.mrb[0].mxu0
    %v5217 = vadd.f32 0.0, %v5216
    %v5218 = vpop.f32.mrb[0].mxu0
    %v5219 = vpop.f32.mrb[0].mxu0
    %v5220 = vadd.f32 0.0, %v5219
    %v5221 = vpop.f32.mrb[0].mxu0
    %5222 = vdwg.mxu0
    %v5223 = vadd.f32 %v4253, %v5209
    %v5224 = vadd.f32 %v4254, %v5212
    %v5225 = vadd.f32 %v4255, %v5217
    %v5226 = vadd.f32 %v4256, %v5220
    %s5227 = scalar_lea.vmem %s12, 3
    %v5228 = vld [vmem:[%s5227] sm:$0x1]
    %v5230 = vlaneseq
    %v5231 = vshrl.u32 %v5230, 7
    %v5232 = vsub.s32 0, %v5231
    %v5233 = vrot.slane %v5228, %v5232
    %v5235 = vadd.f32 %v5223, %v5233
    %v5236 = vadd.f32 %v5224, %v5233
    %v5237 = vadd.f32 %v5225, %v5233
    %v5238 = vadd.f32 %v5226, %v5233
    %v5239 = vsel %vm255, %v5235, 0.0
    %5240 = vadd.xlane.f32.xlu0 %v5239
    %v5241 = vpop.xlane.xlu0 %5240
    %v5242 = vsel %vm255, %v5236, 0.0
    %5243 = vadd.xlane.f32.xlu0 %v5242
    %v5244 = vpop.xlane.xlu0 %5243
    %v5245 = vsel %vm255, %v5237, 0.0
    %5246 = vadd.xlane.f32.xlu0 %v5245
    %v5247 = vpop.xlane.xlu0 %5246
    %v5248 = vsel %vm255, %v5238, 0.0
    %5249 = vadd.xlane.f32.xlu0 %v5248
    %v5250 = vpop.xlane.xlu0 %5249
    %v5251 = vmul.f32 %v5241, %v330
    %v5252 = vmul.f32 %v5244, %v330
    %v5253 = vmul.f32 %v5247, %v330
    %v5254 = vmul.f32 %v5250, %v330
    %v5255 = vsub.f32 %v5235, %v5251
    %v5256 = vsub.f32 %v5236, %v5252
    %v5257 = vsub.f32 %v5237, %v5253
    %v5258 = vsub.f32 %v5238, %v5254
    %v5259 = vmul.f32 %v5255, %v5255
    %v5260 = vmul.f32 %v5256, %v5256
    %v5261 = vmul.f32 %v5257, %v5257
    %v5262 = vmul.f32 %v5258, %v5258
    %v5263 = vsel %vm255, %v5259, 0.0
    %5264 = vadd.xlane.f32.xlu0 %v5263
    %v5265 = vpop.xlane.xlu0 %5264
    %v5266 = vsel %vm255, %v5260, 0.0
    %5267 = vadd.xlane.f32.xlu0 %v5266
    %v5268 = vpop.xlane.xlu0 %5267
    %v5269 = vsel %vm255, %v5261, 0.0
    %5270 = vadd.xlane.f32.xlu0 %v5269
    %v5271 = vpop.xlane.xlu0 %5270
    %v5272 = vsel %vm255, %v5262, 0.0
    %5273 = vadd.xlane.f32.xlu0 %v5272
    %v5274 = vpop.xlane.xlu0 %5273
    %v5275 = vmul.f32 %v5265, %v330
    %v5276 = vmul.f32 %v5268, %v330
    %v5277 = vmul.f32 %v5271, %v330
    %v5278 = vmul.f32 %v5274, %v330
    %v5279 = vadd.f32 %v5275, 1e-05
    %v5280 = vadd.f32 %v5276, 1e-05
    %v5281 = vadd.f32 %v5277, 1e-05
    %v5282 = vadd.f32 %v5278, 1e-05
    %v5283 = vrsqrt.pop %v5279
    %v5284 = vrsqrt.pop %v5280
    %v5285 = vrsqrt.pop %v5281
    %v5286 = vrsqrt.pop %v5282
    %v5287 = vmul.f32 %v5255, %v5283
    %v5288 = vmul.f32 %v5256, %v5284
    %v5289 = vmul.f32 %v5257, %v5285
    %v5290 = vmul.f32 %v5258, %v5286
    %v5291 = vlaneseq
    %v5292 = vshrl.u32 %v5291, 7
    %v5293 = vsub.s32 1, %v5292
    %v5294 = vrot.slane %v4258, %v5293
    %v5295 = vmul.f32 %v5287, %v5294
    %v5296 = vmul.f32 %v5288, %v5294
    %v5297 = vmul.f32 %v5289, %v5294
    %v5298 = vmul.f32 %v5290, %v5294
    %v5299 = vlaneseq
    %v5300 = vshrl.u32 %v5299, 7
    %v5301 = vsub.s32 1, %v5300
    %v5302 = vrot.slane %v4260, %v5301
    %v5303 = vadd.f32 %v5295, %v5302
    %v5304 = vadd.f32 %v5296, %v5302
    %v5305 = vadd.f32 %v5297, %v5302
    %v5306 = vadd.f32 %v5298, %v5302
    %s5307 = scalar_lea.vmem %s13, 96
    %v5308 = vld [vmem:[%s5307] sm:$0xf]
    %v5309 = vld [vmem:[%s5307 + $0x4] sm:$0xf]
    %v5310 = vld [vmem:[%s5307 + $0x8] sm:$0xf]
    %v5311 = vld [vmem:[%s5307 + $0xc] sm:$0xf]
    %v5312 = vld [vmem:[%s5307 + $0x10] sm:$0xf]
    %v5313 = vld [vmem:[%s5307 + $0x14] sm:$0xf]
    %v5314 = vld [vmem:[%s5307 + $0x18] sm:$0xf]
    %v5315 = vld [vmem:[%s5307 + $0x1c] sm:$0xf]
    %v5316 = vpack.c.bf16 %v5304, %v5303
    %v5317 = vpack.c.bf16 %v5306, %v5305
    %s5318 = scalar_lea.vmem %s14, 3
    %v5319 = vld [vmem:[%s5318] sm:$0x1]
    %v5321 = vlaneseq
    %v5322 = vshrl.u32 %v5321, 7
    %v5323 = vsub.s32 0, %v5322
    %v5324 = vrot.slane %v5319, %v5323
    %v5334 = vunpack.c.l.b16 %v5308
    %v5335 = vunpack.c.l.b16 %v5309
    %v5336 = vunpack.c.l.b16 %v5310
    %v5337 = vunpack.c.l.b16 %v5311
    %v5338 = vunpack.c.l.b16 %v5312
    %v5339 = vunpack.c.l.b16 %v5313
    %v5340 = vunpack.c.l.b16 %v5314
    %v5341 = vunpack.c.l.b16 %v5315
    %v5342 = vpack.c.b16 %v5335, %v5334
    %v5343 = vpack.c.b16 %v5337, %v5336
    %v5344 = vpack.c.b16 %v5339, %v5338
    %v5345 = vpack.c.b16 %v5341, %v5340
    %v5351 = vsel %vm255, %v5316, 0
    %v5354 = vsel %vm255, %v5317, 0
    %5356 = vmatprep.subr.bf16.mxu0 0
    %5357 = vmatpush1.bf16.msra.mxu0 %v5342
    %5358 = vmatprep.subr.bf16.mxu0 0
    %5359 = vmatpush1.bf16.msra.mxu0 %v5343
    %5360 = vmatprep.subr.bf16.mxu0 0
    %5361 = vmatpush1.bf16.msra.mxu0 %v5344
    %5362 = vmatprep.subr.bf16.mxu0 0
    %5363 = vmatpush1.bf16.msra.mxu0 %v5345
    %5364 = vmatprep.subr.bf16.mxu0 0
    %5365 = vmatpush1.bf16.msra.mxu0 0
    %5366 = vmatprep.subr.bf16.mxu0 0
    %5367 = vmatpush1.bf16.msra.mxu0 0
    %5368 = vmatprep.subr.bf16.mxu0 0
    %5369 = vmatpush1.bf16.msra.mxu0 0
    %5370 = vmatprep.subr.bf16.mxu0 0
    %5371 = vmatpush1.bf16.msra.mxu0 0
    %5372 = vmatprep.subr.bf16.mxu0 0
    %5373 = vmatpush1.bf16.msra.mxu0 0
    %5374 = vmatprep.subr.bf16.mxu0 0
    %5375 = vmatpush1.bf16.msra.mxu0 0
    %5376 = vmatprep.subr.bf16.mxu0 0
    %5377 = vmatpush1.bf16.msra.mxu0 0
    %5378 = vmatprep.subr.bf16.mxu0 0
    %5379 = vmatpush1.bf16.msra.mxu0 0
    %5380 = vmatprep.subr.bf16.mxu0 0
    %5381 = vmatpush1.bf16.msra.mxu0 0
    %5382 = vmatprep.subr.bf16.mxu0 0
    %5383 = vmatpush1.bf16.msra.mxu0 0
    %5384 = vmatprep.subr.bf16.mxu0 0
    %5385 = vmatpush1.bf16.msra.mxu0 0
    %5386 = vmatprep.subr.bf16.mxu0 0
    %5387 = vmatpush1.bf16.msra.mxu0 0
    %5388 = vmatprep.mubr.bf16.mxu0 0
    %5389 = vmatmul.mubr.bf16.gmra.mrb[0].mxu0 %v5351
    %v5390 = vpop.f32.mrb[0].mxu0
    %v5391 = vadd.f32 %v5324, %v5390
    %v5392 = vpop.f32.mrb[0].mxu0
    %v5393 = vpop.f32.mrb[0].mxu0
    %v5394 = vadd.f32 %v5324, %v5393
    %v5395 = vpop.f32.mrb[0].mxu0
    %5396 = vmatprep.mubr.bf16.mxu0 0
    %5397 = vmatmul.mubr.bf16.gmra.mrb[0].mxu0 %v5354
    %v5398 = vpop.f32.mrb[0].mxu0
    %v5399 = vadd.f32 %v5324, %v5398
    %v5400 = vpop.f32.mrb[0].mxu0
    %v5401 = vpop.f32.mrb[0].mxu0
    %v5402 = vadd.f32 %v5324, %v5401
    %v5403 = vpop.f32.mrb[0].mxu0
    %5404 = vdwg.mxu0
    %v5405 = vmul.f32 %v5391, %v5391
    %v5406 = vmul.f32 %v5394, %v5394
    %v5407 = vmul.f32 %v5399, %v5399
    %v5408 = vmul.f32 %v5402, %v5402
    %v5409 = vmul.f32 %v5391, %v5405
    %v5410 = vmul.f32 %v5394, %v5406
    %v5411 = vmul.f32 %v5399, %v5407
    %v5412 = vmul.f32 %v5402, %v5408
    %v5413 = vmul.f32 %v5409, 0.044715
    %v5414 = vmul.f32 %v5410, 0.044715
    %v5415 = vmul.f32 %v5411, 0.044715
    %v5416 = vmul.f32 %v5412, 0.044715
    %v5417 = vadd.f32 %v5391, %v5413
    %v5418 = vadd.f32 %v5394, %v5414
    %v5419 = vadd.f32 %v5399, %v5415
    %v5420 = vadd.f32 %v5402, %v5416
    %v5421 = vmul.f32 %v5417, 0.7978846
    %v5422 = vmul.f32 %v5418, 0.7978846
    %v5423 = vmul.f32 %v5419, 0.7978846
    %v5424 = vmul.f32 %v5420, 0.7978846
    %v5425 = vtanh.pop %v5421
    %v5426 = vtanh.pop %v5422
    %v5427 = vtanh.pop %v5423
    %v5428 = vtanh.pop %v5424
    %v5429 = vadd.f32 %v5425, 1.0
    %v5430 = vadd.f32 %v5426, 1.0
    %v5431 = vadd.f32 %v5427, 1.0
    %v5432 = vadd.f32 %v5428, 1.0
    %v5433 = vmul.f32 %v5429, 0.5
    %v5434 = vmul.f32 %v5430, 0.5
    %v5435 = vmul.f32 %v5431, 0.5
    %v5436 = vmul.f32 %v5432, 0.5
    %v5437 = vmul.f32 %v5391, %v5433
    %v5438 = vmul.f32 %v5394, %v5434
    %v5439 = vmul.f32 %v5399, %v5435
    %v5440 = vmul.f32 %v5402, %v5436
    %s5441 = scalar_lea.vmem %s15, 192
    %v5442 = vld [vmem:[%s5441] sm:$0xf]
    %v5443 = vld [vmem:[%s5441 + $0x4] sm:$0xf]
    %v5444 = vld [vmem:[%s5441 + $0x8] sm:$0xf]
    %v5445 = vld [vmem:[%s5441 + $0xc] sm:$0xf]
    %v5446 = vld [vmem:[%s5441 + $0x10] sm:$0xf]
    %v5447 = vld [vmem:[%s5441 + $0x14] sm:$0xf]
    %v5448 = vld [vmem:[%s5441 + $0x18] sm:$0xf]
    %v5449 = vld [vmem:[%s5441 + $0x1c] sm:$0xf]
    %v5450 = vld [vmem:[%s5441 + $0x20] sm:$0xf]
    %v5451 = vld [vmem:[%s5441 + $0x24] sm:$0xf]
    %v5452 = vld [vmem:[%s5441 + $0x28] sm:$0xf]
    %v5453 = vld [vmem:[%s5441 + $0x2c] sm:$0xf]
    %v5454 = vld [vmem:[%s5441 + $0x30] sm:$0xf]
    %v5455 = vld [vmem:[%s5441 + $0x34] sm:$0xf]
    %v5456 = vld [vmem:[%s5441 + $0x38] sm:$0xf]
    %v5457 = vld [vmem:[%s5441 + $0x3c] sm:$0xf]
    %v5458 = vpack.c.bf16 %v5438, %v5437
    %v5459 = vpack.c.bf16 %v5440, %v5439
    %v5476 = vunpack.c.l.b16 %v5442
    %v5477 = vunpack.c.l.b16 %v5443
    %v5478 = vunpack.c.l.b16 %v5444
    %v5479 = vunpack.c.l.b16 %v5445
    %v5480 = vunpack.c.l.b16 %v5446
    %v5481 = vunpack.c.l.b16 %v5447
    %v5482 = vunpack.c.l.b16 %v5448
    %v5483 = vunpack.c.l.b16 %v5449
    %v5484 = vunpack.c.l.b16 %v5450
    %v5485 = vunpack.c.l.b16 %v5451
    %v5486 = vunpack.c.l.b16 %v5452
    %v5487 = vunpack.c.l.b16 %v5453
    %v5488 = vunpack.c.l.b16 %v5454
    %v5489 = vunpack.c.l.b16 %v5455
    %v5490 = vunpack.c.l.b16 %v5456
    %v5491 = vunpack.c.l.b16 %v5457
    %v5492 = vpack.c.b16 %v5477, %v5476
    %v5493 = vpack.c.b16 %v5479, %v5478
    %v5494 = vpack.c.b16 %v5481, %v5480
    %v5495 = vpack.c.b16 %v5483, %v5482
    %v5496 = vpack.c.b16 %v5485, %v5484
    %v5497 = vpack.c.b16 %v5487, %v5486
    %v5498 = vpack.c.b16 %v5489, %v5488
    %v5499 = vpack.c.b16 %v5491, %v5490
    %5508 = vmatprep.subr.bf16.mxu0 0
    %5509 = vmatpush1.bf16.msra.mxu0 %v5492
    %5510 = vmatprep.subr.bf16.mxu0 0
    %5511 = vmatpush1.bf16.msra.mxu0 %v5493
    %5512 = vmatprep.subr.bf16.mxu0 0
    %5513 = vmatpush1.bf16.msra.mxu0 %v5494
    %5514 = vmatprep.subr.bf16.mxu0 0
    %5515 = vmatpush1.bf16.msra.mxu0 %v5495
    %5516 = vmatprep.subr.bf16.mxu0 0
    %5517 = vmatpush1.bf16.msra.mxu0 %v5496
    %5518 = vmatprep.subr.bf16.mxu0 0
    %5519 = vmatpush1.bf16.msra.mxu0 %v5497
    %5520 = vmatprep.subr.bf16.mxu0 0
    %5521 = vmatpush1.bf16.msra.mxu0 %v5498
    %5522 = vmatprep.subr.bf16.mxu0 0
    %5523 = vmatpush1.bf16.msra.mxu0 %v5499
    %5524 = vmatprep.subr.bf16.mxu0 0
    %5525 = vmatpush1.bf16.msra.mxu0 0
    %5526 = vmatprep.subr.bf16.mxu0 0
    %5527 = vmatpush1.bf16.msra.mxu0 0
    %5528 = vmatprep.subr.bf16.mxu0 0
    %5529 = vmatpush1.bf16.msra.mxu0 0
    %5530 = vmatprep.subr.bf16.mxu0 0
    %5531 = vmatpush1.bf16.msra.mxu0 0
    %5532 = vmatprep.subr.bf16.mxu0 0
    %5533 = vmatpush1.bf16.msra.mxu0 0
    %5534 = vmatprep.subr.bf16.mxu0 0
    %5535 = vmatpush1.bf16.msra.mxu0 0
    %5536 = vmatprep.subr.bf16.mxu0 0
    %5537 = vmatpush1.bf16.msra.mxu0 0
    %5538 = vmatprep.subr.bf16.mxu0 0
    %5539 = vmatpush1.bf16.msra.mxu0 0
    %5540 = vmatprep.mubr.bf16.mxu0 0
    %5541 = vmatmul.mubr.bf16.gmra.mrb[0].mxu0 %v5458
    %v5542 = vpop.f32.mrb[0].mxu0
    %v5543 = vadd.f32 0.0, %v5542
    %v5544 = vpop.f32.mrb[0].mxu0
    %v5545 = vpop.f32.mrb[0].mxu0
    %v5546 = vadd.f32 0.0, %v5545
    %v5547 = vpop.f32.mrb[0].mxu0
    %5548 = vmatprep.mubr.bf16.mxu0 0
    %5549 = vmatmul.mubr.bf16.gmra.mrb[0].mxu0 %v5459
    %v5550 = vpop.f32.mrb[0].mxu0
    %v5551 = vadd.f32 0.0, %v5550
    %v5552 = vpop.f32.mrb[0].mxu0
    %v5553 = vpop.f32.mrb[0].mxu0
    %v5554 = vadd.f32 0.0, %v5553
    %v5555 = vpop.f32.mrb[0].mxu0
    %5556 = vdwg.mxu0
    %v5557 = vadd.f32 %v5235, %v5543
    %v5558 = vadd.f32 %v5236, %v5546
    %v5559 = vadd.f32 %v5237, %v5551
    %v5560 = vadd.f32 %v5238, %v5554
    %s5561 = scalar_lea.vmem %s16, 3
    %v5562 = vld [vmem:[%s5561] sm:$0x1]
    %v5564 = vlaneseq
    %v5565 = vshrl.u32 %v5564, 7
    %v5566 = vsub.s32 0, %v5565
    %v5567 = vrot.slane %v5562, %v5566
    %v5569 = vadd.f32 %v5557, %v5567
    %v5570 = vadd.f32 %v5558, %v5567
    %v5571 = vadd.f32 %v5559, %v5567
    %v5572 = vadd.f32 %v5560, %v5567
    %5573 = vst.msk [vmem:[#allocation2] sm:$0xff] %vm255, %v5569
    %5574 = vst.msk [vmem:[#allocation2 + $0x8] sm:$0xff] %vm255, %v5570
    %5575 = vst.msk [vmem:[#allocation2 + $0x10] sm:$0xff] %vm255, %v5571
    %5576 = vst.msk [vmem:[#allocation2 + $0x18] sm:$0xff] %vm255, %v5572
    // Predicated region
    $region70: #{vit_autoencoder_forward.1} parent=1 // pred_check
      _
    $region71: #{vit_autoencoder_forward.1} parent=1 // pred_check_branch
      %5578 = sbr.rel (0) target = $region73
    $region72: #{vit_autoencoder_forward.1} parent=1 // pred_region
      %s5580 = ssub.s32 512, 512
      %5581 = vsyncadd [#allocation3], %s5580
      %s5582 = sshll.u32 [#allocation2], 4
      %s5583 = int_to_ptr.vmem [resolvable:$true] %s5582
      %5588 = dma.vmem_to_hbm [thread:$0]  %s5583, 512, %s17, [#allocation3], 128, 128, 8
    $region73: #{vit_autoencoder_forward.1} parent=1 // pred_fallthru
      _
    // Predicated region
    $region74: #{vit_autoencoder_forward.1} parent=1 // pred_check
      _
    $region75: #{vit_autoencoder_forward.1} parent=1 // pred_check_branch
      %5590 = sbr.rel (0) target = $region77
    $region76: #{vit_autoencoder_forward.1} parent=1 // pred_region
      %5591 = dma.done [#allocation3], 512
    $region77: #{vit_autoencoder_forward.1} parent=1 // pred_fallthru
      _
    %5592 = vsyncpa [#allocation3], 1

</llo_original>
